<compile_context>
chip_gen: v5e
topology: v5e:2x2
jax: 0.10.0
libtpu: 0.0.40
codegen_flags: <defaults>
</compile_context>

<pallas_src>
import functools

import jax
import jax.numpy as jnp
from jax import lax
from jax.experimental import pallas as pl
from jax.experimental.pallas import tpu as pltpu


def bottleneck_kernel(x_ref, w1_ref, s1_ref, b1_ref,
                      w2_ref, s2_ref, b2_ref,
                      w3_ref, s3_ref, b3_ref,
                      out_ref, pad_ref, *, Nb, D, H, W, P, Cin, Cout):
    f32 = jnp.float32
    bf16 = jnp.bfloat16
    rows = Nb * D * H
    WP = W * P

    # ---- conv1 (1x1x1) + bn1 + relu : one MXU matmul, K = W*Cin ----
    x2 = x_ref[...].reshape(rows, W * Cin)                          # bf16
    h1 = jnp.dot(x2, w1_ref[...], preferred_element_type=f32)       # (rows, WP)
    h1 = jnp.maximum(h1 * s1_ref[...] + b1_ref[...], 0.0)

    # ---- stage h1 (bf16) into the D/H-padded scratch for conv2 ----
    # W offsets are folded into the weights, so the scratch has no W halo.
    # Only the D/H halo faces are re-zeroed each step (O(surface)); the
    # interior is fully overwritten, so this is correct when the batch axis is
    # split across TensorCores ("parallel") with per-core scratch.
    pad_ref[:, 0:1, :, :] = jnp.zeros((Nb, 1, H + 2, WP), bf16)
    pad_ref[:, D + 1:D + 2, :, :] = jnp.zeros((Nb, 1, H + 2, WP), bf16)
    pad_ref[:, 1:D + 1, 0:1, :] = jnp.zeros((Nb, D, 1, WP), bf16)
    pad_ref[:, 1:D + 1, H + 1:H + 2, :] = jnp.zeros((Nb, D, 1, WP), bf16)
    pad_ref[:, 1:D + 1, 1:H + 1, :] = h1.astype(bf16).reshape(Nb, D, H, WP)

    # ---- conv2 (3x3x3, pad=1, stride=1) + bn2 + relu ----
    # 3 grouped accumulation matmuls (one per kd), each K = 3*W*P, instead of a
    # single materialised 27x im2col buffer.
    h2 = jnp.zeros((rows, WP), f32)
    for kd in range(3):
        cols = [pad_ref[:, kd:kd + D, kh:kh + H, :].reshape(rows, WP)
                for kh in range(3)]
        col = jnp.concatenate(cols, axis=-1)                        # (rows, 3*WP) bf16
        h2 = h2 + jnp.dot(col, w2_ref[kd], preferred_element_type=f32)
    h2 = jnp.maximum(h2 * s2_ref[...] + b2_ref[...], 0.0)

    # ---- conv3 (1x1x1) + bn3 + residual + relu : lane-dense store ----
    h3 = jnp.dot(h2.astype(bf16), w3_ref[...], preferred_element_type=f32)
    # Late residual read: reload x from VMEM here (short f32 live range).
    h3 = h3 * s3_ref[...] + b3_ref[...] \
        + x_ref[...].reshape(rows, W * Cin).astype(f32)
    out_ref[...] = jnp.maximum(h3, 0.0).reshape(
        Nb, D * H, W * Cout).astype(out_ref.dtype)


def _pick_nb(N, DH):
    """Fold batch elements per grid step: M = nb*DH >= 256 if possible, while
    keeping >= 2 grid steps (megacore) and an evenly dividing grid."""
    nb = max(1, min(N, -(-256 // max(DH, 1))))
    while nb > 1 and (N // nb) < 2:
        nb -= 1
    while N % nb != 0:
        nb -= 1
    return nb


def bottleneck_forward(x_ncdhw, params, nb=None):
    (w1, s1, b1, w2, s2, b2, w3, s3, b3) = params
    N, Cin, D, H, W = x_ncdhw.shape
    P = w1.shape[1]
    Cout = w3.shape[1]
    if Cin != Cout:
        # TODO(synk): stride>1 / downsample projection path not implemented.
        raise NotImplementedError("residual path requires in_planes == 4*planes")

    DH, WP, WCin, WCout = D * H, W * P, W * Cin, W * Cout
    if nb is None:
        nb = _pick_nb(N, DH)

    # NCDHW -> NDHWC -> lane-dense (N, D*H, W*C); bf16 for the MXU.
    x2d = jnp.transpose(x_ncdhw, (0, 2, 3, 4, 1)).reshape(N, DH, WCin)
    x_bf = x2d.astype(jnp.bfloat16)

    # conv1 / conv3: block-diagonal weights (kron with I_W) so matmul results
    # land directly in the (D*H, W*C) lane organisation.
    eye_w = jnp.eye(W, dtype=jnp.float32)
    w1_bd = jnp.einsum("uw,cp->ucwp", eye_w, w1).reshape(WCin, WP)
    w3_bd = jnp.einsum("uw,cp->ucwp", eye_w, w3).reshape(WP, WCout)

    # conv2: fold the kw (W-axis) tap offset into the weights with shift
    # matrices S_{kw-1}; sum the 3 kw taps per (kd, kh), then concatenate the
    # 3 kh taps per kd into one (3*W*P, W*P) group weight.
    w2_5d = w2.reshape(3, 3, 3, P, P)           # (kd, kh, kw, cin, cout)
    shifts = [jnp.eye(W, k=1 - kw, dtype=jnp.float32) for kw in range(3)]
    groups = []
    for kd in range(3):
        blocks = []
        for kh in range(3):
            blk = sum(
                jnp.einsum("vu,cp->vcup", shifts[kw], w2_5d[kd, kh, kw])
                .reshape(WP, WP)
                for kw in range(3))
            blocks.append(blk)
        groups.append(jnp.concatenate(blocks, axis=0))   # (3*WP, WP)
    w2g = jnp.stack(groups, axis=0)                      # (3, 3*WP, WP)

    w1_bd = w1_bd.astype(jnp.bfloat16)
    w2g = w2g.astype(jnp.bfloat16)
    w3_bd = w3_bd.astype(jnp.bfloat16)

    # Folded-BN scale/bias tiled to the (1, W*C) lane organisation (f32).
    s1t, b1t = jnp.tile(s1, (1, W)), jnp.tile(b1, (1, W))
    s2t, b2t = jnp.tile(s2, (1, W)), jnp.tile(b2, (1, W))
    s3t, b3t = jnp.tile(s3, (1, W)), jnp.tile(b3, (1, W))

    # Algorithmic conv FLOPs (zero kron blocks excluded).
    flops = 2 * N * D * H * W * (Cin * P + 27 * P * P + P * Cout)
    bytes_accessed = (x_bf.size * 2 + N * DH * WCout * 2
                      + (w1_bd.size + w2g.size + w3_bd.size) * 2
                      + (s1t.size + b1t.size + s2t.size + b2t.size
                         + s3t.size + b3t.size) * 4)

    kernel = functools.partial(bottleneck_kernel, Nb=nb, D=D, H=H, W=W,
                               P=P, Cin=Cin, Cout=Cout)

    out2d = pl.pallas_call(
        kernel,
        out_shape=jax.ShapeDtypeStruct((N, DH, WCout), jnp.bfloat16),
        grid_spec=pltpu.PrefetchScalarGridSpec(
            num_scalar_prefetch=0,
            grid=(N // nb,),
            in_specs=[
                pl.BlockSpec((nb, DH, WCin), lambda n: (n, 0, 0)),
                pl.BlockSpec(w1_bd.shape, lambda n: (0, 0)),
                pl.BlockSpec(s1t.shape, lambda n: (0, 0)),
                pl.BlockSpec(b1t.shape, lambda n: (0, 0)),
                pl.BlockSpec(w2g.shape, lambda n: (0, 0, 0)),
                pl.BlockSpec(s2t.shape, lambda n: (0, 0)),
                pl.BlockSpec(b2t.shape, lambda n: (0, 0)),
                pl.BlockSpec(w3_bd.shape, lambda n: (0, 0)),
                pl.BlockSpec(s3t.shape, lambda n: (0, 0)),
                pl.BlockSpec(b3t.shape, lambda n: (0, 0)),
            ],
            out_specs=pl.BlockSpec((nb, DH, WCout), lambda n: (n, 0, 0)),
            scratch_shapes=[pltpu.VMEM((nb, D + 2, H + 2, WP), jnp.bfloat16)],
        ),
        compiler_params=pltpu.CompilerParams(
            dimension_semantics=("parallel",),
            # Plenty at this size; raise toward ~96-112 MiB on v5e/v6e (cap
            # ~48-56 MiB on v7x) only when blocks grow beyond the toy size.
            vmem_limit_bytes=32 * 1024 * 1024),
        cost_estimate=pl.CostEstimate(flops=flops, transcendentals=0,
                                      bytes_accessed=bytes_accessed),
    )(x_bf, w1_bd, s1t, b1t, w2g, s2t, b2t, w3_bd, s3t, b3t)

    out = out2d.reshape(N, D, H, W, Cout)
    return jnp.transpose(out, (0, 4, 1, 2, 3)).astype(jnp.float32)  # NCDHW


def bottleneck_reference(x_ncdhw, params):
    """Pure-JAX reference (lax.conv) with the same bf16 rounding of the MXU
    inputs as the kernel; accumulation and BN/ReLU epilogue in f32."""
    (w1, s1, b1, w2, s2, b2, w3, s3, b3) = params
    q = lambda v: v.astype(jnp.bfloat16).astype(jnp.float32)
    dn = ("NDHWC", "DHWIO", "NDHWC")

    def conv(inp, w, pad):
        return lax.conv_general_dilated(inp, w, (1, 1, 1), pad,
                                        dimension_numbers=dn)

    x = jnp.transpose(x_ncdhw, (0, 2, 3, 4, 1))
    xq = q(x)
    h = conv(xq, q(w1).reshape(1, 1, 1, *w1.shape), "VALID")
    h = jnp.maximum(h * s1[0] + b1[0], 0.0)
    h = conv(q(h), q(w2), "SAME")
    h = jnp.maximum(h * s2[0] + b2[0], 0.0)
    h = conv(q(h), q(w3).reshape(1, 1, 1, *w3.shape), "VALID")
    h = jnp.maximum(h * s3[0] + b3[0] + xq, 0.0)
    return jnp.transpose(h, (0, 4, 1, 2, 3))


def make_params(key, in_planes, planes):
    expansion = 4
    cout = planes * expansion
    ks = jax.random.split(key, 16)
    w1 = (jax.random.normal(ks[0], (in_planes, planes)) * 0.1).astype(jnp.float32)
    w2 = (jax.random.normal(ks[1], (3, 3, 3, planes, planes)) * 0.1).astype(jnp.float32)
    w3 = (jax.random.normal(ks[2], (planes, cout)) * 0.1).astype(jnp.float32)

    def fold_bn(kg, kb, km, kv, c):
        gamma = jax.random.normal(kg, (c,)) * 0.1 + 1.0
        beta = jax.random.normal(kb, (c,)) * 0.1
        mean = jax.random.normal(km, (c,)) * 0.1
        var = jax.random.uniform(kv, (c,), minval=0.5, maxval=1.5)
        eps = 1e-5
        scale = gamma / jnp.sqrt(var + eps)
        bias = beta - mean * scale
        return (scale.reshape(1, c).astype(jnp.float32),
                bias.reshape(1, c).astype(jnp.float32))

    s1, b1 = fold_bn(ks[3], ks[4], ks[5], ks[6], planes)
    s2, b2 = fold_bn(ks[7], ks[8], ks[9], ks[10], planes)
    s3, b3 = fold_bn(ks[11], ks[12], ks[13], ks[14], cout)
    return (w1, s1, b1, w2, s2, b2, w3, s3, b3)


if __name__ == "__main__":
    key = jax.random.PRNGKey(0)
    k_x, k_p = jax.random.split(key)

    # Bottleneck(in_planes=32, planes=8, stride=1, downsample=None)
    N, in_planes, planes = 4, 32, 8
    D = H = W = 8
    x = jax.random.normal(k_x, (N, in_planes, D, H, W), jnp.float32)
    params = make_params(k_p, in_planes, planes)

    out = jax.block_until_ready(bottleneck_forward(x, params))
    ref = bottleneck_reference(x, params)

    assert out.shape == (N, planes * 4, D, H, W)
    err = float(jnp.max(jnp.abs(out - ref)))
    # Kernel output is stored as bf16; tolerance covers bf16 output rounding.
    assert jnp.allclose(out, ref, atol=2e-2, rtol=2e-2), err
    print("KERNEL_OK")
</pallas_src>

<mosaic_0001>
module attributes {stable_mosaic.version = 11 : i64} {
  func.func @bottleneck_kernel(%arg0: i32, %arg1: memref<2x64x256xbf16, #tpu.memory_space<vmem>>, %arg2: memref<256x64xbf16, #tpu.memory_space<vmem>>, %arg3: memref<1x64xf32, #tpu.memory_space<vmem>>, %arg4: memref<1x64xf32, #tpu.memory_space<vmem>>, %arg5: memref<3x192x64xbf16, #tpu.memory_space<vmem>>, %arg6: memref<1x64xf32, #tpu.memory_space<vmem>>, %arg7: memref<1x64xf32, #tpu.memory_space<vmem>>, %arg8: memref<64x256xbf16, #tpu.memory_space<vmem>>, %arg9: memref<1x256xf32, #tpu.memory_space<vmem>>, %arg10: memref<1x256xf32, #tpu.memory_space<vmem>>, %arg11: memref<2x64x256xbf16, #tpu.memory_space<vmem>>, %arg12: memref<2x10x10x64xbf16, #tpu.memory_space<vmem>>) attributes {dimension_semantics = [#tpu.dimension_semantics<parallel>], iteration_bounds = array<i64: 2>, scalar_prefetch = 0 : i64, scratch_operands = 1 : i64, tpu.core_type = #tpu.core_type<tc>, window_params = [{transform_indices = @transform_0, window_bounds = array<i64: 2, 64, 256>}, {pipeline_mode = #tpu.pipeline_mode<synchronous>, transform_indices = @transform_1, window_bounds = array<i64: 256, 64>}, {pipeline_mode = #tpu.pipeline_mode<synchronous>, transform_indices = @transform_2, window_bounds = array<i64: 1, 64>}, {pipeline_mode = #tpu.pipeline_mode<synchronous>, transform_indices = @transform_3, window_bounds = array<i64: 1, 64>}, {pipeline_mode = #tpu.pipeline_mode<synchronous>, transform_indices = @transform_4, window_bounds = array<i64: 3, 192, 64>}, {pipeline_mode = #tpu.pipeline_mode<synchronous>, transform_indices = @transform_5, window_bounds = array<i64: 1, 64>}, {pipeline_mode = #tpu.pipeline_mode<synchronous>, transform_indices = @transform_6, window_bounds = array<i64: 1, 64>}, {pipeline_mode = #tpu.pipeline_mode<synchronous>, transform_indices = @transform_7, window_bounds = array<i64: 64, 256>}, {pipeline_mode = #tpu.pipeline_mode<synchronous>, transform_indices = @transform_8, window_bounds = array<i64: 1, 256>}, {pipeline_mode = #tpu.pipeline_mode<synchronous>, transform_indices = @transform_9, window_bounds = array<i64: 1, 256>}, {transform_indices = @transform_10, window_bounds = array<i64: 2, 64, 256>}]} {
    %c0 = arith.constant 0 : index
    %c0_0 = arith.constant 0 : index
    %c0_1 = arith.constant 0 : index
    %0 = vector.load %arg1[%c0, %c0_0, %c0_1] : memref<2x64x256xbf16, #tpu.memory_space<vmem>>, vector<2x64x256xbf16>
    %1 = vector.shape_cast %0 : vector<2x64x256xbf16> to vector<128x256xbf16>
    %c0_2 = arith.constant 0 : index
    %c0_3 = arith.constant 0 : index
    %2 = vector.load %arg2[%c0_2, %c0_3] : memref<256x64xbf16, #tpu.memory_space<vmem>>, vector<256x64xbf16>
    %cst = arith.constant dense<0.000000e+00> : vector<128x64xf32>
    %3 = tpu.matmul %1, %2, %cst {dimension_numbers = #tpu.dot_dimension_numbers<[1], [0], [0], [1], [0, 0, 1, 1], [], []>} : vector<128x256xbf16>, vector<256x64xbf16>, vector<128x64xf32> -> vector<128x64xf32>
    %c0_4 = arith.constant 0 : index
    %c0_5 = arith.constant 0 : index
    %4 = vector.load %arg3[%c0_4, %c0_5] : memref<1x64xf32, #tpu.memory_space<vmem>>, vector<1x64xf32>
    %5 = vector.broadcast %4 : vector<1x64xf32> to vector<128x64xf32>
    %6 = arith.mulf %3, %5 : vector<128x64xf32>
    %c0_6 = arith.constant 0 : index
    %c0_7 = arith.constant 0 : index
    %7 = vector.load %arg4[%c0_6, %c0_7] : memref<1x64xf32, #tpu.memory_space<vmem>>, vector<1x64xf32>
    %8 = vector.broadcast %7 : vector<1x64xf32> to vector<128x64xf32>
    %9 = arith.addf %6, %8 : vector<128x64xf32>
    %cst_8 = arith.constant 0.000000e+00 : f32
    %10 = vector.broadcast %cst_8 : f32 to vector<128x64xf32>
    %11 = arith.maximumf %9, %10 : vector<128x64xf32>
    %cst_9 = arith.constant 0.000000e+00 : bf16
    %12 = vector.broadcast %cst_9 : bf16 to vector<2x1x10x64xbf16>
    %c0_10 = arith.constant 0 : index
    %c0_11 = arith.constant 0 : index
    %c0_12 = arith.constant 0 : index
    %c0_13 = arith.constant 0 : index
    %13 = vector.load %arg12[%c0_10, %c0_11, %c0_12, %c0_13] : memref<2x10x10x64xbf16, #tpu.memory_space<vmem>>, vector<2x1x10x64xbf16>
    tpu.vector_store %arg12[%c0_10, %c0_11, %c0_12, %c0_13], %12 {strides = array<i32>} : memref<2x10x10x64xbf16, #tpu.memory_space<vmem>>, vector<2x1x10x64xbf16>,
    %cst_14 = arith.constant 0.000000e+00 : bf16
    %14 = vector.broadcast %cst_14 : bf16 to vector<2x1x10x64xbf16>
    %c0_15 = arith.constant 0 : index
    %c9 = arith.constant 9 : index
    %c0_16 = arith.constant 0 : index
    %c0_17 = arith.constant 0 : index
    %15 = vector.load %arg12[%c0_15, %c9, %c0_16, %c0_17] : memref<2x10x10x64xbf16, #tpu.memory_space<vmem>>, vector<2x1x10x64xbf16>
    tpu.vector_store %arg12[%c0_15, %c9, %c0_16, %c0_17], %14 {strides = array<i32>} : memref<2x10x10x64xbf16, #tpu.memory_space<vmem>>, vector<2x1x10x64xbf16>,
    %cst_18 = arith.constant 0.000000e+00 : bf16
    %16 = vector.broadcast %cst_18 : bf16 to vector<2x8x1x64xbf16>
    %c0_19 = arith.constant 0 : index
    %c1 = arith.constant 1 : index
    %c0_20 = arith.constant 0 : index
    %c0_21 = arith.constant 0 : index
    %17 = vector.load %arg12[%c0_19, %c1, %c0_20, %c0_21] : memref<2x10x10x64xbf16, #tpu.memory_space<vmem>>, vector<2x8x1x64xbf16>
    tpu.vector_store %arg12[%c0_19, %c1, %c0_20, %c0_21], %16 {strides = array<i32>} : memref<2x10x10x64xbf16, #tpu.memory_space<vmem>>, vector<2x8x1x64xbf16>,
    %cst_22 = arith.constant 0.000000e+00 : bf16
    %18 = vector.broadcast %cst_22 : bf16 to vector<2x8x1x64xbf16>
    %c0_23 = arith.constant 0 : index
    %c1_24 = arith.constant 1 : index
    %c9_25 = arith.constant 9 : index
    %c0_26 = arith.constant 0 : index
    %19 = vector.load %arg12[%c0_23, %c1_24, %c9_25, %c0_26] : memref<2x10x10x64xbf16, #tpu.memory_space<vmem>>, vector<2x8x1x64xbf16>
    tpu.vector_store %arg12[%c0_23, %c1_24, %c9_25, %c0_26], %18 {strides = array<i32>} : memref<2x10x10x64xbf16, #tpu.memory_space<vmem>>, vector<2x8x1x64xbf16>,
    %20 = arith.truncf %11 : vector<128x64xf32> to vector<128x64xbf16>
    %21 = vector.shape_cast %20 : vector<128x64xbf16> to vector<2x8x8x64xbf16>
    %c0_27 = arith.constant 0 : index
    %c1_28 = arith.constant 1 : index
    %c1_29 = arith.constant 1 : index
    %c0_30 = arith.constant 0 : index
    %22 = vector.load %arg12[%c0_27, %c1_28, %c1_29, %c0_30] : memref<2x10x10x64xbf16, #tpu.memory_space<vmem>>, vector<2x8x8x64xbf16>
    tpu.vector_store %arg12[%c0_27, %c1_28, %c1_29, %c0_30], %21 {strides = array<i32>} : memref<2x10x10x64xbf16, #tpu.memory_space<vmem>>, vector<2x8x8x64xbf16>,
    %cst_31 = arith.constant 0.000000e+00 : f32
    %23 = vector.broadcast %cst_31 : f32 to vector<128x64xf32>
    %c0_32 = arith.constant 0 : index
    %c0_33 = arith.constant 0 : index
    %c0_34 = arith.constant 0 : index
    %c0_35 = arith.constant 0 : index
    %24 = vector.load %arg12[%c0_32, %c0_33, %c0_34, %c0_35] : memref<2x10x10x64xbf16, #tpu.memory_space<vmem>>, vector<2x8x8x64xbf16>
    %25 = vector.shape_cast %24 : vector<2x8x8x64xbf16> to vector<128x64xbf16>
    %c0_36 = arith.constant 0 : index
    %c0_37 = arith.constant 0 : index
    %c1_38 = arith.constant 1 : index
    %c0_39 = arith.constant 0 : index
    %26 = vector.load %arg12[%c0_36, %c0_37, %c1_38, %c0_39] : memref<2x10x10x64xbf16, #tpu.memory_space<vmem>>, vector<2x8x8x64xbf16>
    %27 = vector.shape_cast %26 : vector<2x8x8x64xbf16> to vector<128x64xbf16>
    %c0_40 = arith.constant 0 : index
    %c0_41 = arith.constant 0 : index
    %c2 = arith.constant 2 : index
    %c0_42 = arith.constant 0 : index
    %28 = vector.load %arg12[%c0_40, %c0_41, %c2, %c0_42] : memref<2x10x10x64xbf16, #tpu.memory_space<vmem>>, vector<2x8x8x64xbf16>
    %29 = vector.shape_cast %28 : vector<2x8x8x64xbf16> to vector<128x64xbf16>
    %30 = tpu.concatenate %25, %27, %29 in 1 : vector<128x64xbf16>, vector<128x64xbf16>, vector<128x64xbf16> -> vector<128x192xbf16>
    %c0_43 = arith.constant 0 : index
    %c0_44 = arith.constant 0 : index
    %c0_45 = arith.constant 0 : index
    %31 = vector.load %arg5[%c0_43, %c0_44, %c0_45] : memref<3x192x64xbf16, #tpu.memory_space<vmem>>, vector<1x192x64xbf16>
    %32 = vector.shape_cast %31 : vector<1x192x64xbf16> to vector<192x64xbf16>
    %cst_46 = arith.constant dense<0.000000e+00> : vector<128x64xf32>
    %33 = tpu.matmul %30, %32, %cst_46 {dimension_numbers = #tpu.dot_dimension_numbers<[1], [0], [0], [1], [0, 0, 1, 1], [], []>} : vector<128x192xbf16>, vector<192x64xbf16>, vector<128x64xf32> -> vector<128x64xf32>
    %34 = arith.addf %23, %33 : vector<128x64xf32>
    %c0_47 = arith.constant 0 : index
    %c1_48 = arith.constant 1 : index
    %c0_49 = arith.constant 0 : index
    %c0_50 = arith.constant 0 : index
    %35 = vector.load %arg12[%c0_47, %c1_48, %c0_49, %c0_50] : memref<2x10x10x64xbf16, #tpu.memory_space<vmem>>, vector<2x8x8x64xbf16>
    %36 = vector.shape_cast %35 : vector<2x8x8x64xbf16> to vector<128x64xbf16>
    %c0_51 = arith.constant 0 : index
    %c1_52 = arith.constant 1 : index
    %c1_53 = arith.constant 1 : index
    %c0_54 = arith.constant 0 : index
    %37 = vector.load %arg12[%c0_51, %c1_52, %c1_53, %c0_54] : memref<2x10x10x64xbf16, #tpu.memory_space<vmem>>, vector<2x8x8x64xbf16>
    %38 = vector.shape_cast %37 : vector<2x8x8x64xbf16> to vector<128x64xbf16>
    %c0_55 = arith.constant 0 : index
    %c1_56 = arith.constant 1 : index
    %c2_57 = arith.constant 2 : index
    %c0_58 = arith.constant 0 : index
    %39 = vector.load %arg12[%c0_55, %c1_56, %c2_57, %c0_58] : memref<2x10x10x64xbf16, #tpu.memory_space<vmem>>, vector<2x8x8x64xbf16>
    %40 = vector.shape_cast %39 : vector<2x8x8x64xbf16> to vector<128x64xbf16>
    %41 = tpu.concatenate %36, %38, %40 in 1 : vector<128x64xbf16>, vector<128x64xbf16>, vector<128x64xbf16> -> vector<128x192xbf16>
    %c1_59 = arith.constant 1 : index
    %c0_60 = arith.constant 0 : index
    %c0_61 = arith.constant 0 : index
    %42 = vector.load %arg5[%c1_59, %c0_60, %c0_61] : memref<3x192x64xbf16, #tpu.memory_space<vmem>>, vector<1x192x64xbf16>
    %43 = vector.shape_cast %42 : vector<1x192x64xbf16> to vector<192x64xbf16>
    %cst_62 = arith.constant dense<0.000000e+00> : vector<128x64xf32>
    %44 = tpu.matmul %41, %43, %cst_62 {dimension_numbers = #tpu.dot_dimension_numbers<[1], [0], [0], [1], [0, 0, 1, 1], [], []>} : vector<128x192xbf16>, vector<192x64xbf16>, vector<128x64xf32> -> vector<128x64xf32>
    %45 = arith.addf %34, %44 : vector<128x64xf32>
    %c0_63 = arith.constant 0 : index
    %c2_64 = arith.constant 2 : index
    %c0_65 = arith.constant 0 : index
    %c0_66 = arith.constant 0 : index
    %46 = vector.load %arg12[%c0_63, %c2_64, %c0_65, %c0_66] : memref<2x10x10x64xbf16, #tpu.memory_space<vmem>>, vector<2x8x8x64xbf16>
    %47 = vector.shape_cast %46 : vector<2x8x8x64xbf16> to vector<128x64xbf16>
    %c0_67 = arith.constant 0 : index
    %c2_68 = arith.constant 2 : index
    %c1_69 = arith.constant 1 : index
    %c0_70 = arith.constant 0 : index
    %48 = vector.load %arg12[%c0_67, %c2_68, %c1_69, %c0_70] : memref<2x10x10x64xbf16, #tpu.memory_space<vmem>>, vector<2x8x8x64xbf16>
    %49 = vector.shape_cast %48 : vector<2x8x8x64xbf16> to vector<128x64xbf16>
    %c0_71 = arith.constant 0 : index
    %c2_72 = arith.constant 2 : index
    %c2_73 = arith.constant 2 : index
    %c0_74 = arith.constant 0 : index
    %50 = vector.load %arg12[%c0_71, %c2_72, %c2_73, %c0_74] : memref<2x10x10x64xbf16, #tpu.memory_space<vmem>>, vector<2x8x8x64xbf16>
    %51 = vector.shape_cast %50 : vector<2x8x8x64xbf16> to vector<128x64xbf16>
    %52 = tpu.concatenate %47, %49, %51 in 1 : vector<128x64xbf16>, vector<128x64xbf16>, vector<128x64xbf16> -> vector<128x192xbf16>
    %c2_75 = arith.constant 2 : index
    %c0_76 = arith.constant 0 : index
    %c0_77 = arith.constant 0 : index
    %53 = vector.load %arg5[%c2_75, %c0_76, %c0_77] : memref<3x192x64xbf16, #tpu.memory_space<vmem>>, vector<1x192x64xbf16>
    %54 = vector.shape_cast %53 : vector<1x192x64xbf16> to vector<192x64xbf16>
    %cst_78 = arith.constant dense<0.000000e+00> : vector<128x64xf32>
    %55 = tpu.matmul %52, %54, %cst_78 {dimension_numbers = #tpu.dot_dimension_numbers<[1], [0], [0], [1], [0, 0, 1, 1], [], []>} : vector<128x192xbf16>, vector<192x64xbf16>, vector<128x64xf32> -> vector<128x64xf32>
    %56 = arith.addf %45, %55 : vector<128x64xf32>
    %c0_79 = arith.constant 0 : index
    %c0_80 = arith.constant 0 : index
    %57 = vector.load %arg6[%c0_79, %c0_80] : memref<1x64xf32, #tpu.memory_space<vmem>>, vector<1x64xf32>
    %58 = vector.broadcast %57 : vector<1x64xf32> to vector<128x64xf32>
    %59 = arith.mulf %56, %58 : vector<128x64xf32>
    %c0_81 = arith.constant 0 : index
    %c0_82 = arith.constant 0 : index
    %60 = vector.load %arg7[%c0_81, %c0_82] : memref<1x64xf32, #tpu.memory_space<vmem>>, vector<1x64xf32>
    %61 = vector.broadcast %60 : vector<1x64xf32> to vector<128x64xf32>
    %62 = arith.addf %59, %61 : vector<128x64xf32>
    %cst_83 = arith.constant 0.000000e+00 : f32
    %63 = vector.broadcast %cst_83 : f32 to vector<128x64xf32>
    %64 = arith.maximumf %62, %63 : vector<128x64xf32>
    %65 = arith.truncf %64 : vector<128x64xf32> to vector<128x64xbf16>
    %c0_84 = arith.constant 0 : index
    %c0_85 = arith.constant 0 : index
    %66 = vector.load %arg8[%c0_84, %c0_85] : memref<64x256xbf16, #tpu.memory_space<vmem>>, vector<64x256xbf16>
    %cst_86 = arith.constant dense<0.000000e+00> : vector<128x256xf32>
    %67 = tpu.matmul %65, %66, %cst_86 {dimension_numbers = #tpu.dot_dimension_numbers<[1], [0], [0], [1], [0, 0, 1, 1], [], []>} : vector<128x64xbf16>, vector<64x256xbf16>, vector<128x256xf32> -> vector<128x256xf32>
    %c0_87 = arith.constant 0 : index
    %c0_88 = arith.constant 0 : index
    %68 = vector.load %arg9[%c0_87, %c0_88] : memref<1x256xf32, #tpu.memory_space<vmem>>, vector<1x256xf32>
    %69 = vector.broadcast %68 : vector<1x256xf32> to vector<128x256xf32>
    %70 = arith.mulf %67, %69 : vector<128x256xf32>
    %c0_89 = arith.constant 0 : index
    %c0_90 = arith.constant 0 : index
    %71 = vector.load %arg10[%c0_89, %c0_90] : memref<1x256xf32, #tpu.memory_space<vmem>>, vector<1x256xf32>
    %72 = vector.broadcast %71 : vector<1x256xf32> to vector<128x256xf32>
    %73 = arith.addf %70, %72 : vector<128x256xf32>
    %c0_91 = arith.constant 0 : index
    %c0_92 = arith.constant 0 : index
    %c0_93 = arith.constant 0 : index
    %74 = vector.load %arg1[%c0_91, %c0_92, %c0_93] : memref<2x64x256xbf16, #tpu.memory_space<vmem>>, vector<2x64x256xbf16>
    %75 = vector.shape_cast %74 : vector<2x64x256xbf16> to vector<128x256xbf16>
    %76 = arith.extf %75 : vector<128x256xbf16> to vector<128x256xf32>
    %77 = arith.addf %73, %76 : vector<128x256xf32>
    %cst_94 = arith.constant 0.000000e+00 : f32
    %78 = vector.broadcast %cst_94 : f32 to vector<128x256xf32>
    %79 = arith.maximumf %77, %78 : vector<128x256xf32>
    %80 = vector.shape_cast %79 : vector<128x256xf32> to vector<2x64x256xf32>
    %81 = arith.truncf %80 : vector<2x64x256xf32> to vector<2x64x256xbf16>
    %c0_95 = arith.constant 0 : index
    %c0_96 = arith.constant 0 : index
    %c0_97 = arith.constant 0 : index
    %82 = vector.load %arg11[%c0_95, %c0_96, %c0_97] : memref<2x64x256xbf16, #tpu.memory_space<vmem>>, vector<2x64x256xbf16>
    tpu.vector_store %arg11[%c0_95, %c0_96, %c0_97], %81 {strides = array<i32>} : memref<2x64x256xbf16, #tpu.memory_space<vmem>>, vector<2x64x256xbf16>,
    return
  }
  func.func @transform_0(%arg0: i32) -> (i32, i32, i32) {
    %c0_i32 = arith.constant 0 : i32
    %c0_i32_0 = arith.constant 0 : i32
    %c0_i32_1 = arith.constant 0 : i32
    return %arg0, %c0_i32, %c0_i32_0 : i32, i32, i32
  }
  func.func @transform_1(%arg0: i32) -> (i32, i32) {
    %c0_i32 = arith.constant 0 : i32
    %c0_i32_0 = arith.constant 0 : i32
    %c0_i32_1 = arith.constant 0 : i32
    return %c0_i32, %c0_i32_0 : i32, i32
  }
  func.func @transform_2(%arg0: i32) -> (i32, i32) {
    %c0_i32 = arith.constant 0 : i32
    %c0_i32_0 = arith.constant 0 : i32
    %c0_i32_1 = arith.constant 0 : i32
    return %c0_i32, %c0_i32_0 : i32, i32
  }
  func.func @transform_3(%arg0: i32) -> (i32, i32) {
    %c0_i32 = arith.constant 0 : i32
    %c0_i32_0 = arith.constant 0 : i32
    %c0_i32_1 = arith.constant 0 : i32
    return %c0_i32, %c0_i32_0 : i32, i32
  }
  func.func @transform_4(%arg0: i32) -> (i32, i32, i32) {
    %c0_i32 = arith.constant 0 : i32
    %c0_i32_0 = arith.constant 0 : i32
    %c0_i32_1 = arith.constant 0 : i32
    %c0_i32_2 = arith.constant 0 : i32
    return %c0_i32, %c0_i32_0, %c0_i32_1 : i32, i32, i32
  }
  func.func @transform_5(%arg0: i32) -> (i32, i32) {
    %c0_i32 = arith.constant 0 : i32
    %c0_i32_0 = arith.constant 0 : i32
    %c0_i32_1 = arith.constant 0 : i32
    return %c0_i32, %c0_i32_0 : i32, i32
  }
  func.func @transform_6(%arg0: i32) -> (i32, i32) {
    %c0_i32 = arith.constant 0 : i32
    %c0_i32_0 = arith.constant 0 : i32
    %c0_i32_1 = arith.constant 0 : i32
    return %c0_i32, %c0_i32_0 : i32, i32
  }
  func.func @transform_7(%arg0: i32) -> (i32, i32) {
    %c0_i32 = arith.constant 0 : i32
    %c0_i32_0 = arith.constant 0 : i32
    %c0_i32_1 = arith.constant 0 : i32
    return %c0_i32, %c0_i32_0 : i32, i32
  }
  func.func @transform_8(%arg0: i32) -> (i32, i32) {
    %c0_i32 = arith.constant 0 : i32
    %c0_i32_0 = arith.constant 0 : i32
    %c0_i32_1 = arith.constant 0 : i32
    return %c0_i32, %c0_i32_0 : i32, i32
  }
  func.func @transform_9(%arg0: i32) -> (i32, i32) {
    %c0_i32 = arith.constant 0 : i32
    %c0_i32_0 = arith.constant 0 : i32
    %c0_i32_1 = arith.constant 0 : i32
    return %c0_i32, %c0_i32_0 : i32, i32
  }
  func.func @transform_10(%arg0: i32) -> (i32, i32, i32) {
    %c0_i32 = arith.constant 0 : i32
    %c0_i32_0 = arith.constant 0 : i32
    %c0_i32_1 = arith.constant 0 : i32
    return %arg0, %c0_i32, %c0_i32_0 : i32, i32, i32
  }
}

</mosaic_0001>

<llo_original>
// kernel: tpu_custom_call.1
$region0: #{tpu_custom_call.1}
  #allocation0 [shape = 'u32[]', space=smem, size = 0x4, offset = 0x4, fixed_abs, tag = 'smem constant byte address 0x4 - core index']
  #allocation1 [shape = 'u32[72,128]{1,0:T(1,128)}', space=vmem, size = 0x9000, scoped, tag = 'internal scratch']
  #allocation2 [shape = 'bf16[2,10,10,64]{3,2,1,0:T(8,128)(2,1)}', space=vmem, size = 0x14000, scoped, tag = 'scratch operand']
  %s0 = inlined_call_operand.vmem [shape: bf16[4,64,256], index: 0, kind: input, shape index: {}]
  %s1 = inlined_call_operand.vmem [shape: bf16[256,64], index: 1, kind: input, shape index: {}]
  %s2 = inlined_call_operand.vmem [shape: f32[1,64], index: 2, kind: input, shape index: {}]
  %s3 = inlined_call_operand.vmem [shape: f32[1,64], index: 3, kind: input, shape index: {}]
  %s4 = inlined_call_operand.vmem [shape: bf16[3,192,64], index: 4, kind: input, shape index: {}]
  %s5 = inlined_call_operand.vmem [shape: f32[1,64], index: 5, kind: input, shape index: {}]
  %s6 = inlined_call_operand.vmem [shape: f32[1,64], index: 6, kind: input, shape index: {}]
  %s7 = inlined_call_operand.vmem [shape: bf16[64,256], index: 7, kind: input, shape index: {}]
  %s8 = inlined_call_operand.vmem [shape: f32[1,256], index: 8, kind: input, shape index: {}]
  %s9 = inlined_call_operand.vmem [shape: f32[1,256], index: 9, kind: input, shape index: {}]
  %s10 = inlined_call_operand.hbm [shape: bf16[4,64,256], index: 10, kind: output, shape index: {}]
  %s11 = sld [smem:[#allocation0]]
  $region73: #{tpu_custom_call.1} parent=0
    _
  %s13 = ssub.s32 1, %s11
  %s14 = scalar_select 0, %s13, %s11
  $region1: #{tpu_custom_call.1} parent=0
    #allocation3 [shape = 'u8[131072]{0}', space=vmem, size = 0x20000, scoped, tag = 'output window, operand 0']
    #allocation4 [shape = 's32[2]{0}', space=sflag, size = 0x8, scoped, tag = 'scoped memory for tpu_custom_call.1']
    %15 = vsyncpa [#allocation4], 0
    %s16 = scalar_lea.sflag [#allocation4], 1
    %17 = vsyncpa %s16, 0
    loop: start=0, step=1, limit=4
    $region2: #{tpu_custom_call.1} parent=1 // loop_pre_header
      _
    $region3: #{tpu_custom_call.1} parent=1 // loop_header
      %s19 = sphi 0, %s23
      %p20 = scmp.ge.s32.totalorder %s19, 4
      %s29 = sphi 0, %s31
      %s32 = sphi 0, %s29
      %s33 = sphi 0, %s32
      %s49 = sphi 0, %s33
      %s53 = sphi 0, %s53
      %s55 = sphi 0, %s53
      %s56 = sphi 0, %s55
      %s70 = sphi 0, %s56
      %s74 = sphi 0, %s74
      %s76 = sphi 0, %s74
      %s77 = sphi 0, %s76
      %s91 = sphi 0, %s77
      %s95 = sphi 0, %s95
      %s97 = sphi 0, %s95
      %s98 = sphi 0, %s97
      %s112 = sphi 0, %s98
      %s116 = sphi 0, %s116
      %s118 = sphi 0, %s116
      %s119 = sphi 0, %s118
      %s133 = sphi 0, %s119
      %s137 = sphi 0, %s137
      %s139 = sphi 0, %s137
      %s140 = sphi 0, %s139
      %s154 = sphi 0, %s140
      %s158 = sphi 0, %s158
      %s160 = sphi 0, %s158
      %s161 = sphi 0, %s160
      %s175 = sphi 0, %s161
      %s179 = sphi 0, %s179
      %s181 = sphi 0, %s179
      %s182 = sphi 0, %s181
      %s196 = sphi 0, %s182
      %s200 = sphi 0, %s200
      %s202 = sphi 0, %s200
      %s203 = sphi 0, %s202
      %s217 = sphi 0, %s203
      %s221 = sphi 0, %s221
      %s223 = sphi 0, %s221
      %s224 = sphi 0, %s223
      %s238 = sphi 0, %s224
      %s244 = sphi 0, %s246
      %s247 = sphi 0, %s244
      %s248 = sphi 0, %s247
      %s264 = sphi 0, %s248
    $region4: #{tpu_custom_call.1} parent=1 // loop_header_branch
      %22 = sbr.rel (%p20) target = $region8
    $region5: #{tpu_custom_call.1} parent=1 // loop_body
      %s24 = ssub.s32 %s19, 1
      %s25 = ssub.s32 %s19, 2
      %s26 = sadd.s32 %s19, 1
      %s27 = ssub.s32 %s19, %s26
      %p28 = scmp.eq.s32.totalorder %s27, 0
      %s30 = sadd.s32 %s29, 1
      %s31 = scalar_select %p28, %s29, %s30
      %p34 = pneg %p28
      %p35 = scmp.eq.s32.totalorder %s19, 1
      %p36 = por %p34, %p35
      %p37 = scmp.ne.s32.totalorder %s29, %s32
      %p38 = scmp.eq.s32.totalorder %s19, 0
      %p39 = por %p37, %p38
      %p40 = scmp.ne.s32.totalorder %s29, %s32
      %p41 = scmp.eq.s32.totalorder %s24, 1
      %p42 = por %p40, %p41
      %p43 = scmp.ne.s32.totalorder %s32, %s33
      %p44 = scmp.eq.s32.totalorder %s24, 0
      %p45 = por %p43, %p44
      %p46 = scmp.ne.s32.totalorder %s32, %s33
      %p47 = scmp.eq.s32.totalorder %s25, 1
      %p48 = por %p46, %p47
      %p50 = scmp.ne.s32.totalorder %s33, %s49
      %p51 = scmp.eq.s32.totalorder %s25, 0
      %p52 = por %p50, %p51
      %s54 = sadd.s32 %s53, 1
      %p57 = scmp.eq.s32.totalorder %s19, 1
      %p58 = scmp.ne.s32.totalorder %s53, %s55
      %p59 = scmp.eq.s32.totalorder %s19, 0
      %p60 = por %p58, %p59
      %p61 = scmp.ne.s32.totalorder %s53, %s55
      %p62 = scmp.eq.s32.totalorder %s24, 1
      %p63 = por %p61, %p62
      %p64 = scmp.ne.s32.totalorder %s55, %s56
      %p65 = scmp.eq.s32.totalorder %s24, 0
      %p66 = por %p64, %p65
      %p67 = scmp.ne.s32.totalorder %s55, %s56
      %p68 = scmp.eq.s32.totalorder %s25, 1
      %p69 = por %p67, %p68
      %p71 = scmp.ne.s32.totalorder %s56, %s70
      %p72 = scmp.eq.s32.totalorder %s25, 0
      %p73 = por %p71, %p72
      %s75 = sadd.s32 %s74, 1
      %p78 = scmp.eq.s32.totalorder %s19, 1
      %p79 = scmp.ne.s32.totalorder %s74, %s76
      %p80 = scmp.eq.s32.totalorder %s19, 0
      %p81 = por %p79, %p80
      %p82 = scmp.ne.s32.totalorder %s74, %s76
      %p83 = scmp.eq.s32.totalorder %s24, 1
      %p84 = por %p82, %p83
      %p85 = scmp.ne.s32.totalorder %s76, %s77
      %p86 = scmp.eq.s32.totalorder %s24, 0
      %p87 = por %p85, %p86
      %p88 = scmp.ne.s32.totalorder %s76, %s77
      %p89 = scmp.eq.s32.totalorder %s25, 1
      %p90 = por %p88, %p89
      %p92 = scmp.ne.s32.totalorder %s77, %s91
      %p93 = scmp.eq.s32.totalorder %s25, 0
      %p94 = por %p92, %p93
      %s96 = sadd.s32 %s95, 1
      %p99 = scmp.eq.s32.totalorder %s19, 1
      %p100 = scmp.ne.s32.totalorder %s95, %s97
      %p101 = scmp.eq.s32.totalorder %s19, 0
      %p102 = por %p100, %p101
      %p103 = scmp.ne.s32.totalorder %s95, %s97
      %p104 = scmp.eq.s32.totalorder %s24, 1
      %p105 = por %p103, %p104
      %p106 = scmp.ne.s32.totalorder %s97, %s98
      %p107 = scmp.eq.s32.totalorder %s24, 0
      %p108 = por %p106, %p107
      %p109 = scmp.ne.s32.totalorder %s97, %s98
      %p110 = scmp.eq.s32.totalorder %s25, 1
      %p111 = por %p109, %p110
      %p113 = scmp.ne.s32.totalorder %s98, %s112
      %p114 = scmp.eq.s32.totalorder %s25, 0
      %p115 = por %p113, %p114
      %s117 = sadd.s32 %s116, 1
      %p120 = scmp.eq.s32.totalorder %s19, 1
      %p121 = scmp.ne.s32.totalorder %s116, %s118
      %p122 = scmp.eq.s32.totalorder %s19, 0
      %p123 = por %p121, %p122
      %p124 = scmp.ne.s32.totalorder %s116, %s118
      %p125 = scmp.eq.s32.totalorder %s24, 1
      %p126 = por %p124, %p125
      %p127 = scmp.ne.s32.totalorder %s118, %s119
      %p128 = scmp.eq.s32.totalorder %s24, 0
      %p129 = por %p127, %p128
      %p130 = scmp.ne.s32.totalorder %s118, %s119
      %p131 = scmp.eq.s32.totalorder %s25, 1
      %p132 = por %p130, %p131
      %p134 = scmp.ne.s32.totalorder %s119, %s133
      %p135 = scmp.eq.s32.totalorder %s25, 0
      %p136 = por %p134, %p135
      %s138 = sadd.s32 %s137, 1
      %p141 = scmp.eq.s32.totalorder %s19, 1
      %p142 = scmp.ne.s32.totalorder %s137, %s139
      %p143 = scmp.eq.s32.totalorder %s19, 0
      %p144 = por %p142, %p143
      %p145 = scmp.ne.s32.totalorder %s137, %s139
      %p146 = scmp.eq.s32.totalorder %s24, 1
      %p147 = por %p145, %p146
      %p148 = scmp.ne.s32.totalorder %s139, %s140
      %p149 = scmp.eq.s32.totalorder %s24, 0
      %p150 = por %p148, %p149
      %p151 = scmp.ne.s32.totalorder %s139, %s140
      %p152 = scmp.eq.s32.totalorder %s25, 1
      %p153 = por %p151, %p152
      %p155 = scmp.ne.s32.totalorder %s140, %s154
      %p156 = scmp.eq.s32.totalorder %s25, 0
      %p157 = por %p155, %p156
      %s159 = sadd.s32 %s158, 1
      %p162 = scmp.eq.s32.totalorder %s19, 1
      %p163 = scmp.ne.s32.totalorder %s158, %s160
      %p164 = scmp.eq.s32.totalorder %s19, 0
      %p165 = por %p163, %p164
      %p166 = scmp.ne.s32.totalorder %s158, %s160
      %p167 = scmp.eq.s32.totalorder %s24, 1
      %p168 = por %p166, %p167
      %p169 = scmp.ne.s32.totalorder %s160, %s161
      %p170 = scmp.eq.s32.totalorder %s24, 0
      %p171 = por %p169, %p170
      %p172 = scmp.ne.s32.totalorder %s160, %s161
      %p173 = scmp.eq.s32.totalorder %s25, 1
      %p174 = por %p172, %p173
      %p176 = scmp.ne.s32.totalorder %s161, %s175
      %p177 = scmp.eq.s32.totalorder %s25, 0
      %p178 = por %p176, %p177
      %s180 = sadd.s32 %s179, 1
      %p183 = scmp.eq.s32.totalorder %s19, 1
      %p184 = scmp.ne.s32.totalorder %s179, %s181
      %p185 = scmp.eq.s32.totalorder %s19, 0
      %p186 = por %p184, %p185
      %p187 = scmp.ne.s32.totalorder %s179, %s181
      %p188 = scmp.eq.s32.totalorder %s24, 1
      %p189 = por %p187, %p188
      %p190 = scmp.ne.s32.totalorder %s181, %s182
      %p191 = scmp.eq.s32.totalorder %s24, 0
      %p192 = por %p190, %p191
      %p193 = scmp.ne.s32.totalorder %s181, %s182
      %p194 = scmp.eq.s32.totalorder %s25, 1
      %p195 = por %p193, %p194
      %p197 = scmp.ne.s32.totalorder %s182, %s196
      %p198 = scmp.eq.s32.totalorder %s25, 0
      %p199 = por %p197, %p198
      %s201 = sadd.s32 %s200, 1
      %p204 = scmp.eq.s32.totalorder %s19, 1
      %p205 = scmp.ne.s32.totalorder %s200, %s202
      %p206 = scmp.eq.s32.totalorder %s19, 0
      %p207 = por %p205, %p206
      %p208 = scmp.ne.s32.totalorder %s200, %s202
      %p209 = scmp.eq.s32.totalorder %s24, 1
      %p210 = por %p208, %p209
      %p211 = scmp.ne.s32.totalorder %s202, %s203
      %p212 = scmp.eq.s32.totalorder %s24, 0
      %p213 = por %p211, %p212
      %p214 = scmp.ne.s32.totalorder %s202, %s203
      %p215 = scmp.eq.s32.totalorder %s25, 1
      %p216 = por %p214, %p215
      %p218 = scmp.ne.s32.totalorder %s203, %s217
      %p219 = scmp.eq.s32.totalorder %s25, 0
      %p220 = por %p218, %p219
      %s222 = sadd.s32 %s221, 1
      %p225 = scmp.eq.s32.totalorder %s19, 1
      %p226 = scmp.ne.s32.totalorder %s221, %s223
      %p227 = scmp.eq.s32.totalorder %s19, 0
      %p228 = por %p226, %p227
      %p229 = scmp.ne.s32.totalorder %s221, %s223
      %p230 = scmp.eq.s32.totalorder %s24, 1
      %p231 = por %p229, %p230
      %p232 = scmp.ne.s32.totalorder %s223, %s224
      %p233 = scmp.eq.s32.totalorder %s24, 0
      %p234 = por %p232, %p233
      %p235 = scmp.ne.s32.totalorder %s223, %s224
      %p236 = scmp.eq.s32.totalorder %s25, 1
      %p237 = por %p235, %p236
      %p239 = scmp.ne.s32.totalorder %s224, %s238
      %p240 = scmp.eq.s32.totalorder %s25, 0
      %p241 = por %p239, %p240
      %s242 = ssub.s32 %s19, %s26
      %p243 = scmp.eq.s32.totalorder %s242, 0
      %s245 = sadd.s32 %s244, 1
      %s246 = scalar_select %p243, %s244, %s245
      %p249 = pneg %p243
      %p250 = scmp.eq.s32.totalorder %s19, 1
      %p251 = por %p249, %p250
      %p252 = scmp.ne.s32.totalorder %s244, %s247
      %p253 = scmp.eq.s32.totalorder %s19, 0
      %p254 = por %p252, %p253
      %p255 = scmp.ne.s32.totalorder %s244, %s247
      %p256 = scmp.eq.s32.totalorder %s24, 1
      %p257 = por %p255, %p256
      %p258 = scmp.ne.s32.totalorder %s247, %s248
      %p259 = scmp.eq.s32.totalorder %s24, 0
      %p260 = por %p258, %p259
      %p261 = scmp.ne.s32.totalorder %s247, %s248
      %p262 = scmp.eq.s32.totalorder %s25, 1
      %p263 = por %p261, %p262
      %p265 = scmp.ne.s32.totalorder %s248, %s264
      %p266 = scmp.eq.s32.totalorder %s25, 0
      %p267 = por %p265, %p266
      %p268 = scmp.le.s32.totalorder 1, %s19
      %p269 = scmp.lt.s32.totalorder %s19, 3
      %p270 = pnand %p268, %p269
      %p271 = pneg %p270
      // Predicated region
      $region9: #{tpu_custom_call.1} parent=5 // pred_check
        _
      $region10: #{tpu_custom_call.1} parent=5 // pred_check_branch
        %273 = sbr.rel (%p270) target = $region12
      $region11: #{tpu_custom_call.1} parent=5 // pred_region
        %s274 = ssub.s32 %s19, 1
        // Predicated region
        $region13: #{tpu_custom_call.1} parent=11 // pred_check
          %p275 = pneg %p66
        $region14: #{tpu_custom_call.1} parent=11 // pred_check_branch
          %277 = sbr.rel (%p275) target = $region16
        $region15: #{tpu_custom_call.1} parent=11 // pred_region
          _
        $region16: #{tpu_custom_call.1} parent=11 // pred_fallthru
          _
        // Predicated region
        $region17: #{tpu_custom_call.1} parent=11 // pred_check
          %p278 = pneg %p87
        $region18: #{tpu_custom_call.1} parent=11 // pred_check_branch
          %280 = sbr.rel (%p278) target = $region20
        $region19: #{tpu_custom_call.1} parent=11 // pred_region
          _
        $region20: #{tpu_custom_call.1} parent=11 // pred_fallthru
          _
        // Predicated region
        $region21: #{tpu_custom_call.1} parent=11 // pred_check
          %p281 = pneg %p108
        $region22: #{tpu_custom_call.1} parent=11 // pred_check_branch
          %283 = sbr.rel (%p281) target = $region24
        $region23: #{tpu_custom_call.1} parent=11 // pred_region
          _
        $region24: #{tpu_custom_call.1} parent=11 // pred_fallthru
          _
        // Predicated region
        $region25: #{tpu_custom_call.1} parent=11 // pred_check
          %p284 = pneg %p129
        $region26: #{tpu_custom_call.1} parent=11 // pred_check_branch
          %286 = sbr.rel (%p284) target = $region28
        $region27: #{tpu_custom_call.1} parent=11 // pred_region
          _
        $region28: #{tpu_custom_call.1} parent=11 // pred_fallthru
          _
        // Predicated region
        $region29: #{tpu_custom_call.1} parent=11 // pred_check
          %p287 = pneg %p150
        $region30: #{tpu_custom_call.1} parent=11 // pred_check_branch
          %289 = sbr.rel (%p287) target = $region32
        $region31: #{tpu_custom_call.1} parent=11 // pred_region
          _
        $region32: #{tpu_custom_call.1} parent=11 // pred_fallthru
          _
        // Predicated region
        $region33: #{tpu_custom_call.1} parent=11 // pred_check
          %p290 = pneg %p171
        $region34: #{tpu_custom_call.1} parent=11 // pred_check_branch
          %292 = sbr.rel (%p290) target = $region36
        $region35: #{tpu_custom_call.1} parent=11 // pred_region
          _
        $region36: #{tpu_custom_call.1} parent=11 // pred_fallthru
          _
        // Predicated region
        $region37: #{tpu_custom_call.1} parent=11 // pred_check
          %p293 = pneg %p192
        $region38: #{tpu_custom_call.1} parent=11 // pred_check_branch
          %295 = sbr.rel (%p293) target = $region40
        $region39: #{tpu_custom_call.1} parent=11 // pred_region
          _
        $region40: #{tpu_custom_call.1} parent=11 // pred_fallthru
          _
        // Predicated region
        $region41: #{tpu_custom_call.1} parent=11 // pred_check
          %p296 = pneg %p213
        $region42: #{tpu_custom_call.1} parent=11 // pred_check_branch
          %298 = sbr.rel (%p296) target = $region44
        $region43: #{tpu_custom_call.1} parent=11 // pred_region
          _
        $region44: #{tpu_custom_call.1} parent=11 // pred_fallthru
          _
        // Predicated region
        $region45: #{tpu_custom_call.1} parent=11 // pred_check
          %p299 = pneg %p234
        $region46: #{tpu_custom_call.1} parent=11 // pred_check_branch
          %301 = sbr.rel (%p299) target = $region48
        $region47: #{tpu_custom_call.1} parent=11 // pred_region
          _
        $region48: #{tpu_custom_call.1} parent=11 // pred_fallthru
          _
      $region12: #{tpu_custom_call.1} parent=5 // pred_fallthru
        _
      %p302 = scmp.lt.s32.totalorder %s19, 2
      // Predicated region
      $region49: #{tpu_custom_call.1} parent=5 // pred_check
        %p303 = pneg %p302
      $region50: #{tpu_custom_call.1} parent=5 // pred_check_branch
        %305 = sbr.rel (%p303) target = $region52
      $region51: #{tpu_custom_call.1} parent=5 // pred_region
        // Predicated region
        $region53: #{tpu_custom_call.1} parent=51 // pred_check
          %p306 = pneg %p39
        $region54: #{tpu_custom_call.1} parent=51 // pred_check_branch
          %308 = sbr.rel (%p306) target = $region56
        $region55: #{tpu_custom_call.1} parent=51 // pred_region
          %s309 = smul.u32 2, %s19
          %p310 = scmp.lt.s32.totalorder %s309, 3
          %s311 = scalar_select %p310, %s309, 3
          %s312 = smul.addr %s311, 16
          %s313 = smul.addr %s312, 4
          %s314 = scalar_lea.vmem %s0, %s313
          %s315 = smul.u32 2, %s19
        $region56: #{tpu_custom_call.1} parent=51 // pred_fallthru
          _
      $region52: #{tpu_custom_call.1} parent=5 // pred_fallthru
        _
      %p316 = scmp.le.s32.totalorder 1, %s19
      %p317 = scmp.lt.s32.totalorder %s19, 3
      %p318 = pnand %p316, %p317
      %p319 = pneg %p318
      // Predicated region
      $region57: #{tpu_custom_call.1} parent=5 // pred_check
        _
      $region58: #{tpu_custom_call.1} parent=5 // pred_check_branch
        %321 = sbr.rel (%p318) target = $region60
      $region59: #{tpu_custom_call.1} parent=5 // pred_region
        %s322 = ssub.s32 %s19, 1
        %s323 = smul.u32 2, %s24
        %p324 = scmp.lt.s32.totalorder %s323, 3
        %s325 = scalar_select %p324, %s323, 3
        %s326 = smul.addr %s325, 16
        %s327 = smul.addr %s326, 4
        %s328 = scalar_lea.vmem %s0, %s327
        %p329 = pneg %p45
        %p330 = pneg %p42
        %p331 = pneg %p66
        %p332 = pneg %p63
        %p333 = pneg %p87
        %p334 = pneg %p84
        %p335 = pneg %p108
        %p336 = pneg %p105
        %p337 = pneg %p129
        %p338 = pneg %p126
        %p339 = pneg %p150
        %p340 = pneg %p147
        %p341 = pneg %p171
        %p342 = pneg %p168
        %p343 = pneg %p192
        %p344 = pneg %p189
        %p345 = pneg %p213
        %p346 = pneg %p210
        %p347 = pneg %p234
        %p348 = pneg %p231
        %p349 = pneg %p260
        %p350 = pneg %p257
        %s351 = sand.u32 %s247, 1
        %s352 = scalar_lea.sflag [#allocation4], %s351
        %s353 = sand.u32 %s247, 1
        %s354 = smul.addr %s353, 128
        %s355 = scalar_lea.vmem [#allocation3], %s354
        %s356 = smul.u32 2, %s24
        %p357 = scmp.lt.s32.totalorder %s356, 3
        %s358 = scalar_select %p357, %s356, 3
        %s359 = smul.addr %s358, 16
        %s360 = smul.addr %s359, 4
        %s361 = scalar_lea.vmem %s0, %s360
        %s362 = smul.u32 2, %s24
        %s363 = smul.u32 2, %s24
        %v365 = vld [vmem:[%s361] sm:$0xff]
        %v366 = vld [vmem:[%s361 + $0x8] sm:$0xff]
        %v367 = vld [vmem:[%s361 + $0x10] sm:$0xff]
        %v368 = vld [vmem:[%s361 + $0x18] sm:$0xff]
        %v369 = vld [vmem:[%s361 + $0x20] sm:$0xff]
        %v370 = vld [vmem:[%s361 + $0x28] sm:$0xff]
        %v371 = vld [vmem:[%s361 + $0x30] sm:$0xff]
        %v372 = vld [vmem:[%s361 + $0x38] sm:$0xff]
        %v373 = vld [vmem:[%s361 + $0x40] sm:$0xff]
        %v374 = vld [vmem:[%s361 + $0x48] sm:$0xff]
        %v375 = vld [vmem:[%s361 + $0x50] sm:$0xff]
        %v376 = vld [vmem:[%s361 + $0x58] sm:$0xff]
        %v377 = vld [vmem:[%s361 + $0x60] sm:$0xff]
        %v378 = vld [vmem:[%s361 + $0x68] sm:$0xff]
        %v379 = vld [vmem:[%s361 + $0x70] sm:$0xff]
        %v380 = vld [vmem:[%s361 + $0x78] sm:$0xff]
        %v381 = vld [vmem:[%s1] sm:$0xf]
        %v382 = vld [vmem:[%s1 + $0x4] sm:$0xf]
        %v383 = vld [vmem:[%s1 + $0x8] sm:$0xf]
        %v384 = vld [vmem:[%s1 + $0xc] sm:$0xf]
        %v385 = vld [vmem:[%s1 + $0x10] sm:$0xf]
        %v386 = vld [vmem:[%s1 + $0x14] sm:$0xf]
        %v387 = vld [vmem:[%s1 + $0x18] sm:$0xf]
        %v388 = vld [vmem:[%s1 + $0x1c] sm:$0xf]
        %v389 = vld [vmem:[%s1 + $0x20] sm:$0xf]
        %v390 = vld [vmem:[%s1 + $0x24] sm:$0xf]
        %v391 = vld [vmem:[%s1 + $0x28] sm:$0xf]
        %v392 = vld [vmem:[%s1 + $0x2c] sm:$0xf]
        %v393 = vld [vmem:[%s1 + $0x30] sm:$0xf]
        %v394 = vld [vmem:[%s1 + $0x34] sm:$0xf]
        %v395 = vld [vmem:[%s1 + $0x38] sm:$0xf]
        %v396 = vld [vmem:[%s1 + $0x3c] sm:$0xf]
        %v397 = vld [vmem:[%s1 + $0x40] sm:$0xf]
        %v398 = vld [vmem:[%s1 + $0x44] sm:$0xf]
        %v399 = vld [vmem:[%s1 + $0x48] sm:$0xf]
        %v400 = vld [vmem:[%s1 + $0x4c] sm:$0xf]
        %v401 = vld [vmem:[%s1 + $0x50] sm:$0xf]
        %v402 = vld [vmem:[%s1 + $0x54] sm:$0xf]
        %v403 = vld [vmem:[%s1 + $0x58] sm:$0xf]
        %v404 = vld [vmem:[%s1 + $0x5c] sm:$0xf]
        %v405 = vld [vmem:[%s1 + $0x60] sm:$0xf]
        %v406 = vld [vmem:[%s1 + $0x64] sm:$0xf]
        %v407 = vld [vmem:[%s1 + $0x68] sm:$0xf]
        %v408 = vld [vmem:[%s1 + $0x6c] sm:$0xf]
        %v409 = vld [vmem:[%s1 + $0x70] sm:$0xf]
        %v410 = vld [vmem:[%s1 + $0x74] sm:$0xf]
        %v411 = vld [vmem:[%s1 + $0x78] sm:$0xf]
        %v412 = vld [vmem:[%s1 + $0x7c] sm:$0xf]
        %v429 = vunpack.c.l.b16 %v365
        %v430 = vunpack.c.h.b16 %v365
        %v431 = vunpack.c.l.b16 %v366
        %v432 = vunpack.c.h.b16 %v366
        %v433 = vunpack.c.l.b16 %v367
        %v434 = vunpack.c.h.b16 %v367
        %v435 = vunpack.c.l.b16 %v368
        %v436 = vunpack.c.h.b16 %v368
        %v437 = vunpack.c.l.b16 %v369
        %v438 = vunpack.c.h.b16 %v369
        %v439 = vunpack.c.l.b16 %v370
        %v440 = vunpack.c.h.b16 %v370
        %v441 = vunpack.c.l.b16 %v371
        %v442 = vunpack.c.h.b16 %v371
        %v443 = vunpack.c.l.b16 %v372
        %v444 = vunpack.c.h.b16 %v372
        %v445 = vunpack.c.l.b16 %v373
        %v446 = vunpack.c.h.b16 %v373
        %v447 = vunpack.c.l.b16 %v374
        %v448 = vunpack.c.h.b16 %v374
        %v449 = vunpack.c.l.b16 %v375
        %v450 = vunpack.c.h.b16 %v375
        %v451 = vunpack.c.l.b16 %v376
        %v452 = vunpack.c.h.b16 %v376
        %v453 = vunpack.c.l.b16 %v377
        %v454 = vunpack.c.h.b16 %v377
        %v455 = vunpack.c.l.b16 %v378
        %v456 = vunpack.c.h.b16 %v378
        %v457 = vunpack.c.l.b16 %v379
        %v458 = vunpack.c.h.b16 %v379
        %v459 = vunpack.c.l.b16 %v380
        %v460 = vunpack.c.h.b16 %v380
        %v461 = vpack.c.b16 %v431, %v429
        %v462 = vpack.c.b16 %v432, %v430
        %v463 = vpack.c.b16 %v435, %v433
        %v464 = vpack.c.b16 %v436, %v434
        %v465 = vpack.c.b16 %v439, %v437
        %v466 = vpack.c.b16 %v440, %v438
        %v467 = vpack.c.b16 %v443, %v441
        %v468 = vpack.c.b16 %v444, %v442
        %v469 = vpack.c.b16 %v447, %v445
        %v470 = vpack.c.b16 %v448, %v446
        %v471 = vpack.c.b16 %v451, %v449
        %v472 = vpack.c.b16 %v452, %v450
        %v473 = vpack.c.b16 %v455, %v453
        %v474 = vpack.c.b16 %v456, %v454
        %v475 = vpack.c.b16 %v459, %v457
        %v476 = vpack.c.b16 %v460, %v458
        %v525 = vunpack.c.l.b16 %v381
        %v526 = vunpack.c.l.b16 %v382
        %v527 = vunpack.c.l.b16 %v383
        %v528 = vunpack.c.l.b16 %v384
        %v529 = vunpack.c.l.b16 %v385
        %v530 = vunpack.c.l.b16 %v386
        %v531 = vunpack.c.l.b16 %v387
        %v532 = vunpack.c.l.b16 %v388
        %v533 = vunpack.c.l.b16 %v389
        %v534 = vunpack.c.l.b16 %v390
        %v535 = vunpack.c.l.b16 %v391
        %v536 = vunpack.c.l.b16 %v392
        %v537 = vunpack.c.l.b16 %v393
        %v538 = vunpack.c.l.b16 %v394
        %v539 = vunpack.c.l.b16 %v395
        %v540 = vunpack.c.l.b16 %v396
        %v541 = vunpack.c.l.b16 %v397
        %v542 = vunpack.c.l.b16 %v398
        %v543 = vunpack.c.l.b16 %v399
        %v544 = vunpack.c.l.b16 %v400
        %v545 = vunpack.c.l.b16 %v401
        %v546 = vunpack.c.l.b16 %v402
        %v547 = vunpack.c.l.b16 %v403
        %v548 = vunpack.c.l.b16 %v404
        %v549 = vunpack.c.l.b16 %v405
        %v550 = vunpack.c.l.b16 %v406
        %v551 = vunpack.c.l.b16 %v407
        %v552 = vunpack.c.l.b16 %v408
        %v553 = vunpack.c.l.b16 %v409
        %v554 = vunpack.c.l.b16 %v410
        %v555 = vunpack.c.l.b16 %v411
        %v556 = vunpack.c.l.b16 %v412
        %v557 = vpack.c.b16 %v526, %v525
        %v558 = vpack.c.b16 %v528, %v527
        %v559 = vpack.c.b16 %v530, %v529
        %v560 = vpack.c.b16 %v532, %v531
        %v561 = vpack.c.b16 %v534, %v533
        %v562 = vpack.c.b16 %v536, %v535
        %v563 = vpack.c.b16 %v538, %v537
        %v564 = vpack.c.b16 %v540, %v539
        %v565 = vpack.c.b16 %v542, %v541
        %v566 = vpack.c.b16 %v544, %v543
        %v567 = vpack.c.b16 %v546, %v545
        %v568 = vpack.c.b16 %v548, %v547
        %v569 = vpack.c.b16 %v550, %v549
        %v570 = vpack.c.b16 %v552, %v551
        %v571 = vpack.c.b16 %v554, %v553
        %v572 = vpack.c.b16 %v556, %v555
        %589 = vmatpush.bf16.msra.mxu0 %v564
        %590 = vmatpush.bf16.msra.mxu0 %v563
        %591 = vmatpush.bf16.msra.mxu0 %v562
        %592 = vmatpush.bf16.msra.mxu0 %v561
        %593 = vmatpush.bf16.msra.mxu0 %v560
        %594 = vmatpush.bf16.msra.mxu0 %v559
        %595 = vmatpush.bf16.msra.mxu0 %v558
        %596 = vmatpush.bf16.msra.mxu0 %v557
        %597 = vmatmul.bf16.gmra.mxu0 %v461
        %v598 = vpop.f32.mrf.mxu0
        %v599 = vadd.f32 0.0, %v598
        %v600 = vpop.f32.mrf.mxu0
        %v601 = vadd.f32 0.0, %v600
        %602 = vmatmul.bf16.gmra.mxu0 %v463
        %v603 = vpop.f32.mrf.mxu0
        %v604 = vadd.f32 0.0, %v603
        %v605 = vpop.f32.mrf.mxu0
        %v606 = vadd.f32 0.0, %v605
        %607 = vmatmul.bf16.gmra.mxu0 %v465
        %v608 = vpop.f32.mrf.mxu0
        %v609 = vadd.f32 0.0, %v608
        %v610 = vpop.f32.mrf.mxu0
        %v611 = vadd.f32 0.0, %v610
        %612 = vmatmul.bf16.gmra.mxu0 %v467
        %v613 = vpop.f32.mrf.mxu0
        %v614 = vadd.f32 0.0, %v613
        %v615 = vpop.f32.mrf.mxu0
        %v616 = vadd.f32 0.0, %v615
        %617 = vmatmul.bf16.gmra.mxu0 %v469
        %v618 = vpop.f32.mrf.mxu0
        %v619 = vadd.f32 0.0, %v618
        %v620 = vpop.f32.mrf.mxu0
        %v621 = vadd.f32 0.0, %v620
        %622 = vmatmul.bf16.gmra.mxu0 %v471
        %v623 = vpop.f32.mrf.mxu0
        %v624 = vadd.f32 0.0, %v623
        %v625 = vpop.f32.mrf.mxu0
        %v626 = vadd.f32 0.0, %v625
        %627 = vmatmul.bf16.gmra.mxu0 %v473
        %v628 = vpop.f32.mrf.mxu0
        %v629 = vadd.f32 0.0, %v628
        %v630 = vpop.f32.mrf.mxu0
        %v631 = vadd.f32 0.0, %v630
        %632 = vmatmul.bf16.gmra.mxu0 %v475
        %v633 = vpop.f32.mrf.mxu0
        %v634 = vadd.f32 0.0, %v633
        %v635 = vpop.f32.mrf.mxu0
        %v636 = vadd.f32 0.0, %v635
        %637 = vdwg.mxu0
        %638 = vmatpush.bf16.msra.mxu0 %v572
        %639 = vmatpush.bf16.msra.mxu0 %v571
        %640 = vmatpush.bf16.msra.mxu0 %v570
        %641 = vmatpush.bf16.msra.mxu0 %v569
        %642 = vmatpush.bf16.msra.mxu0 %v568
        %643 = vmatpush.bf16.msra.mxu0 %v567
        %644 = vmatpush.bf16.msra.mxu0 %v566
        %645 = vmatpush.bf16.msra.mxu0 %v565
        %646 = vmatmul.bf16.gmra.mxu0 %v462
        %v647 = vpop.f32.mrf.mxu0
        %v648 = vadd.f32 %v599, %v647
        %v649 = vpop.f32.mrf.mxu0
        %v650 = vadd.f32 %v601, %v649
        %651 = vmatmul.bf16.gmra.mxu0 %v464
        %v652 = vpop.f32.mrf.mxu0
        %v653 = vadd.f32 %v604, %v652
        %v654 = vpop.f32.mrf.mxu0
        %v655 = vadd.f32 %v606, %v654
        %656 = vmatmul.bf16.gmra.mxu0 %v466
        %v657 = vpop.f32.mrf.mxu0
        %v658 = vadd.f32 %v609, %v657
        %v659 = vpop.f32.mrf.mxu0
        %v660 = vadd.f32 %v611, %v659
        %661 = vmatmul.bf16.gmra.mxu0 %v468
        %v662 = vpop.f32.mrf.mxu0
        %v663 = vadd.f32 %v614, %v662
        %v664 = vpop.f32.mrf.mxu0
        %v665 = vadd.f32 %v616, %v664
        %666 = vmatmul.bf16.gmra.mxu0 %v470
        %v667 = vpop.f32.mrf.mxu0
        %v668 = vadd.f32 %v619, %v667
        %v669 = vpop.f32.mrf.mxu0
        %v670 = vadd.f32 %v621, %v669
        %671 = vmatmul.bf16.gmra.mxu0 %v472
        %v672 = vpop.f32.mrf.mxu0
        %v673 = vadd.f32 %v624, %v672
        %v674 = vpop.f32.mrf.mxu0
        %v675 = vadd.f32 %v626, %v674
        %676 = vmatmul.bf16.gmra.mxu0 %v474
        %v677 = vpop.f32.mrf.mxu0
        %v678 = vadd.f32 %v629, %v677
        %v679 = vpop.f32.mrf.mxu0
        %v680 = vadd.f32 %v631, %v679
        %681 = vmatmul.bf16.gmra.mxu0 %v476
        %v682 = vpop.f32.mrf.mxu0
        %v683 = vadd.f32 %v634, %v682
        %v684 = vpop.f32.mrf.mxu0
        %v685 = vadd.f32 %v636, %v684
        %686 = vdwg.mxu0
        %v687 = vld [vmem:[%s2] sm:$0x1]
        %v689 = vperm.slane %v687, 0
        %v691 = vmul.f32 %v648, %v689
        %v692 = vmul.f32 %v650, %v689
        %v693 = vmul.f32 %v653, %v689
        %v694 = vmul.f32 %v655, %v689
        %v695 = vmul.f32 %v658, %v689
        %v696 = vmul.f32 %v660, %v689
        %v697 = vmul.f32 %v663, %v689
        %v698 = vmul.f32 %v665, %v689
        %v699 = vmul.f32 %v668, %v689
        %v700 = vmul.f32 %v670, %v689
        %v701 = vmul.f32 %v673, %v689
        %v702 = vmul.f32 %v675, %v689
        %v703 = vmul.f32 %v678, %v689
        %v704 = vmul.f32 %v680, %v689
        %v705 = vmul.f32 %v683, %v689
        %v706 = vmul.f32 %v685, %v689
        %v707 = vld [vmem:[%s3] sm:$0x1]
        %v709 = vperm.slane %v707, 0
        %v711 = vadd.f32 %v691, %v709
        %v712 = vadd.f32 %v692, %v709
        %v713 = vadd.f32 %v693, %v709
        %v714 = vadd.f32 %v694, %v709
        %v715 = vadd.f32 %v695, %v709
        %v716 = vadd.f32 %v696, %v709
        %v717 = vadd.f32 %v697, %v709
        %v718 = vadd.f32 %v698, %v709
        %v719 = vadd.f32 %v699, %v709
        %v720 = vadd.f32 %v700, %v709
        %v721 = vadd.f32 %v701, %v709
        %v722 = vadd.f32 %v702, %v709
        %v723 = vadd.f32 %v703, %v709
        %v724 = vadd.f32 %v704, %v709
        %v725 = vadd.f32 %v705, %v709
        %v726 = vadd.f32 %v706, %v709
        %v727 = vmax.f32 %v711, 0.0
        %v728 = vmax.f32 %v712, 0.0
        %v729 = vmax.f32 %v713, 0.0
        %v730 = vmax.f32 %v714, 0.0
        %v731 = vmax.f32 %v715, 0.0
        %v732 = vmax.f32 %v716, 0.0
        %v733 = vmax.f32 %v717, 0.0
        %v734 = vmax.f32 %v718, 0.0
        %v735 = vmax.f32 %v719, 0.0
        %v736 = vmax.f32 %v720, 0.0
        %v737 = vmax.f32 %v721, 0.0
        %v738 = vmax.f32 %v722, 0.0
        %v739 = vmax.f32 %v723, 0.0
        %v740 = vmax.f32 %v724, 0.0
        %v741 = vmax.f32 %v725, 0.0
        %v742 = vmax.f32 %v726, 0.0
        %vm743 = vcmask 519168
        %744 = vst.msk [vmem:[#allocation2] sm:$0xf] %vm743, 0
        %vm745 = vcmask 516096
        %746 = vst.msk [vmem:[#allocation2 + $0x4] sm:$0x1] %vm745, 0
        %747 = vst.msk [vmem:[#allocation2 + $0x50] sm:$0xf] %vm743, 0
        %748 = vst.msk [vmem:[#allocation2 + $0x54] sm:$0x1] %vm745, 0
        %s749 = scalar_lea.vmem [#allocation2], 72
        %750 = vst.msk [vmem:[%s749] sm:$0xf] %vm743, 0
        %751 = vst.msk [vmem:[%s749 + $0x4] sm:$0x1] %vm745, 0
        %752 = vst.msk [vmem:[%s749 + $0x50] sm:$0xf] %vm743, 0
        %753 = vst.msk [vmem:[%s749 + $0x54] sm:$0x1] %vm745, 0
        %s754 = scalar_lea.vmem [#allocation2], 8
        %vm755 = vcmask 516096
        %vm756 = vsmask.f32 256
        %vm757 = vmand %vm755, %vm756
        %v758 = vld [vmem:[%s754] sm:$0x1]
        %v759 = vsel %vm757, 0, %v758
        %760 = vst [vmem:[%s754] sm:$0x1] %v759
        %v761 = vld [vmem:[%s754 + $0x8] sm:$0x1]
        %v762 = vsel %vm757, 0, %v761
        %763 = vst [vmem:[%s754 + $0x8] sm:$0x1] %v762
        %v764 = vld [vmem:[%s754 + $0x10] sm:$0x1]
        %v765 = vsel %vm757, 0, %v764
        %766 = vst [vmem:[%s754 + $0x10] sm:$0x1] %v765
        %v767 = vld [vmem:[%s754 + $0x18] sm:$0x1]
        %v768 = vsel %vm757, 0, %v767
        %769 = vst [vmem:[%s754 + $0x18] sm:$0x1] %v768
        %v770 = vld [vmem:[%s754 + $0x20] sm:$0x1]
        %v771 = vsel %vm757, 0, %v770
        %772 = vst [vmem:[%s754 + $0x20] sm:$0x1] %v771
        %v773 = vld [vmem:[%s754 + $0x28] sm:$0x1]
        %v774 = vsel %vm757, 0, %v773
        %775 = vst [vmem:[%s754 + $0x28] sm:$0x1] %v774
        %v776 = vld [vmem:[%s754 + $0x30] sm:$0x1]
        %v777 = vsel %vm757, 0, %v776
        %778 = vst [vmem:[%s754 + $0x30] sm:$0x1] %v777
        %v779 = vld [vmem:[%s754 + $0x38] sm:$0x1]
        %v780 = vsel %vm757, 0, %v779
        %781 = vst [vmem:[%s754 + $0x38] sm:$0x1] %v780
        %v782 = vld [vmem:[%s754 + $0x50] sm:$0x1]
        %v783 = vsel %vm757, 0, %v782
        %784 = vst [vmem:[%s754 + $0x50] sm:$0x1] %v783
        %v785 = vld [vmem:[%s754 + $0x58] sm:$0x1]
        %v786 = vsel %vm757, 0, %v785
        %787 = vst [vmem:[%s754 + $0x58] sm:$0x1] %v786
        %v788 = vld [vmem:[%s754 + $0x60] sm:$0x1]
        %v789 = vsel %vm757, 0, %v788
        %790 = vst [vmem:[%s754 + $0x60] sm:$0x1] %v789
        %v791 = vld [vmem:[%s754 + $0x68] sm:$0x1]
        %v792 = vsel %vm757, 0, %v791
        %793 = vst [vmem:[%s754 + $0x68] sm:$0x1] %v792
        %v794 = vld [vmem:[%s754 + $0x70] sm:$0x1]
        %v795 = vsel %vm757, 0, %v794
        %796 = vst [vmem:[%s754 + $0x70] sm:$0x1] %v795
        %v797 = vld [vmem:[%s754 + $0x78] sm:$0x1]
        %v798 = vsel %vm757, 0, %v797
        %799 = vst [vmem:[%s754 + $0x78] sm:$0x1] %v798
        %v800 = vld [vmem:[%s754 + $0x80] sm:$0x1]
        %v801 = vsel %vm757, 0, %v800
        %802 = vst [vmem:[%s754 + $0x80] sm:$0x1] %v801
        %v803 = vld [vmem:[%s754 + $0x88] sm:$0x1]
        %v804 = vsel %vm757, 0, %v803
        %805 = vst [vmem:[%s754 + $0x88] sm:$0x1] %v804
        %vm806 = vsmask.f32 7938
        %vm807 = vmand %vm755, %vm806
        %v808 = vld [vmem:[%s754 + $0x4] sm:$0x1]
        %v809 = vsel %vm807, 0, %v808
        %810 = vst [vmem:[%s754 + $0x4] sm:$0x1] %v809
        %v811 = vld [vmem:[%s754 + $0xc] sm:$0x1]
        %v812 = vsel %vm807, 0, %v811
        %813 = vst [vmem:[%s754 + $0xc] sm:$0x1] %v812
        %v814 = vld [vmem:[%s754 + $0x14] sm:$0x1]
        %v815 = vsel %vm807, 0, %v814
        %816 = vst [vmem:[%s754 + $0x14] sm:$0x1] %v815
        %v817 = vld [vmem:[%s754 + $0x1c] sm:$0x1]
        %v818 = vsel %vm807, 0, %v817
        %819 = vst [vmem:[%s754 + $0x1c] sm:$0x1] %v818
        %v820 = vld [vmem:[%s754 + $0x24] sm:$0x1]
        %v821 = vsel %vm807, 0, %v820
        %822 = vst [vmem:[%s754 + $0x24] sm:$0x1] %v821
        %v823 = vld [vmem:[%s754 + $0x2c] sm:$0x1]
        %v824 = vsel %vm807, 0, %v823
        %825 = vst [vmem:[%s754 + $0x2c] sm:$0x1] %v824
        %v826 = vld [vmem:[%s754 + $0x34] sm:$0x1]
        %v827 = vsel %vm807, 0, %v826
        %828 = vst [vmem:[%s754 + $0x34] sm:$0x1] %v827
        %v829 = vld [vmem:[%s754 + $0x3c] sm:$0x1]
        %v830 = vsel %vm807, 0, %v829
        %831 = vst [vmem:[%s754 + $0x3c] sm:$0x1] %v830
        %v832 = vld [vmem:[%s754 + $0x54] sm:$0x1]
        %v833 = vsel %vm807, 0, %v832
        %834 = vst [vmem:[%s754 + $0x54] sm:$0x1] %v833
        %v835 = vld [vmem:[%s754 + $0x5c] sm:$0x1]
        %v836 = vsel %vm807, 0, %v835
        %837 = vst [vmem:[%s754 + $0x5c] sm:$0x1] %v836
        %v838 = vld [vmem:[%s754 + $0x64] sm:$0x1]
        %v839 = vsel %vm807, 0, %v838
        %840 = vst [vmem:[%s754 + $0x64] sm:$0x1] %v839
        %v841 = vld [vmem:[%s754 + $0x6c] sm:$0x1]
        %v842 = vsel %vm807, 0, %v841
        %843 = vst [vmem:[%s754 + $0x6c] sm:$0x1] %v842
        %v844 = vld [vmem:[%s754 + $0x74] sm:$0x1]
        %v845 = vsel %vm807, 0, %v844
        %846 = vst [vmem:[%s754 + $0x74] sm:$0x1] %v845
        %v847 = vld [vmem:[%s754 + $0x7c] sm:$0x1]
        %v848 = vsel %vm807, 0, %v847
        %849 = vst [vmem:[%s754 + $0x7c] sm:$0x1] %v848
        %v850 = vld [vmem:[%s754 + $0x84] sm:$0x1]
        %v851 = vsel %vm807, 0, %v850
        %852 = vst [vmem:[%s754 + $0x84] sm:$0x1] %v851
        %v853 = vld [vmem:[%s754 + $0x8c] sm:$0x1]
        %v854 = vsel %vm807, 0, %v853
        %855 = vst [vmem:[%s754 + $0x8c] sm:$0x1] %v854
        %v856 = vpack.c.bf16 %v727, %v727
        %v857 = vpack.c.bf16 %v728, %v728
        %v858 = vpack.c.bf16 %v729, %v729
        %v859 = vpack.c.bf16 %v730, %v730
        %v860 = vpack.c.bf16 %v731, %v731
        %v861 = vpack.c.bf16 %v732, %v732
        %v862 = vpack.c.bf16 %v733, %v733
        %v863 = vpack.c.bf16 %v734, %v734
        %v864 = vpack.c.bf16 %v735, %v735
        %v865 = vpack.c.bf16 %v736, %v736
        %v866 = vpack.c.bf16 %v737, %v737
        %v867 = vpack.c.bf16 %v738, %v738
        %v868 = vpack.c.bf16 %v739, %v739
        %v869 = vpack.c.bf16 %v740, %v740
        %v870 = vpack.c.bf16 %v741, %v741
        %v871 = vpack.c.bf16 %v742, %v742
        %v873 = vshrl.u32 %v856, 16
        %v875 = vrot.slane %v873, 7
        %v876 = vshll.u32 %v856, 16
        %v878 = vor.u32 %v875, %v876
        %v879 = vrot.slane %v875, 4
        %v881 = vshrl.u32 %v857, 16
        %v883 = vrot.slane %v881, 7
        %v884 = vshll.u32 %v857, 16
        %v886 = vor.u32 %v883, %v884
        %v887 = vrot.slane %v883, 4
        %v889 = vshrl.u32 %v858, 16
        %v891 = vrot.slane %v889, 7
        %v892 = vshll.u32 %v858, 16
        %v894 = vor.u32 %v891, %v892
        %v895 = vrot.slane %v891, 4
        %v897 = vshrl.u32 %v859, 16
        %v899 = vrot.slane %v897, 7
        %v900 = vshll.u32 %v859, 16
        %v902 = vor.u32 %v899, %v900
        %v903 = vrot.slane %v899, 4
        %v905 = vshrl.u32 %v860, 16
        %v907 = vrot.slane %v905, 7
        %v908 = vshll.u32 %v860, 16
        %v910 = vor.u32 %v907, %v908
        %v911 = vrot.slane %v907, 4
        %v913 = vshrl.u32 %v861, 16
        %v915 = vrot.slane %v913, 7
        %v916 = vshll.u32 %v861, 16
        %v918 = vor.u32 %v915, %v916
        %v919 = vrot.slane %v915, 4
        %v921 = vshrl.u32 %v862, 16
        %v923 = vrot.slane %v921, 7
        %v924 = vshll.u32 %v862, 16
        %v926 = vor.u32 %v923, %v924
        %v927 = vrot.slane %v923, 4
        %v929 = vshrl.u32 %v863, 16
        %v931 = vrot.slane %v929, 7
        %v932 = vshll.u32 %v863, 16
        %v934 = vor.u32 %v931, %v932
        %v935 = vrot.slane %v931, 4
        %v937 = vshrl.u32 %v864, 16
        %v939 = vrot.slane %v937, 7
        %v940 = vshll.u32 %v864, 16
        %v942 = vor.u32 %v939, %v940
        %v943 = vrot.slane %v939, 4
        %v945 = vshrl.u32 %v865, 16
        %v947 = vrot.slane %v945, 7
        %v948 = vshll.u32 %v865, 16
        %v950 = vor.u32 %v947, %v948
        %v951 = vrot.slane %v947, 4
        %v953 = vshrl.u32 %v866, 16
        %v955 = vrot.slane %v953, 7
        %v956 = vshll.u32 %v866, 16
        %v958 = vor.u32 %v955, %v956
        %v959 = vrot.slane %v955, 4
        %v961 = vshrl.u32 %v867, 16
        %v963 = vrot.slane %v961, 7
        %v964 = vshll.u32 %v867, 16
        %v966 = vor.u32 %v963, %v964
        %v967 = vrot.slane %v963, 4
        %v969 = vshrl.u32 %v868, 16
        %v971 = vrot.slane %v969, 7
        %v972 = vshll.u32 %v868, 16
        %v974 = vor.u32 %v971, %v972
        %v975 = vrot.slane %v971, 4
        %v977 = vshrl.u32 %v869, 16
        %v979 = vrot.slane %v977, 7
        %v980 = vshll.u32 %v869, 16
        %v982 = vor.u32 %v979, %v980
        %v983 = vrot.slane %v979, 4
        %v985 = vshrl.u32 %v870, 16
        %v987 = vrot.slane %v985, 7
        %v988 = vshll.u32 %v870, 16
        %v990 = vor.u32 %v987, %v988
        %v991 = vrot.slane %v987, 4
        %v993 = vshrl.u32 %v871, 16
        %v995 = vrot.slane %v993, 7
        %v996 = vshll.u32 %v871, 16
        %v998 = vor.u32 %v995, %v996
        %v999 = vrot.slane %v995, 4
        %vm1032 = vcmask 519168
        %vm1033 = vmand %vm1032, %vm806
        %v1034 = vld [vmem:[%s754] sm:$0xf]
        %v1035 = vsel %vm1033, %v878, %v1034
        %1036 = vst [vmem:[%s754] sm:$0xf] %v1035
        %v1037 = vld [vmem:[%s754 + $0x4] sm:$0x1]
        %v1038 = vsel %vm757, %v879, %v1037
        %1039 = vst [vmem:[%s754 + $0x4] sm:$0x1] %v1038
        %v1040 = vld [vmem:[%s754 + $0x8] sm:$0xf]
        %v1041 = vsel %vm1033, %v886, %v1040
        %1042 = vst [vmem:[%s754 + $0x8] sm:$0xf] %v1041
        %v1043 = vld [vmem:[%s754 + $0xc] sm:$0x1]
        %v1044 = vsel %vm757, %v887, %v1043
        %1045 = vst [vmem:[%s754 + $0xc] sm:$0x1] %v1044
        %v1046 = vld [vmem:[%s754 + $0x10] sm:$0xf]
        %v1047 = vsel %vm1033, %v894, %v1046
        %1048 = vst [vmem:[%s754 + $0x10] sm:$0xf] %v1047
        %v1049 = vld [vmem:[%s754 + $0x14] sm:$0x1]
        %v1050 = vsel %vm757, %v895, %v1049
        %1051 = vst [vmem:[%s754 + $0x14] sm:$0x1] %v1050
        %v1052 = vld [vmem:[%s754 + $0x18] sm:$0xf]
        %v1053 = vsel %vm1033, %v902, %v1052
        %1054 = vst [vmem:[%s754 + $0x18] sm:$0xf] %v1053
        %v1055 = vld [vmem:[%s754 + $0x1c] sm:$0x1]
        %v1056 = vsel %vm757, %v903, %v1055
        %1057 = vst [vmem:[%s754 + $0x1c] sm:$0x1] %v1056
        %v1058 = vld [vmem:[%s754 + $0x20] sm:$0xf]
        %v1059 = vsel %vm1033, %v910, %v1058
        %1060 = vst [vmem:[%s754 + $0x20] sm:$0xf] %v1059
        %v1061 = vld [vmem:[%s754 + $0x24] sm:$0x1]
        %v1062 = vsel %vm757, %v911, %v1061
        %1063 = vst [vmem:[%s754 + $0x24] sm:$0x1] %v1062
        %v1064 = vld [vmem:[%s754 + $0x28] sm:$0xf]
        %v1065 = vsel %vm1033, %v918, %v1064
        %1066 = vst [vmem:[%s754 + $0x28] sm:$0xf] %v1065
        %v1067 = vld [vmem:[%s754 + $0x2c] sm:$0x1]
        %v1068 = vsel %vm757, %v919, %v1067
        %1069 = vst [vmem:[%s754 + $0x2c] sm:$0x1] %v1068
        %v1070 = vld [vmem:[%s754 + $0x30] sm:$0xf]
        %v1071 = vsel %vm1033, %v926, %v1070
        %1072 = vst [vmem:[%s754 + $0x30] sm:$0xf] %v1071
        %v1073 = vld [vmem:[%s754 + $0x34] sm:$0x1]
        %v1074 = vsel %vm757, %v927, %v1073
        %1075 = vst [vmem:[%s754 + $0x34] sm:$0x1] %v1074
        %v1076 = vld [vmem:[%s754 + $0x38] sm:$0xf]
        %v1077 = vsel %vm1033, %v934, %v1076
        %1078 = vst [vmem:[%s754 + $0x38] sm:$0xf] %v1077
        %v1079 = vld [vmem:[%s754 + $0x3c] sm:$0x1]
        %v1080 = vsel %vm757, %v935, %v1079
        %1081 = vst [vmem:[%s754 + $0x3c] sm:$0x1] %v1080
        %v1082 = vld [vmem:[%s754 + $0x50] sm:$0xf]
        %v1083 = vsel %vm1033, %v942, %v1082
        %1084 = vst [vmem:[%s754 + $0x50] sm:$0xf] %v1083
        %v1085 = vld [vmem:[%s754 + $0x54] sm:$0x1]
        %v1086 = vsel %vm757, %v943, %v1085
        %1087 = vst [vmem:[%s754 + $0x54] sm:$0x1] %v1086
        %v1088 = vld [vmem:[%s754 + $0x58] sm:$0xf]
        %v1089 = vsel %vm1033, %v950, %v1088
        %1090 = vst [vmem:[%s754 + $0x58] sm:$0xf] %v1089
        %v1091 = vld [vmem:[%s754 + $0x5c] sm:$0x1]
        %v1092 = vsel %vm757, %v951, %v1091
        %1093 = vst [vmem:[%s754 + $0x5c] sm:$0x1] %v1092
        %v1094 = vld [vmem:[%s754 + $0x60] sm:$0xf]
        %v1095 = vsel %vm1033, %v958, %v1094
        %1096 = vst [vmem:[%s754 + $0x60] sm:$0xf] %v1095
        %v1097 = vld [vmem:[%s754 + $0x64] sm:$0x1]
        %v1098 = vsel %vm757, %v959, %v1097
        %1099 = vst [vmem:[%s754 + $0x64] sm:$0x1] %v1098
        %v1100 = vld [vmem:[%s754 + $0x68] sm:$0xf]
        %v1101 = vsel %vm1033, %v966, %v1100
        %1102 = vst [vmem:[%s754 + $0x68] sm:$0xf] %v1101
        %v1103 = vld [vmem:[%s754 + $0x6c] sm:$0x1]
        %v1104 = vsel %vm757, %v967, %v1103
        %1105 = vst [vmem:[%s754 + $0x6c] sm:$0x1] %v1104
        %v1106 = vld [vmem:[%s754 + $0x70] sm:$0xf]
        %v1107 = vsel %vm1033, %v974, %v1106
        %1108 = vst [vmem:[%s754 + $0x70] sm:$0xf] %v1107
        %v1109 = vld [vmem:[%s754 + $0x74] sm:$0x1]
        %v1110 = vsel %vm757, %v975, %v1109
        %1111 = vst [vmem:[%s754 + $0x74] sm:$0x1] %v1110
        %v1112 = vld [vmem:[%s754 + $0x78] sm:$0xf]
        %v1113 = vsel %vm1033, %v982, %v1112
        %1114 = vst [vmem:[%s754 + $0x78] sm:$0xf] %v1113
        %v1115 = vld [vmem:[%s754 + $0x7c] sm:$0x1]
        %v1116 = vsel %vm757, %v983, %v1115
        %1117 = vst [vmem:[%s754 + $0x7c] sm:$0x1] %v1116
        %v1118 = vld [vmem:[%s754 + $0x80] sm:$0xf]
        %v1119 = vsel %vm1033, %v990, %v1118
        %1120 = vst [vmem:[%s754 + $0x80] sm:$0xf] %v1119
        %v1121 = vld [vmem:[%s754 + $0x84] sm:$0x1]
        %v1122 = vsel %vm757, %v991, %v1121
        %1123 = vst [vmem:[%s754 + $0x84] sm:$0x1] %v1122
        %v1124 = vld [vmem:[%s754 + $0x88] sm:$0xf]
        %v1125 = vsel %vm1033, %v998, %v1124
        %1126 = vst [vmem:[%s754 + $0x88] sm:$0xf] %v1125
        %v1127 = vld [vmem:[%s754 + $0x8c] sm:$0x1]
        %v1128 = vsel %vm757, %v999, %v1127
        %1129 = vst [vmem:[%s754 + $0x8c] sm:$0x1] %v1128
        %v1130 = vld [vmem:[#allocation2] sm:$0xf]
        %v1131 = vld [vmem:[#allocation2 + $0x8] sm:$0xf]
        %v1132 = vld [vmem:[#allocation2 + $0x10] sm:$0xf]
        %v1133 = vld [vmem:[#allocation2 + $0x18] sm:$0xf]
        %v1134 = vld [vmem:[#allocation2 + $0x20] sm:$0xf]
        %v1135 = vld [vmem:[#allocation2 + $0x28] sm:$0xf]
        %v1136 = vld [vmem:[#allocation2 + $0x30] sm:$0xf]
        %v1137 = vld [vmem:[#allocation2 + $0x38] sm:$0xf]
        %v1138 = vld [vmem:[#allocation2 + $0x50] sm:$0xf]
        %v1139 = vld [vmem:[#allocation2 + $0x58] sm:$0xf]
        %v1140 = vld [vmem:[#allocation2 + $0x60] sm:$0xf]
        %v1141 = vld [vmem:[#allocation2 + $0x68] sm:$0xf]
        %v1142 = vld [vmem:[#allocation2 + $0x70] sm:$0xf]
        %v1143 = vld [vmem:[#allocation2 + $0x78] sm:$0xf]
        %v1144 = vld [vmem:[#allocation2 + $0x80] sm:$0xf]
        %v1145 = vld [vmem:[#allocation2 + $0x88] sm:$0xf]
        %v1146 = vld [vmem:[#allocation2 + $0x4] sm:$0x1]
        %v1147 = vld [vmem:[#allocation2 + $0xc] sm:$0x1]
        %v1148 = vld [vmem:[#allocation2 + $0x14] sm:$0x1]
        %v1149 = vld [vmem:[#allocation2 + $0x1c] sm:$0x1]
        %v1150 = vld [vmem:[#allocation2 + $0x24] sm:$0x1]
        %v1151 = vld [vmem:[#allocation2 + $0x2c] sm:$0x1]
        %v1152 = vld [vmem:[#allocation2 + $0x34] sm:$0x1]
        %v1153 = vld [vmem:[#allocation2 + $0x3c] sm:$0x1]
        %v1154 = vld [vmem:[#allocation2 + $0x54] sm:$0x1]
        %v1155 = vld [vmem:[#allocation2 + $0x5c] sm:$0x1]
        %v1156 = vld [vmem:[#allocation2 + $0x64] sm:$0x1]
        %v1157 = vld [vmem:[#allocation2 + $0x6c] sm:$0x1]
        %v1158 = vld [vmem:[#allocation2 + $0x74] sm:$0x1]
        %v1159 = vld [vmem:[#allocation2 + $0x7c] sm:$0x1]
        %v1160 = vld [vmem:[#allocation2 + $0x84] sm:$0x1]
        %v1161 = vld [vmem:[#allocation2 + $0x8c] sm:$0x1]
        %vm1162 = vsmask.f32 3328
        %vm1163 = vsmask.f32 7440
        %vm1164 = vmor %vm1162, %vm1163
        %v1166 = vshrl.u32 %v1130, 16
        %v1168 = vrot.slane %v1166, 4
        %v1169 = vshll.u32 %v1130, 16
        %v1171 = vrot.slane %v1169, 5
        %v1172 = vor.u32 %v1168, %v1171
        %v1173 = vrot.slane %v1172, 4
        %v1175 = vshll.u32 %v1146, 16
        %v1177 = vrot.slane %v1175, 5
        %v1178 = vsel %vm1164, %v1173, %v1177
        %v1180 = vshrl.u32 %v1131, 16
        %v1182 = vrot.slane %v1180, 4
        %v1183 = vshll.u32 %v1131, 16
        %v1185 = vrot.slane %v1183, 5
        %v1186 = vor.u32 %v1182, %v1185
        %v1187 = vrot.slane %v1186, 4
        %v1189 = vshll.u32 %v1147, 16
        %v1191 = vrot.slane %v1189, 5
        %v1192 = vsel %vm1164, %v1187, %v1191
        %v1194 = vshrl.u32 %v1132, 16
        %v1196 = vrot.slane %v1194, 4
        %v1197 = vshll.u32 %v1132, 16
        %v1199 = vrot.slane %v1197, 5
        %v1200 = vor.u32 %v1196, %v1199
        %v1201 = vrot.slane %v1200, 4
        %v1203 = vshll.u32 %v1148, 16
        %v1205 = vrot.slane %v1203, 5
        %v1206 = vsel %vm1164, %v1201, %v1205
        %v1208 = vshrl.u32 %v1133, 16
        %v1210 = vrot.slane %v1208, 4
        %v1211 = vshll.u32 %v1133, 16
        %v1213 = vrot.slane %v1211, 5
        %v1214 = vor.u32 %v1210, %v1213
        %v1215 = vrot.slane %v1214, 4
        %v1217 = vshll.u32 %v1149, 16
        %v1219 = vrot.slane %v1217, 5
        %v1220 = vsel %vm1164, %v1215, %v1219
        %v1222 = vshrl.u32 %v1134, 16
        %v1224 = vrot.slane %v1222, 4
        %v1225 = vshll.u32 %v1134, 16
        %v1227 = vrot.slane %v1225, 5
        %v1228 = vor.u32 %v1224, %v1227
        %v1229 = vrot.slane %v1228, 4
        %v1231 = vshll.u32 %v1150, 16
        %v1233 = vrot.slane %v1231, 5
        %v1234 = vsel %vm1164, %v1229, %v1233
        %v1236 = vshrl.u32 %v1135, 16
        %v1238 = vrot.slane %v1236, 4
        %v1239 = vshll.u32 %v1135, 16
        %v1241 = vrot.slane %v1239, 5
        %v1242 = vor.u32 %v1238, %v1241
        %v1243 = vrot.slane %v1242, 4
        %v1245 = vshll.u32 %v1151, 16
        %v1247 = vrot.slane %v1245, 5
        %v1248 = vsel %vm1164, %v1243, %v1247
        %v1250 = vshrl.u32 %v1136, 16
        %v1252 = vrot.slane %v1250, 4
        %v1253 = vshll.u32 %v1136, 16
        %v1255 = vrot.slane %v1253, 5
        %v1256 = vor.u32 %v1252, %v1255
        %v1257 = vrot.slane %v1256, 4
        %v1259 = vshll.u32 %v1152, 16
        %v1261 = vrot.slane %v1259, 5
        %v1262 = vsel %vm1164, %v1257, %v1261
        %v1264 = vshrl.u32 %v1137, 16
        %v1266 = vrot.slane %v1264, 4
        %v1267 = vshll.u32 %v1137, 16
        %v1269 = vrot.slane %v1267, 5
        %v1270 = vor.u32 %v1266, %v1269
        %v1271 = vrot.slane %v1270, 4
        %v1273 = vshll.u32 %v1153, 16
        %v1275 = vrot.slane %v1273, 5
        %v1276 = vsel %vm1164, %v1271, %v1275
        %v1278 = vshrl.u32 %v1138, 16
        %v1280 = vrot.slane %v1278, 4
        %v1281 = vshll.u32 %v1138, 16
        %v1283 = vrot.slane %v1281, 5
        %v1284 = vor.u32 %v1280, %v1283
        %v1285 = vrot.slane %v1284, 4
        %v1287 = vshll.u32 %v1154, 16
        %v1289 = vrot.slane %v1287, 5
        %v1290 = vsel %vm1164, %v1285, %v1289
        %v1292 = vshrl.u32 %v1139, 16
        %v1294 = vrot.slane %v1292, 4
        %v1295 = vshll.u32 %v1139, 16
        %v1297 = vrot.slane %v1295, 5
        %v1298 = vor.u32 %v1294, %v1297
        %v1299 = vrot.slane %v1298, 4
        %v1301 = vshll.u32 %v1155, 16
        %v1303 = vrot.slane %v1301, 5
        %v1304 = vsel %vm1164, %v1299, %v1303
        %v1306 = vshrl.u32 %v1140, 16
        %v1308 = vrot.slane %v1306, 4
        %v1309 = vshll.u32 %v1140, 16
        %v1311 = vrot.slane %v1309, 5
        %v1312 = vor.u32 %v1308, %v1311
        %v1313 = vrot.slane %v1312, 4
        %v1315 = vshll.u32 %v1156, 16
        %v1317 = vrot.slane %v1315, 5
        %v1318 = vsel %vm1164, %v1313, %v1317
        %v1320 = vshrl.u32 %v1141, 16
        %v1322 = vrot.slane %v1320, 4
        %v1323 = vshll.u32 %v1141, 16
        %v1325 = vrot.slane %v1323, 5
        %v1326 = vor.u32 %v1322, %v1325
        %v1327 = vrot.slane %v1326, 4
        %v1329 = vshll.u32 %v1157, 16
        %v1331 = vrot.slane %v1329, 5
        %v1332 = vsel %vm1164, %v1327, %v1331
        %v1334 = vshrl.u32 %v1142, 16
        %v1336 = vrot.slane %v1334, 4
        %v1337 = vshll.u32 %v1142, 16
        %v1339 = vrot.slane %v1337, 5
        %v1340 = vor.u32 %v1336, %v1339
        %v1341 = vrot.slane %v1340, 4
        %v1343 = vshll.u32 %v1158, 16
        %v1345 = vrot.slane %v1343, 5
        %v1346 = vsel %vm1164, %v1341, %v1345
        %v1348 = vshrl.u32 %v1143, 16
        %v1350 = vrot.slane %v1348, 4
        %v1351 = vshll.u32 %v1143, 16
        %v1353 = vrot.slane %v1351, 5
        %v1354 = vor.u32 %v1350, %v1353
        %v1355 = vrot.slane %v1354, 4
        %v1357 = vshll.u32 %v1159, 16
        %v1359 = vrot.slane %v1357, 5
        %v1360 = vsel %vm1164, %v1355, %v1359
        %v1362 = vshrl.u32 %v1144, 16
        %v1364 = vrot.slane %v1362, 4
        %v1365 = vshll.u32 %v1144, 16
        %v1367 = vrot.slane %v1365, 5
        %v1368 = vor.u32 %v1364, %v1367
        %v1369 = vrot.slane %v1368, 4
        %v1371 = vshll.u32 %v1160, 16
        %v1373 = vrot.slane %v1371, 5
        %v1374 = vsel %vm1164, %v1369, %v1373
        %v1376 = vshrl.u32 %v1145, 16
        %v1378 = vrot.slane %v1376, 4
        %v1379 = vshll.u32 %v1145, 16
        %v1381 = vrot.slane %v1379, 5
        %v1382 = vor.u32 %v1378, %v1381
        %v1383 = vrot.slane %v1382, 4
        %v1385 = vshll.u32 %v1161, 16
        %v1387 = vrot.slane %v1385, 5
        %v1388 = vsel %vm1164, %v1383, %v1387
        %v1389 = vld [vmem:[#allocation2] sm:$0xe]
        %v1390 = vld [vmem:[#allocation2 + $0x8] sm:$0xe]
        %v1391 = vld [vmem:[#allocation2 + $0x10] sm:$0xe]
        %v1392 = vld [vmem:[#allocation2 + $0x18] sm:$0xe]
        %v1393 = vld [vmem:[#allocation2 + $0x20] sm:$0xe]
        %v1394 = vld [vmem:[#allocation2 + $0x28] sm:$0xe]
        %v1395 = vld [vmem:[#allocation2 + $0x30] sm:$0xe]
        %v1396 = vld [vmem:[#allocation2 + $0x38] sm:$0xe]
        %v1397 = vld [vmem:[#allocation2 + $0x50] sm:$0xe]
        %v1398 = vld [vmem:[#allocation2 + $0x58] sm:$0xe]
        %v1399 = vld [vmem:[#allocation2 + $0x60] sm:$0xe]
        %v1400 = vld [vmem:[#allocation2 + $0x68] sm:$0xe]
        %v1401 = vld [vmem:[#allocation2 + $0x70] sm:$0xe]
        %v1402 = vld [vmem:[#allocation2 + $0x78] sm:$0xe]
        %v1403 = vld [vmem:[#allocation2 + $0x80] sm:$0xe]
        %v1404 = vld [vmem:[#allocation2 + $0x88] sm:$0xe]
        %vm1437 = vcmask 1042432
        %vm1438 = vcmask 1046532
        %vm1439 = vmor %vm1437, %vm1438
        %v1440 = vrot.slane %v1389, 5
        %v1441 = vrot.slane %v1440, 4
        %v1442 = vrot.slane %v1146, 5
        %v1443 = vsel %vm1439, %v1441, %v1442
        %v1444 = vrot.slane %v1390, 5
        %v1445 = vrot.slane %v1444, 4
        %v1446 = vrot.slane %v1147, 5
        %v1447 = vsel %vm1439, %v1445, %v1446
        %v1448 = vrot.slane %v1391, 5
        %v1449 = vrot.slane %v1448, 4
        %v1450 = vrot.slane %v1148, 5
        %v1451 = vsel %vm1439, %v1449, %v1450
        %v1452 = vrot.slane %v1392, 5
        %v1453 = vrot.slane %v1452, 4
        %v1454 = vrot.slane %v1149, 5
        %v1455 = vsel %vm1439, %v1453, %v1454
        %v1456 = vrot.slane %v1393, 5
        %v1457 = vrot.slane %v1456, 4
        %v1458 = vrot.slane %v1150, 5
        %v1459 = vsel %vm1439, %v1457, %v1458
        %v1460 = vrot.slane %v1394, 5
        %v1461 = vrot.slane %v1460, 4
        %v1462 = vrot.slane %v1151, 5
        %v1463 = vsel %vm1439, %v1461, %v1462
        %v1464 = vrot.slane %v1395, 5
        %v1465 = vrot.slane %v1464, 4
        %v1466 = vrot.slane %v1152, 5
        %v1467 = vsel %vm1439, %v1465, %v1466
        %v1468 = vrot.slane %v1396, 5
        %v1469 = vrot.slane %v1468, 4
        %v1470 = vrot.slane %v1153, 5
        %v1471 = vsel %vm1439, %v1469, %v1470
        %v1472 = vrot.slane %v1397, 5
        %v1473 = vrot.slane %v1472, 4
        %v1474 = vrot.slane %v1154, 5
        %v1475 = vsel %vm1439, %v1473, %v1474
        %v1476 = vrot.slane %v1398, 5
        %v1477 = vrot.slane %v1476, 4
        %v1478 = vrot.slane %v1155, 5
        %v1479 = vsel %vm1439, %v1477, %v1478
        %v1480 = vrot.slane %v1399, 5
        %v1481 = vrot.slane %v1480, 4
        %v1482 = vrot.slane %v1156, 5
        %v1483 = vsel %vm1439, %v1481, %v1482
        %v1484 = vrot.slane %v1400, 5
        %v1485 = vrot.slane %v1484, 4
        %v1486 = vrot.slane %v1157, 5
        %v1487 = vsel %vm1439, %v1485, %v1486
        %v1488 = vrot.slane %v1401, 5
        %v1489 = vrot.slane %v1488, 4
        %v1490 = vrot.slane %v1158, 5
        %v1491 = vsel %vm1439, %v1489, %v1490
        %v1492 = vrot.slane %v1402, 5
        %v1493 = vrot.slane %v1492, 4
        %v1494 = vrot.slane %v1159, 5
        %v1495 = vsel %vm1439, %v1493, %v1494
        %v1496 = vrot.slane %v1403, 5
        %v1497 = vrot.slane %v1496, 4
        %v1498 = vrot.slane %v1160, 5
        %v1499 = vsel %vm1439, %v1497, %v1498
        %v1500 = vrot.slane %v1404, 5
        %v1501 = vrot.slane %v1500, 4
        %v1502 = vrot.slane %v1161, 5
        %v1503 = vsel %vm1439, %v1501, %v1502
        %v1520 = vunpack.c.l.b16 %v1130
        %v1521 = vunpack.c.l.b16 %v1131
        %v1522 = vunpack.c.l.b16 %v1132
        %v1523 = vunpack.c.l.b16 %v1133
        %v1524 = vunpack.c.l.b16 %v1134
        %v1525 = vunpack.c.l.b16 %v1135
        %v1526 = vunpack.c.l.b16 %v1136
        %v1527 = vunpack.c.l.b16 %v1137
        %v1528 = vunpack.c.l.b16 %v1138
        %v1529 = vunpack.c.l.b16 %v1139
        %v1530 = vunpack.c.l.b16 %v1140
        %v1531 = vunpack.c.l.b16 %v1141
        %v1532 = vunpack.c.l.b16 %v1142
        %v1533 = vunpack.c.l.b16 %v1143
        %v1534 = vunpack.c.l.b16 %v1144
        %v1535 = vunpack.c.l.b16 %v1145
        %v1536 = vpack.c.b16 %v1521, %v1520
        %v1537 = vpack.c.b16 %v1523, %v1522
        %v1538 = vpack.c.b16 %v1525, %v1524
        %v1539 = vpack.c.b16 %v1527, %v1526
        %v1540 = vpack.c.b16 %v1529, %v1528
        %v1541 = vpack.c.b16 %v1531, %v1530
        %v1542 = vpack.c.b16 %v1533, %v1532
        %v1543 = vpack.c.b16 %v1535, %v1534
        %v1544 = vunpack.c.l.b16 %v1178
        %v1545 = vunpack.c.l.b16 %v1192
        %v1546 = vunpack.c.l.b16 %v1206
        %v1547 = vunpack.c.l.b16 %v1220
        %v1548 = vunpack.c.l.b16 %v1234
        %v1549 = vunpack.c.l.b16 %v1248
        %v1550 = vunpack.c.l.b16 %v1262
        %v1551 = vunpack.c.l.b16 %v1276
        %v1552 = vunpack.c.l.b16 %v1290
        %v1553 = vunpack.c.l.b16 %v1304
        %v1554 = vunpack.c.l.b16 %v1318
        %v1555 = vunpack.c.l.b16 %v1332
        %v1556 = vunpack.c.l.b16 %v1346
        %v1557 = vunpack.c.l.b16 %v1360
        %v1558 = vunpack.c.l.b16 %v1374
        %v1559 = vunpack.c.l.b16 %v1388
        %v1560 = vpack.c.b16 %v1545, %v1544
        %v1561 = vpack.c.b16 %v1547, %v1546
        %v1562 = vpack.c.b16 %v1549, %v1548
        %v1563 = vpack.c.b16 %v1551, %v1550
        %v1564 = vpack.c.b16 %v1553, %v1552
        %v1565 = vpack.c.b16 %v1555, %v1554
        %v1566 = vpack.c.b16 %v1557, %v1556
        %v1567 = vpack.c.b16 %v1559, %v1558
        %1568 = vrot.lane.b32.xlu0 %v1560, 64
        %v1569 = vpop.permute.xlu0 %1568
        %1570 = vrot.lane.b32.xlu0 %v1561, 64
        %v1571 = vpop.permute.xlu0 %1570
        %1572 = vrot.lane.b32.xlu0 %v1562, 64
        %v1573 = vpop.permute.xlu0 %1572
        %1574 = vrot.lane.b32.xlu0 %v1563, 64
        %v1575 = vpop.permute.xlu0 %1574
        %1576 = vrot.lane.b32.xlu0 %v1564, 64
        %v1577 = vpop.permute.xlu0 %1576
        %1578 = vrot.lane.b32.xlu0 %v1565, 64
        %v1579 = vpop.permute.xlu0 %1578
        %1580 = vrot.lane.b32.xlu0 %v1566, 64
        %v1581 = vpop.permute.xlu0 %1580
        %1582 = vrot.lane.b32.xlu0 %v1567, 64
        %v1583 = vpop.permute.xlu0 %1582
        %v1584 = vunpack.c.l.b16 %v1443
        %v1585 = vunpack.c.l.b16 %v1447
        %v1586 = vunpack.c.l.b16 %v1451
        %v1587 = vunpack.c.l.b16 %v1455
        %v1588 = vunpack.c.l.b16 %v1459
        %v1589 = vunpack.c.l.b16 %v1463
        %v1590 = vunpack.c.l.b16 %v1467
        %v1591 = vunpack.c.l.b16 %v1471
        %v1592 = vunpack.c.l.b16 %v1475
        %v1593 = vunpack.c.l.b16 %v1479
        %v1594 = vunpack.c.l.b16 %v1483
        %v1595 = vunpack.c.l.b16 %v1487
        %v1596 = vunpack.c.l.b16 %v1491
        %v1597 = vunpack.c.l.b16 %v1495
        %v1598 = vunpack.c.l.b16 %v1499
        %v1599 = vunpack.c.l.b16 %v1503
        %v1600 = vpack.c.b16 %v1585, %v1584
        %v1601 = vpack.c.b16 %v1587, %v1586
        %v1602 = vpack.c.b16 %v1589, %v1588
        %v1603 = vpack.c.b16 %v1591, %v1590
        %v1604 = vpack.c.b16 %v1593, %v1592
        %v1605 = vpack.c.b16 %v1595, %v1594
        %v1606 = vpack.c.b16 %v1597, %v1596
        %v1607 = vpack.c.b16 %v1599, %v1598
        %vm1608 = vcmask 523264
        %v1611 = vsel %vm1608, %v1536, %v1569
        %v1615 = vsel %vm1608, %v1537, %v1571
        %v1619 = vsel %vm1608, %v1538, %v1573
        %v1623 = vsel %vm1608, %v1539, %v1575
        %v1627 = vsel %vm1608, %v1540, %v1577
        %v1631 = vsel %vm1608, %v1541, %v1579
        %v1635 = vsel %vm1608, %v1542, %v1581
        %v1639 = vsel %vm1608, %v1543, %v1583
        %v1641 = vld [vmem:[%s4] sm:$0xf]
        %v1642 = vld [vmem:[%s4 + $0x4] sm:$0xf]
        %v1643 = vld [vmem:[%s4 + $0x8] sm:$0xf]
        %v1644 = vld [vmem:[%s4 + $0xc] sm:$0xf]
        %v1645 = vld [vmem:[%s4 + $0x10] sm:$0xf]
        %v1646 = vld [vmem:[%s4 + $0x14] sm:$0xf]
        %v1647 = vld [vmem:[%s4 + $0x18] sm:$0xf]
        %v1648 = vld [vmem:[%s4 + $0x1c] sm:$0xf]
        %v1649 = vld [vmem:[%s4 + $0x20] sm:$0xf]
        %v1650 = vld [vmem:[%s4 + $0x24] sm:$0xf]
        %v1651 = vld [vmem:[%s4 + $0x28] sm:$0xf]
        %v1652 = vld [vmem:[%s4 + $0x2c] sm:$0xf]
        %v1653 = vld [vmem:[%s4 + $0x30] sm:$0xf]
        %v1654 = vld [vmem:[%s4 + $0x34] sm:$0xf]
        %v1655 = vld [vmem:[%s4 + $0x38] sm:$0xf]
        %v1656 = vld [vmem:[%s4 + $0x3c] sm:$0xf]
        %v1657 = vld [vmem:[%s4 + $0x40] sm:$0xf]
        %v1658 = vld [vmem:[%s4 + $0x44] sm:$0xf]
        %v1659 = vld [vmem:[%s4 + $0x48] sm:$0xf]
        %v1660 = vld [vmem:[%s4 + $0x4c] sm:$0xf]
        %v1661 = vld [vmem:[%s4 + $0x50] sm:$0xf]
        %v1662 = vld [vmem:[%s4 + $0x54] sm:$0xf]
        %v1663 = vld [vmem:[%s4 + $0x58] sm:$0xf]
        %v1664 = vld [vmem:[%s4 + $0x5c] sm:$0xf]
        %v1665 = vld [vmem:[%s754] sm:$0xf]
        %v1666 = vld [vmem:[%s754 + $0x8] sm:$0xf]
        %v1667 = vld [vmem:[%s754 + $0x10] sm:$0xf]
        %v1668 = vld [vmem:[%s754 + $0x18] sm:$0xf]
        %v1669 = vld [vmem:[%s754 + $0x20] sm:$0xf]
        %v1670 = vld [vmem:[%s754 + $0x28] sm:$0xf]
        %v1671 = vld [vmem:[%s754 + $0x30] sm:$0xf]
        %v1672 = vld [vmem:[%s754 + $0x38] sm:$0xf]
        %v1673 = vld [vmem:[%s754 + $0x50] sm:$0xf]
        %v1674 = vld [vmem:[%s754 + $0x58] sm:$0xf]
        %v1675 = vld [vmem:[%s754 + $0x60] sm:$0xf]
        %v1676 = vld [vmem:[%s754 + $0x68] sm:$0xf]
        %v1677 = vld [vmem:[%s754 + $0x70] sm:$0xf]
        %v1678 = vld [vmem:[%s754 + $0x78] sm:$0xf]
        %v1679 = vld [vmem:[%s754 + $0x80] sm:$0xf]
        %v1680 = vld [vmem:[%s754 + $0x88] sm:$0xf]
        %v1681 = vld [vmem:[%s754 + $0x4] sm:$0x1]
        %v1682 = vld [vmem:[%s754 + $0xc] sm:$0x1]
        %v1683 = vld [vmem:[%s754 + $0x14] sm:$0x1]
        %v1684 = vld [vmem:[%s754 + $0x1c] sm:$0x1]
        %v1685 = vld [vmem:[%s754 + $0x24] sm:$0x1]
        %v1686 = vld [vmem:[%s754 + $0x2c] sm:$0x1]
        %v1687 = vld [vmem:[%s754 + $0x34] sm:$0x1]
        %v1688 = vld [vmem:[%s754 + $0x3c] sm:$0x1]
        %v1689 = vld [vmem:[%s754 + $0x54] sm:$0x1]
        %v1690 = vld [vmem:[%s754 + $0x5c] sm:$0x1]
        %v1691 = vld [vmem:[%s754 + $0x64] sm:$0x1]
        %v1692 = vld [vmem:[%s754 + $0x6c] sm:$0x1]
        %v1693 = vld [vmem:[%s754 + $0x74] sm:$0x1]
        %v1694 = vld [vmem:[%s754 + $0x7c] sm:$0x1]
        %v1695 = vld [vmem:[%s754 + $0x84] sm:$0x1]
        %v1696 = vld [vmem:[%s754 + $0x8c] sm:$0x1]
        %v1698 = vshrl.u32 %v1665, 16
        %v1700 = vrot.slane %v1698, 4
        %v1701 = vshll.u32 %v1665, 16
        %v1703 = vrot.slane %v1701, 5
        %v1704 = vor.u32 %v1700, %v1703
        %v1705 = vrot.slane %v1704, 4
        %v1707 = vshll.u32 %v1681, 16
        %v1709 = vrot.slane %v1707, 5
        %v1710 = vsel %vm1164, %v1705, %v1709
        %v1712 = vshrl.u32 %v1666, 16
        %v1714 = vrot.slane %v1712, 4
        %v1715 = vshll.u32 %v1666, 16
        %v1717 = vrot.slane %v1715, 5
        %v1718 = vor.u32 %v1714, %v1717
        %v1719 = vrot.slane %v1718, 4
        %v1721 = vshll.u32 %v1682, 16
        %v1723 = vrot.slane %v1721, 5
        %v1724 = vsel %vm1164, %v1719, %v1723
        %v1726 = vshrl.u32 %v1667, 16
        %v1728 = vrot.slane %v1726, 4
        %v1729 = vshll.u32 %v1667, 16
        %v1731 = vrot.slane %v1729, 5
        %v1732 = vor.u32 %v1728, %v1731
        %v1733 = vrot.slane %v1732, 4
        %v1735 = vshll.u32 %v1683, 16
        %v1737 = vrot.slane %v1735, 5
        %v1738 = vsel %vm1164, %v1733, %v1737
        %v1740 = vshrl.u32 %v1668, 16
        %v1742 = vrot.slane %v1740, 4
        %v1743 = vshll.u32 %v1668, 16
        %v1745 = vrot.slane %v1743, 5
        %v1746 = vor.u32 %v1742, %v1745
        %v1747 = vrot.slane %v1746, 4
        %v1749 = vshll.u32 %v1684, 16
        %v1751 = vrot.slane %v1749, 5
        %v1752 = vsel %vm1164, %v1747, %v1751
        %v1754 = vshrl.u32 %v1669, 16
        %v1756 = vrot.slane %v1754, 4
        %v1757 = vshll.u32 %v1669, 16
        %v1759 = vrot.slane %v1757, 5
        %v1760 = vor.u32 %v1756, %v1759
        %v1761 = vrot.slane %v1760, 4
        %v1763 = vshll.u32 %v1685, 16
        %v1765 = vrot.slane %v1763, 5
        %v1766 = vsel %vm1164, %v1761, %v1765
        %v1768 = vshrl.u32 %v1670, 16
        %v1770 = vrot.slane %v1768, 4
        %v1771 = vshll.u32 %v1670, 16
        %v1773 = vrot.slane %v1771, 5
        %v1774 = vor.u32 %v1770, %v1773
        %v1775 = vrot.slane %v1774, 4
        %v1777 = vshll.u32 %v1686, 16
        %v1779 = vrot.slane %v1777, 5
        %v1780 = vsel %vm1164, %v1775, %v1779
        %v1782 = vshrl.u32 %v1671, 16
        %v1784 = vrot.slane %v1782, 4
        %v1785 = vshll.u32 %v1671, 16
        %v1787 = vrot.slane %v1785, 5
        %v1788 = vor.u32 %v1784, %v1787
        %v1789 = vrot.slane %v1788, 4
        %v1791 = vshll.u32 %v1687, 16
        %v1793 = vrot.slane %v1791, 5
        %v1794 = vsel %vm1164, %v1789, %v1793
        %v1796 = vshrl.u32 %v1672, 16
        %v1798 = vrot.slane %v1796, 4
        %v1799 = vshll.u32 %v1672, 16
        %v1801 = vrot.slane %v1799, 5
        %v1802 = vor.u32 %v1798, %v1801
        %v1803 = vrot.slane %v1802, 4
        %v1805 = vshll.u32 %v1688, 16
        %v1807 = vrot.slane %v1805, 5
        %v1808 = vsel %vm1164, %v1803, %v1807
        %v1810 = vshrl.u32 %v1673, 16
        %v1812 = vrot.slane %v1810, 4
        %v1813 = vshll.u32 %v1673, 16
        %v1815 = vrot.slane %v1813, 5
        %v1816 = vor.u32 %v1812, %v1815
        %v1817 = vrot.slane %v1816, 4
        %v1819 = vshll.u32 %v1689, 16
        %v1821 = vrot.slane %v1819, 5
        %v1822 = vsel %vm1164, %v1817, %v1821
        %v1824 = vshrl.u32 %v1674, 16
        %v1826 = vrot.slane %v1824, 4
        %v1827 = vshll.u32 %v1674, 16
        %v1829 = vrot.slane %v1827, 5
        %v1830 = vor.u32 %v1826, %v1829
        %v1831 = vrot.slane %v1830, 4
        %v1833 = vshll.u32 %v1690, 16
        %v1835 = vrot.slane %v1833, 5
        %v1836 = vsel %vm1164, %v1831, %v1835
        %v1838 = vshrl.u32 %v1675, 16
        %v1840 = vrot.slane %v1838, 4
        %v1841 = vshll.u32 %v1675, 16
        %v1843 = vrot.slane %v1841, 5
        %v1844 = vor.u32 %v1840, %v1843
        %v1845 = vrot.slane %v1844, 4
        %v1847 = vshll.u32 %v1691, 16
        %v1849 = vrot.slane %v1847, 5
        %v1850 = vsel %vm1164, %v1845, %v1849
        %v1852 = vshrl.u32 %v1676, 16
        %v1854 = vrot.slane %v1852, 4
        %v1855 = vshll.u32 %v1676, 16
        %v1857 = vrot.slane %v1855, 5
        %v1858 = vor.u32 %v1854, %v1857
        %v1859 = vrot.slane %v1858, 4
        %v1861 = vshll.u32 %v1692, 16
        %v1863 = vrot.slane %v1861, 5
        %v1864 = vsel %vm1164, %v1859, %v1863
        %v1866 = vshrl.u32 %v1677, 16
        %v1868 = vrot.slane %v1866, 4
        %v1869 = vshll.u32 %v1677, 16
        %v1871 = vrot.slane %v1869, 5
        %v1872 = vor.u32 %v1868, %v1871
        %v1873 = vrot.slane %v1872, 4
        %v1875 = vshll.u32 %v1693, 16
        %v1877 = vrot.slane %v1875, 5
        %v1878 = vsel %vm1164, %v1873, %v1877
        %v1880 = vshrl.u32 %v1678, 16
        %v1882 = vrot.slane %v1880, 4
        %v1883 = vshll.u32 %v1678, 16
        %v1885 = vrot.slane %v1883, 5
        %v1886 = vor.u32 %v1882, %v1885
        %v1887 = vrot.slane %v1886, 4
        %v1889 = vshll.u32 %v1694, 16
        %v1891 = vrot.slane %v1889, 5
        %v1892 = vsel %vm1164, %v1887, %v1891
        %v1894 = vshrl.u32 %v1679, 16
        %v1896 = vrot.slane %v1894, 4
        %v1897 = vshll.u32 %v1679, 16
        %v1899 = vrot.slane %v1897, 5
        %v1900 = vor.u32 %v1896, %v1899
        %v1901 = vrot.slane %v1900, 4
        %v1903 = vshll.u32 %v1695, 16
        %v1905 = vrot.slane %v1903, 5
        %v1906 = vsel %vm1164, %v1901, %v1905
        %v1908 = vshrl.u32 %v1680, 16
        %v1910 = vrot.slane %v1908, 4
        %v1911 = vshll.u32 %v1680, 16
        %v1913 = vrot.slane %v1911, 5
        %v1914 = vor.u32 %v1910, %v1913
        %v1915 = vrot.slane %v1914, 4
        %v1917 = vshll.u32 %v1696, 16
        %v1919 = vrot.slane %v1917, 5
        %v1920 = vsel %vm1164, %v1915, %v1919
        %v1921 = vld [vmem:[%s754] sm:$0xe]
        %v1922 = vld [vmem:[%s754 + $0x8] sm:$0xe]
        %v1923 = vld [vmem:[%s754 + $0x10] sm:$0xe]
        %v1924 = vld [vmem:[%s754 + $0x18] sm:$0xe]
        %v1925 = vld [vmem:[%s754 + $0x20] sm:$0xe]
        %v1926 = vld [vmem:[%s754 + $0x28] sm:$0xe]
        %v1927 = vld [vmem:[%s754 + $0x30] sm:$0xe]
        %v1928 = vld [vmem:[%s754 + $0x38] sm:$0xe]
        %v1929 = vld [vmem:[%s754 + $0x50] sm:$0xe]
        %v1930 = vld [vmem:[%s754 + $0x58] sm:$0xe]
        %v1931 = vld [vmem:[%s754 + $0x60] sm:$0xe]
        %v1932 = vld [vmem:[%s754 + $0x68] sm:$0xe]
        %v1933 = vld [vmem:[%s754 + $0x70] sm:$0xe]
        %v1934 = vld [vmem:[%s754 + $0x78] sm:$0xe]
        %v1935 = vld [vmem:[%s754 + $0x80] sm:$0xe]
        %v1936 = vld [vmem:[%s754 + $0x88] sm:$0xe]
        %v1969 = vrot.slane %v1921, 5
        %v1970 = vrot.slane %v1969, 4
        %v1971 = vrot.slane %v1681, 5
        %v1972 = vsel %vm1439, %v1970, %v1971
        %v1973 = vrot.slane %v1922, 5
        %v1974 = vrot.slane %v1973, 4
        %v1975 = vrot.slane %v1682, 5
        %v1976 = vsel %vm1439, %v1974, %v1975
        %v1977 = vrot.slane %v1923, 5
        %v1978 = vrot.slane %v1977, 4
        %v1979 = vrot.slane %v1683, 5
        %v1980 = vsel %vm1439, %v1978, %v1979
        %v1981 = vrot.slane %v1924, 5
        %v1982 = vrot.slane %v1981, 4
        %v1983 = vrot.slane %v1684, 5
        %v1984 = vsel %vm1439, %v1982, %v1983
        %v1985 = vrot.slane %v1925, 5
        %v1986 = vrot.slane %v1985, 4
        %v1987 = vrot.slane %v1685, 5
        %v1988 = vsel %vm1439, %v1986, %v1987
        %v1989 = vrot.slane %v1926, 5
        %v1990 = vrot.slane %v1989, 4
        %v1991 = vrot.slane %v1686, 5
        %v1992 = vsel %vm1439, %v1990, %v1991
        %v1993 = vrot.slane %v1927, 5
        %v1994 = vrot.slane %v1993, 4
        %v1995 = vrot.slane %v1687, 5
        %v1996 = vsel %vm1439, %v1994, %v1995
        %v1997 = vrot.slane %v1928, 5
        %v1998 = vrot.slane %v1997, 4
        %v1999 = vrot.slane %v1688, 5
        %v2000 = vsel %vm1439, %v1998, %v1999
        %v2001 = vrot.slane %v1929, 5
        %v2002 = vrot.slane %v2001, 4
        %v2003 = vrot.slane %v1689, 5
        %v2004 = vsel %vm1439, %v2002, %v2003
        %v2005 = vrot.slane %v1930, 5
        %v2006 = vrot.slane %v2005, 4
        %v2007 = vrot.slane %v1690, 5
        %v2008 = vsel %vm1439, %v2006, %v2007
        %v2009 = vrot.slane %v1931, 5
        %v2010 = vrot.slane %v2009, 4
        %v2011 = vrot.slane %v1691, 5
        %v2012 = vsel %vm1439, %v2010, %v2011
        %v2013 = vrot.slane %v1932, 5
        %v2014 = vrot.slane %v2013, 4
        %v2015 = vrot.slane %v1692, 5
        %v2016 = vsel %vm1439, %v2014, %v2015
        %v2017 = vrot.slane %v1933, 5
        %v2018 = vrot.slane %v2017, 4
        %v2019 = vrot.slane %v1693, 5
        %v2020 = vsel %vm1439, %v2018, %v2019
        %v2021 = vrot.slane %v1934, 5
        %v2022 = vrot.slane %v2021, 4
        %v2023 = vrot.slane %v1694, 5
        %v2024 = vsel %vm1439, %v2022, %v2023
        %v2025 = vrot.slane %v1935, 5
        %v2026 = vrot.slane %v2025, 4
        %v2027 = vrot.slane %v1695, 5
        %v2028 = vsel %vm1439, %v2026, %v2027
        %v2029 = vrot.slane %v1936, 5
        %v2030 = vrot.slane %v2029, 4
        %v2031 = vrot.slane %v1696, 5
        %v2032 = vsel %vm1439, %v2030, %v2031
        %v2049 = vunpack.c.l.b16 %v1665
        %v2050 = vunpack.c.l.b16 %v1666
        %v2051 = vunpack.c.l.b16 %v1667
        %v2052 = vunpack.c.l.b16 %v1668
        %v2053 = vunpack.c.l.b16 %v1669
        %v2054 = vunpack.c.l.b16 %v1670
        %v2055 = vunpack.c.l.b16 %v1671
        %v2056 = vunpack.c.l.b16 %v1672
        %v2057 = vunpack.c.l.b16 %v1673
        %v2058 = vunpack.c.l.b16 %v1674
        %v2059 = vunpack.c.l.b16 %v1675
        %v2060 = vunpack.c.l.b16 %v1676
        %v2061 = vunpack.c.l.b16 %v1677
        %v2062 = vunpack.c.l.b16 %v1678
        %v2063 = vunpack.c.l.b16 %v1679
        %v2064 = vunpack.c.l.b16 %v1680
        %v2065 = vpack.c.b16 %v2050, %v2049
        %v2066 = vpack.c.b16 %v2052, %v2051
        %v2067 = vpack.c.b16 %v2054, %v2053
        %v2068 = vpack.c.b16 %v2056, %v2055
        %v2069 = vpack.c.b16 %v2058, %v2057
        %v2070 = vpack.c.b16 %v2060, %v2059
        %v2071 = vpack.c.b16 %v2062, %v2061
        %v2072 = vpack.c.b16 %v2064, %v2063
        %v2073 = vunpack.c.l.b16 %v1710
        %v2074 = vunpack.c.l.b16 %v1724
        %v2075 = vunpack.c.l.b16 %v1738
        %v2076 = vunpack.c.l.b16 %v1752
        %v2077 = vunpack.c.l.b16 %v1766
        %v2078 = vunpack.c.l.b16 %v1780
        %v2079 = vunpack.c.l.b16 %v1794
        %v2080 = vunpack.c.l.b16 %v1808
        %v2081 = vunpack.c.l.b16 %v1822
        %v2082 = vunpack.c.l.b16 %v1836
        %v2083 = vunpack.c.l.b16 %v1850
        %v2084 = vunpack.c.l.b16 %v1864
        %v2085 = vunpack.c.l.b16 %v1878
        %v2086 = vunpack.c.l.b16 %v1892
        %v2087 = vunpack.c.l.b16 %v1906
        %v2088 = vunpack.c.l.b16 %v1920
        %v2089 = vpack.c.b16 %v2074, %v2073
        %v2090 = vpack.c.b16 %v2076, %v2075
        %v2091 = vpack.c.b16 %v2078, %v2077
        %v2092 = vpack.c.b16 %v2080, %v2079
        %v2093 = vpack.c.b16 %v2082, %v2081
        %v2094 = vpack.c.b16 %v2084, %v2083
        %v2095 = vpack.c.b16 %v2086, %v2085
        %v2096 = vpack.c.b16 %v2088, %v2087
        %2097 = vrot.lane.b32.xlu0 %v2089, 64
        %v2098 = vpop.permute.xlu0 %2097
        %2099 = vrot.lane.b32.xlu0 %v2090, 64
        %v2100 = vpop.permute.xlu0 %2099
        %2101 = vrot.lane.b32.xlu0 %v2091, 64
        %v2102 = vpop.permute.xlu0 %2101
        %2103 = vrot.lane.b32.xlu0 %v2092, 64
        %v2104 = vpop.permute.xlu0 %2103
        %2105 = vrot.lane.b32.xlu0 %v2093, 64
        %v2106 = vpop.permute.xlu0 %2105
        %2107 = vrot.lane.b32.xlu0 %v2094, 64
        %v2108 = vpop.permute.xlu0 %2107
        %2109 = vrot.lane.b32.xlu0 %v2095, 64
        %v2110 = vpop.permute.xlu0 %2109
        %2111 = vrot.lane.b32.xlu0 %v2096, 64
        %v2112 = vpop.permute.xlu0 %2111
        %v2113 = vunpack.c.l.b16 %v1972
        %v2114 = vunpack.c.l.b16 %v1976
        %v2115 = vunpack.c.l.b16 %v1980
        %v2116 = vunpack.c.l.b16 %v1984
        %v2117 = vunpack.c.l.b16 %v1988
        %v2118 = vunpack.c.l.b16 %v1992
        %v2119 = vunpack.c.l.b16 %v1996
        %v2120 = vunpack.c.l.b16 %v2000
        %v2121 = vunpack.c.l.b16 %v2004
        %v2122 = vunpack.c.l.b16 %v2008
        %v2123 = vunpack.c.l.b16 %v2012
        %v2124 = vunpack.c.l.b16 %v2016
        %v2125 = vunpack.c.l.b16 %v2020
        %v2126 = vunpack.c.l.b16 %v2024
        %v2127 = vunpack.c.l.b16 %v2028
        %v2128 = vunpack.c.l.b16 %v2032
        %v2129 = vpack.c.b16 %v2114, %v2113
        %v2130 = vpack.c.b16 %v2116, %v2115
        %v2131 = vpack.c.b16 %v2118, %v2117
        %v2132 = vpack.c.b16 %v2120, %v2119
        %v2133 = vpack.c.b16 %v2122, %v2121
        %v2134 = vpack.c.b16 %v2124, %v2123
        %v2135 = vpack.c.b16 %v2126, %v2125
        %v2136 = vpack.c.b16 %v2128, %v2127
        %v2139 = vsel %vm1608, %v2065, %v2098
        %v2143 = vsel %vm1608, %v2066, %v2100
        %v2147 = vsel %vm1608, %v2067, %v2102
        %v2151 = vsel %vm1608, %v2068, %v2104
        %v2155 = vsel %vm1608, %v2069, %v2106
        %v2159 = vsel %vm1608, %v2070, %v2108
        %v2163 = vsel %vm1608, %v2071, %v2110
        %v2167 = vsel %vm1608, %v2072, %v2112
        %s2169 = scalar_lea.vmem %s4, 96
        %v2170 = vld [vmem:[%s2169] sm:$0xf]
        %v2171 = vld [vmem:[%s2169 + $0x4] sm:$0xf]
        %v2172 = vld [vmem:[%s2169 + $0x8] sm:$0xf]
        %v2173 = vld [vmem:[%s2169 + $0xc] sm:$0xf]
        %v2174 = vld [vmem:[%s2169 + $0x10] sm:$0xf]
        %v2175 = vld [vmem:[%s2169 + $0x14] sm:$0xf]
        %v2176 = vld [vmem:[%s2169 + $0x18] sm:$0xf]
        %v2177 = vld [vmem:[%s2169 + $0x1c] sm:$0xf]
        %v2178 = vld [vmem:[%s2169 + $0x20] sm:$0xf]
        %v2179 = vld [vmem:[%s2169 + $0x24] sm:$0xf]
        %v2180 = vld [vmem:[%s2169 + $0x28] sm:$0xf]
        %v2181 = vld [vmem:[%s2169 + $0x2c] sm:$0xf]
        %v2182 = vld [vmem:[%s2169 + $0x30] sm:$0xf]
        %v2183 = vld [vmem:[%s2169 + $0x34] sm:$0xf]
        %v2184 = vld [vmem:[%s2169 + $0x38] sm:$0xf]
        %v2185 = vld [vmem:[%s2169 + $0x3c] sm:$0xf]
        %v2186 = vld [vmem:[%s2169 + $0x40] sm:$0xf]
        %v2187 = vld [vmem:[%s2169 + $0x44] sm:$0xf]
        %v2188 = vld [vmem:[%s2169 + $0x48] sm:$0xf]
        %v2189 = vld [vmem:[%s2169 + $0x4c] sm:$0xf]
        %v2190 = vld [vmem:[%s2169 + $0x50] sm:$0xf]
        %v2191 = vld [vmem:[%s2169 + $0x54] sm:$0xf]
        %v2192 = vld [vmem:[%s2169 + $0x58] sm:$0xf]
        %v2193 = vld [vmem:[%s2169 + $0x5c] sm:$0xf]
        %v2218 = vunpack.c.l.b16 %v2170
        %v2219 = vunpack.c.l.b16 %v2171
        %v2220 = vunpack.c.l.b16 %v2172
        %v2221 = vunpack.c.l.b16 %v2173
        %v2222 = vunpack.c.l.b16 %v2174
        %v2223 = vunpack.c.l.b16 %v2175
        %v2224 = vunpack.c.l.b16 %v2176
        %v2225 = vunpack.c.l.b16 %v2177
        %v2226 = vunpack.c.l.b16 %v2178
        %v2227 = vunpack.c.l.b16 %v2179
        %v2228 = vunpack.c.l.b16 %v2180
        %v2229 = vunpack.c.l.b16 %v2181
        %v2230 = vunpack.c.l.b16 %v2182
        %v2231 = vunpack.c.l.b16 %v2183
        %v2232 = vunpack.c.l.b16 %v2184
        %v2233 = vunpack.c.l.b16 %v2185
        %v2234 = vunpack.c.l.b16 %v2186
        %v2235 = vunpack.c.l.b16 %v2187
        %v2236 = vunpack.c.l.b16 %v2188
        %v2237 = vunpack.c.l.b16 %v2189
        %v2238 = vunpack.c.l.b16 %v2190
        %v2239 = vunpack.c.l.b16 %v2191
        %v2240 = vunpack.c.l.b16 %v2192
        %v2241 = vunpack.c.l.b16 %v2193
        %v2242 = vpack.c.b16 %v2219, %v2218
        %v2243 = vpack.c.b16 %v2221, %v2220
        %v2244 = vpack.c.b16 %v2223, %v2222
        %v2245 = vpack.c.b16 %v2225, %v2224
        %v2246 = vpack.c.b16 %v2227, %v2226
        %v2247 = vpack.c.b16 %v2229, %v2228
        %v2248 = vpack.c.b16 %v2231, %v2230
        %v2249 = vpack.c.b16 %v2233, %v2232
        %v2250 = vpack.c.b16 %v2235, %v2234
        %v2251 = vpack.c.b16 %v2237, %v2236
        %v2252 = vpack.c.b16 %v2239, %v2238
        %v2253 = vpack.c.b16 %v2241, %v2240
        %v2267 = vsel %vm1608, %v2129, 0
        %v2270 = vsel %vm1608, %v2130, 0
        %v2273 = vsel %vm1608, %v2131, 0
        %v2276 = vsel %vm1608, %v2132, 0
        %v2279 = vsel %vm1608, %v2133, 0
        %v2282 = vsel %vm1608, %v2134, 0
        %v2285 = vsel %vm1608, %v2135, 0
        %v2288 = vsel %vm1608, %v2136, 0
        %2290 = vmatpush.bf16.msra.mxu0 %v2249
        %2291 = vmatpush.bf16.msra.mxu0 %v2248
        %2292 = vmatpush.bf16.msra.mxu0 %v2247
        %2293 = vmatpush.bf16.msra.mxu0 %v2246
        %2294 = vmatpush.bf16.msra.mxu0 %v2245
        %2295 = vmatpush.bf16.msra.mxu0 %v2244
        %2296 = vmatpush.bf16.msra.mxu0 %v2243
        %2297 = vmatpush.bf16.msra.mxu0 %v2242
        %2298 = vmatmul.bf16.gmra.mxu0 %v2139
        %v2299 = vpop.f32.mrf.mxu0
        %v2300 = vadd.f32 0.0, %v2299
        %v2301 = vpop.f32.mrf.mxu0
        %v2302 = vadd.f32 0.0, %v2301
        %2303 = vmatmul.bf16.gmra.mxu0 %v2143
        %v2304 = vpop.f32.mrf.mxu0
        %v2305 = vadd.f32 0.0, %v2304
        %v2306 = vpop.f32.mrf.mxu0
        %v2307 = vadd.f32 0.0, %v2306
        %2308 = vmatmul.bf16.gmra.mxu0 %v2147
        %v2309 = vpop.f32.mrf.mxu0
        %v2310 = vadd.f32 0.0, %v2309
        %v2311 = vpop.f32.mrf.mxu0
        %v2312 = vadd.f32 0.0, %v2311
        %2313 = vmatmul.bf16.gmra.mxu0 %v2151
        %v2314 = vpop.f32.mrf.mxu0
        %v2315 = vadd.f32 0.0, %v2314
        %v2316 = vpop.f32.mrf.mxu0
        %v2317 = vadd.f32 0.0, %v2316
        %2318 = vmatmul.bf16.gmra.mxu0 %v2155
        %v2319 = vpop.f32.mrf.mxu0
        %v2320 = vadd.f32 0.0, %v2319
        %v2321 = vpop.f32.mrf.mxu0
        %v2322 = vadd.f32 0.0, %v2321
        %2323 = vmatmul.bf16.gmra.mxu0 %v2159
        %v2324 = vpop.f32.mrf.mxu0
        %v2325 = vadd.f32 0.0, %v2324
        %v2326 = vpop.f32.mrf.mxu0
        %v2327 = vadd.f32 0.0, %v2326
        %2328 = vmatmul.bf16.gmra.mxu0 %v2163
        %v2329 = vpop.f32.mrf.mxu0
        %v2330 = vadd.f32 0.0, %v2329
        %v2331 = vpop.f32.mrf.mxu0
        %v2332 = vadd.f32 0.0, %v2331
        %2333 = vmatmul.bf16.gmra.mxu0 %v2167
        %v2334 = vpop.f32.mrf.mxu0
        %v2335 = vadd.f32 0.0, %v2334
        %v2336 = vpop.f32.mrf.mxu0
        %v2337 = vadd.f32 0.0, %v2336
        %2338 = vdwg.mxu0
        %2339 = vmatpush.bf16.msra.mxu0 0
        %2340 = vmatpush.bf16.msra.mxu0 0
        %2341 = vmatpush.bf16.msra.mxu0 0
        %2342 = vmatpush.bf16.msra.mxu0 0
        %2343 = vmatpush.bf16.msra.mxu0 %v2253
        %2344 = vmatpush.bf16.msra.mxu0 %v2252
        %2345 = vmatpush.bf16.msra.mxu0 %v2251
        %2346 = vmatpush.bf16.msra.mxu0 %v2250
        %2347 = vmatmul.bf16.gmra.mxu0 %v2267
        %v2348 = vpop.f32.mrf.mxu0
        %v2349 = vadd.f32 %v2300, %v2348
        %v2350 = vpop.f32.mrf.mxu0
        %v2351 = vadd.f32 %v2302, %v2350
        %2352 = vmatmul.bf16.gmra.mxu0 %v2270
        %v2353 = vpop.f32.mrf.mxu0
        %v2354 = vadd.f32 %v2305, %v2353
        %v2355 = vpop.f32.mrf.mxu0
        %v2356 = vadd.f32 %v2307, %v2355
        %2357 = vmatmul.bf16.gmra.mxu0 %v2273
        %v2358 = vpop.f32.mrf.mxu0
        %v2359 = vadd.f32 %v2310, %v2358
        %v2360 = vpop.f32.mrf.mxu0
        %v2361 = vadd.f32 %v2312, %v2360
        %2362 = vmatmul.bf16.gmra.mxu0 %v2276
        %v2363 = vpop.f32.mrf.mxu0
        %v2364 = vadd.f32 %v2315, %v2363
        %v2365 = vpop.f32.mrf.mxu0
        %v2366 = vadd.f32 %v2317, %v2365
        %2367 = vmatmul.bf16.gmra.mxu0 %v2279
        %v2368 = vpop.f32.mrf.mxu0
        %v2369 = vadd.f32 %v2320, %v2368
        %v2370 = vpop.f32.mrf.mxu0
        %v2371 = vadd.f32 %v2322, %v2370
        %2372 = vmatmul.bf16.gmra.mxu0 %v2282
        %v2373 = vpop.f32.mrf.mxu0
        %v2374 = vadd.f32 %v2325, %v2373
        %v2375 = vpop.f32.mrf.mxu0
        %v2376 = vadd.f32 %v2327, %v2375
        %2377 = vmatmul.bf16.gmra.mxu0 %v2285
        %v2378 = vpop.f32.mrf.mxu0
        %v2379 = vadd.f32 %v2330, %v2378
        %v2380 = vpop.f32.mrf.mxu0
        %v2381 = vadd.f32 %v2332, %v2380
        %2382 = vmatmul.bf16.gmra.mxu0 %v2288
        %v2383 = vpop.f32.mrf.mxu0
        %v2384 = vadd.f32 %v2335, %v2383
        %v2385 = vpop.f32.mrf.mxu0
        %v2386 = vadd.f32 %v2337, %v2385
        %2387 = vdwg.mxu0
        %v2412 = vunpack.c.l.b16 %v1641
        %v2413 = vunpack.c.l.b16 %v1642
        %v2414 = vunpack.c.l.b16 %v1643
        %v2415 = vunpack.c.l.b16 %v1644
        %v2416 = vunpack.c.l.b16 %v1645
        %v2417 = vunpack.c.l.b16 %v1646
        %v2418 = vunpack.c.l.b16 %v1647
        %v2419 = vunpack.c.l.b16 %v1648
        %v2420 = vunpack.c.l.b16 %v1649
        %v2421 = vunpack.c.l.b16 %v1650
        %v2422 = vunpack.c.l.b16 %v1651
        %v2423 = vunpack.c.l.b16 %v1652
        %v2424 = vunpack.c.l.b16 %v1653
        %v2425 = vunpack.c.l.b16 %v1654
        %v2426 = vunpack.c.l.b16 %v1655
        %v2427 = vunpack.c.l.b16 %v1656
        %v2428 = vunpack.c.l.b16 %v1657
        %v2429 = vunpack.c.l.b16 %v1658
        %v2430 = vunpack.c.l.b16 %v1659
        %v2431 = vunpack.c.l.b16 %v1660
        %v2432 = vunpack.c.l.b16 %v1661
        %v2433 = vunpack.c.l.b16 %v1662
        %v2434 = vunpack.c.l.b16 %v1663
        %v2435 = vunpack.c.l.b16 %v1664
        %v2436 = vpack.c.b16 %v2413, %v2412
        %v2437 = vpack.c.b16 %v2415, %v2414
        %v2438 = vpack.c.b16 %v2417, %v2416
        %v2439 = vpack.c.b16 %v2419, %v2418
        %v2440 = vpack.c.b16 %v2421, %v2420
        %v2441 = vpack.c.b16 %v2423, %v2422
        %v2442 = vpack.c.b16 %v2425, %v2424
        %v2443 = vpack.c.b16 %v2427, %v2426
        %v2444 = vpack.c.b16 %v2429, %v2428
        %v2445 = vpack.c.b16 %v2431, %v2430
        %v2446 = vpack.c.b16 %v2433, %v2432
        %v2447 = vpack.c.b16 %v2435, %v2434
        %v2461 = vsel %vm1608, %v1600, 0
        %v2464 = vsel %vm1608, %v1601, 0
        %v2467 = vsel %vm1608, %v1602, 0
        %v2470 = vsel %vm1608, %v1603, 0
        %v2473 = vsel %vm1608, %v1604, 0
        %v2476 = vsel %vm1608, %v1605, 0
        %v2479 = vsel %vm1608, %v1606, 0
        %v2482 = vsel %vm1608, %v1607, 0
        %2484 = vmatpush.bf16.msra.mxu0 %v2443
        %2485 = vmatpush.bf16.msra.mxu0 %v2442
        %2486 = vmatpush.bf16.msra.mxu0 %v2441
        %2487 = vmatpush.bf16.msra.mxu0 %v2440
        %2488 = vmatpush.bf16.msra.mxu0 %v2439
        %2489 = vmatpush.bf16.msra.mxu0 %v2438
        %2490 = vmatpush.bf16.msra.mxu0 %v2437
        %2491 = vmatpush.bf16.msra.mxu0 %v2436
        %2492 = vmatmul.bf16.gmra.mxu0 %v1611
        %v2493 = vpop.f32.mrf.mxu0
        %v2494 = vadd.f32 %v2349, %v2493
        %v2495 = vpop.f32.mrf.mxu0
        %v2496 = vadd.f32 %v2351, %v2495
        %2497 = vmatmul.bf16.gmra.mxu0 %v1615
        %v2498 = vpop.f32.mrf.mxu0
        %v2499 = vadd.f32 %v2354, %v2498
        %v2500 = vpop.f32.mrf.mxu0
        %v2501 = vadd.f32 %v2356, %v2500
        %2502 = vmatmul.bf16.gmra.mxu0 %v1619
        %v2503 = vpop.f32.mrf.mxu0
        %v2504 = vadd.f32 %v2359, %v2503
        %v2505 = vpop.f32.mrf.mxu0
        %v2506 = vadd.f32 %v2361, %v2505
        %2507 = vmatmul.bf16.gmra.mxu0 %v1623
        %v2508 = vpop.f32.mrf.mxu0
        %v2509 = vadd.f32 %v2364, %v2508
        %v2510 = vpop.f32.mrf.mxu0
        %v2511 = vadd.f32 %v2366, %v2510
        %2512 = vmatmul.bf16.gmra.mxu0 %v1627
        %v2513 = vpop.f32.mrf.mxu0
        %v2514 = vadd.f32 %v2369, %v2513
        %v2515 = vpop.f32.mrf.mxu0
        %v2516 = vadd.f32 %v2371, %v2515
        %2517 = vmatmul.bf16.gmra.mxu0 %v1631
        %v2518 = vpop.f32.mrf.mxu0
        %v2519 = vadd.f32 %v2374, %v2518
        %v2520 = vpop.f32.mrf.mxu0
        %v2521 = vadd.f32 %v2376, %v2520
        %2522 = vmatmul.bf16.gmra.mxu0 %v1635
        %v2523 = vpop.f32.mrf.mxu0
        %v2524 = vadd.f32 %v2379, %v2523
        %v2525 = vpop.f32.mrf.mxu0
        %v2526 = vadd.f32 %v2381, %v2525
        %2527 = vmatmul.bf16.gmra.mxu0 %v1639
        %v2528 = vpop.f32.mrf.mxu0
        %v2529 = vadd.f32 %v2384, %v2528
        %v2530 = vpop.f32.mrf.mxu0
        %v2531 = vadd.f32 %v2386, %v2530
        %2532 = vdwg.mxu0
        %2533 = vmatpush.bf16.msra.mxu0 0
        %2534 = vmatpush.bf16.msra.mxu0 0
        %2535 = vmatpush.bf16.msra.mxu0 0
        %2536 = vmatpush.bf16.msra.mxu0 0
        %2537 = vmatpush.bf16.msra.mxu0 %v2447
        %2538 = vmatpush.bf16.msra.mxu0 %v2446
        %2539 = vmatpush.bf16.msra.mxu0 %v2445
        %2540 = vmatpush.bf16.msra.mxu0 %v2444
        %2541 = vmatmul.bf16.gmra.mxu0 %v2461
        %v2542 = vpop.f32.mrf.mxu0
        %v2543 = vadd.f32 %v2494, %v2542
        %v2544 = vpop.f32.mrf.mxu0
        %v2545 = vadd.f32 %v2496, %v2544
        %2546 = vmatmul.bf16.gmra.mxu0 %v2464
        %v2547 = vpop.f32.mrf.mxu0
        %v2548 = vadd.f32 %v2499, %v2547
        %v2549 = vpop.f32.mrf.mxu0
        %v2550 = vadd.f32 %v2501, %v2549
        %2551 = vmatmul.bf16.gmra.mxu0 %v2467
        %v2552 = vpop.f32.mrf.mxu0
        %v2553 = vadd.f32 %v2504, %v2552
        %v2554 = vpop.f32.mrf.mxu0
        %v2555 = vadd.f32 %v2506, %v2554
        %2556 = vmatmul.bf16.gmra.mxu0 %v2470
        %v2557 = vpop.f32.mrf.mxu0
        %v2558 = vadd.f32 %v2509, %v2557
        %v2559 = vpop.f32.mrf.mxu0
        %v2560 = vadd.f32 %v2511, %v2559
        %2561 = vmatmul.bf16.gmra.mxu0 %v2473
        %v2562 = vpop.f32.mrf.mxu0
        %v2563 = vadd.f32 %v2514, %v2562
        %v2564 = vpop.f32.mrf.mxu0
        %v2565 = vadd.f32 %v2516, %v2564
        %2566 = vmatmul.bf16.gmra.mxu0 %v2476
        %v2567 = vpop.f32.mrf.mxu0
        %v2568 = vadd.f32 %v2519, %v2567
        %v2569 = vpop.f32.mrf.mxu0
        %v2570 = vadd.f32 %v2521, %v2569
        %2571 = vmatmul.bf16.gmra.mxu0 %v2479
        %v2572 = vpop.f32.mrf.mxu0
        %v2573 = vadd.f32 %v2524, %v2572
        %v2574 = vpop.f32.mrf.mxu0
        %v2575 = vadd.f32 %v2526, %v2574
        %2576 = vmatmul.bf16.gmra.mxu0 %v2482
        %v2577 = vpop.f32.mrf.mxu0
        %v2578 = vadd.f32 %v2529, %v2577
        %v2579 = vpop.f32.mrf.mxu0
        %v2580 = vadd.f32 %v2531, %v2579
        %2581 = vdwg.mxu0
        %s2582 = scalar_lea.vmem [#allocation2], 16
        %v2583 = vld [vmem:[%s2582] sm:$0xf]
        %v2584 = vld [vmem:[%s2582 + $0x8] sm:$0xf]
        %v2585 = vld [vmem:[%s2582 + $0x10] sm:$0xf]
        %v2586 = vld [vmem:[%s2582 + $0x18] sm:$0xf]
        %v2587 = vld [vmem:[%s2582 + $0x20] sm:$0xf]
        %v2588 = vld [vmem:[%s2582 + $0x28] sm:$0xf]
        %v2589 = vld [vmem:[%s2582 + $0x30] sm:$0xf]
        %v2590 = vld [vmem:[%s2582 + $0x38] sm:$0xf]
        %v2591 = vld [vmem:[%s2582 + $0x50] sm:$0xf]
        %v2592 = vld [vmem:[%s2582 + $0x58] sm:$0xf]
        %v2593 = vld [vmem:[%s2582 + $0x60] sm:$0xf]
        %v2594 = vld [vmem:[%s2582 + $0x68] sm:$0xf]
        %v2595 = vld [vmem:[%s2582 + $0x70] sm:$0xf]
        %v2596 = vld [vmem:[%s2582 + $0x78] sm:$0xf]
        %v2597 = vld [vmem:[%s2582 + $0x80] sm:$0xf]
        %v2598 = vld [vmem:[%s2582 + $0x88] sm:$0xf]
        %v2599 = vld [vmem:[%s2582 + $0x4] sm:$0x1]
        %v2600 = vld [vmem:[%s2582 + $0xc] sm:$0x1]
        %v2601 = vld [vmem:[%s2582 + $0x14] sm:$0x1]
        %v2602 = vld [vmem:[%s2582 + $0x1c] sm:$0x1]
        %v2603 = vld [vmem:[%s2582 + $0x24] sm:$0x1]
        %v2604 = vld [vmem:[%s2582 + $0x2c] sm:$0x1]
        %v2605 = vld [vmem:[%s2582 + $0x34] sm:$0x1]
        %v2606 = vld [vmem:[%s2582 + $0x3c] sm:$0x1]
        %v2607 = vld [vmem:[%s2582 + $0x54] sm:$0x1]
        %v2608 = vld [vmem:[%s2582 + $0x5c] sm:$0x1]
        %v2609 = vld [vmem:[%s2582 + $0x64] sm:$0x1]
        %v2610 = vld [vmem:[%s2582 + $0x6c] sm:$0x1]
        %v2611 = vld [vmem:[%s2582 + $0x74] sm:$0x1]
        %v2612 = vld [vmem:[%s2582 + $0x7c] sm:$0x1]
        %v2613 = vld [vmem:[%s2582 + $0x84] sm:$0x1]
        %v2614 = vld [vmem:[%s2582 + $0x8c] sm:$0x1]
        %v2616 = vshrl.u32 %v2583, 16
        %v2618 = vrot.slane %v2616, 4
        %v2619 = vshll.u32 %v2583, 16
        %v2621 = vrot.slane %v2619, 5
        %v2622 = vor.u32 %v2618, %v2621
        %v2623 = vrot.slane %v2622, 4
        %v2625 = vshll.u32 %v2599, 16
        %v2627 = vrot.slane %v2625, 5
        %v2628 = vsel %vm1164, %v2623, %v2627
        %v2630 = vshrl.u32 %v2584, 16
        %v2632 = vrot.slane %v2630, 4
        %v2633 = vshll.u32 %v2584, 16
        %v2635 = vrot.slane %v2633, 5
        %v2636 = vor.u32 %v2632, %v2635
        %v2637 = vrot.slane %v2636, 4
        %v2639 = vshll.u32 %v2600, 16
        %v2641 = vrot.slane %v2639, 5
        %v2642 = vsel %vm1164, %v2637, %v2641
        %v2644 = vshrl.u32 %v2585, 16
        %v2646 = vrot.slane %v2644, 4
        %v2647 = vshll.u32 %v2585, 16
        %v2649 = vrot.slane %v2647, 5
        %v2650 = vor.u32 %v2646, %v2649
        %v2651 = vrot.slane %v2650, 4
        %v2653 = vshll.u32 %v2601, 16
        %v2655 = vrot.slane %v2653, 5
        %v2656 = vsel %vm1164, %v2651, %v2655
        %v2658 = vshrl.u32 %v2586, 16
        %v2660 = vrot.slane %v2658, 4
        %v2661 = vshll.u32 %v2586, 16
        %v2663 = vrot.slane %v2661, 5
        %v2664 = vor.u32 %v2660, %v2663
        %v2665 = vrot.slane %v2664, 4
        %v2667 = vshll.u32 %v2602, 16
        %v2669 = vrot.slane %v2667, 5
        %v2670 = vsel %vm1164, %v2665, %v2669
        %v2672 = vshrl.u32 %v2587, 16
        %v2674 = vrot.slane %v2672, 4
        %v2675 = vshll.u32 %v2587, 16
        %v2677 = vrot.slane %v2675, 5
        %v2678 = vor.u32 %v2674, %v2677
        %v2679 = vrot.slane %v2678, 4
        %v2681 = vshll.u32 %v2603, 16
        %v2683 = vrot.slane %v2681, 5
        %v2684 = vsel %vm1164, %v2679, %v2683
        %v2686 = vshrl.u32 %v2588, 16
        %v2688 = vrot.slane %v2686, 4
        %v2689 = vshll.u32 %v2588, 16
        %v2691 = vrot.slane %v2689, 5
        %v2692 = vor.u32 %v2688, %v2691
        %v2693 = vrot.slane %v2692, 4
        %v2695 = vshll.u32 %v2604, 16
        %v2697 = vrot.slane %v2695, 5
        %v2698 = vsel %vm1164, %v2693, %v2697
        %v2700 = vshrl.u32 %v2589, 16
        %v2702 = vrot.slane %v2700, 4
        %v2703 = vshll.u32 %v2589, 16
        %v2705 = vrot.slane %v2703, 5
        %v2706 = vor.u32 %v2702, %v2705
        %v2707 = vrot.slane %v2706, 4
        %v2709 = vshll.u32 %v2605, 16
        %v2711 = vrot.slane %v2709, 5
        %v2712 = vsel %vm1164, %v2707, %v2711
        %v2714 = vshrl.u32 %v2590, 16
        %v2716 = vrot.slane %v2714, 4
        %v2717 = vshll.u32 %v2590, 16
        %v2719 = vrot.slane %v2717, 5
        %v2720 = vor.u32 %v2716, %v2719
        %v2721 = vrot.slane %v2720, 4
        %v2723 = vshll.u32 %v2606, 16
        %v2725 = vrot.slane %v2723, 5
        %v2726 = vsel %vm1164, %v2721, %v2725
        %v2728 = vshrl.u32 %v2591, 16
        %v2730 = vrot.slane %v2728, 4
        %v2731 = vshll.u32 %v2591, 16
        %v2733 = vrot.slane %v2731, 5
        %v2734 = vor.u32 %v2730, %v2733
        %v2735 = vrot.slane %v2734, 4
        %v2737 = vshll.u32 %v2607, 16
        %v2739 = vrot.slane %v2737, 5
        %v2740 = vsel %vm1164, %v2735, %v2739
        %v2742 = vshrl.u32 %v2592, 16
        %v2744 = vrot.slane %v2742, 4
        %v2745 = vshll.u32 %v2592, 16
        %v2747 = vrot.slane %v2745, 5
        %v2748 = vor.u32 %v2744, %v2747
        %v2749 = vrot.slane %v2748, 4
        %v2751 = vshll.u32 %v2608, 16
        %v2753 = vrot.slane %v2751, 5
        %v2754 = vsel %vm1164, %v2749, %v2753
        %v2756 = vshrl.u32 %v2593, 16
        %v2758 = vrot.slane %v2756, 4
        %v2759 = vshll.u32 %v2593, 16
        %v2761 = vrot.slane %v2759, 5
        %v2762 = vor.u32 %v2758, %v2761
        %v2763 = vrot.slane %v2762, 4
        %v2765 = vshll.u32 %v2609, 16
        %v2767 = vrot.slane %v2765, 5
        %v2768 = vsel %vm1164, %v2763, %v2767
        %v2770 = vshrl.u32 %v2594, 16
        %v2772 = vrot.slane %v2770, 4
        %v2773 = vshll.u32 %v2594, 16
        %v2775 = vrot.slane %v2773, 5
        %v2776 = vor.u32 %v2772, %v2775
        %v2777 = vrot.slane %v2776, 4
        %v2779 = vshll.u32 %v2610, 16
        %v2781 = vrot.slane %v2779, 5
        %v2782 = vsel %vm1164, %v2777, %v2781
        %v2784 = vshrl.u32 %v2595, 16
        %v2786 = vrot.slane %v2784, 4
        %v2787 = vshll.u32 %v2595, 16
        %v2789 = vrot.slane %v2787, 5
        %v2790 = vor.u32 %v2786, %v2789
        %v2791 = vrot.slane %v2790, 4
        %v2793 = vshll.u32 %v2611, 16
        %v2795 = vrot.slane %v2793, 5
        %v2796 = vsel %vm1164, %v2791, %v2795
        %v2798 = vshrl.u32 %v2596, 16
        %v2800 = vrot.slane %v2798, 4
        %v2801 = vshll.u32 %v2596, 16
        %v2803 = vrot.slane %v2801, 5
        %v2804 = vor.u32 %v2800, %v2803
        %v2805 = vrot.slane %v2804, 4
        %v2807 = vshll.u32 %v2612, 16
        %v2809 = vrot.slane %v2807, 5
        %v2810 = vsel %vm1164, %v2805, %v2809
        %v2812 = vshrl.u32 %v2597, 16
        %v2814 = vrot.slane %v2812, 4
        %v2815 = vshll.u32 %v2597, 16
        %v2817 = vrot.slane %v2815, 5
        %v2818 = vor.u32 %v2814, %v2817
        %v2819 = vrot.slane %v2818, 4
        %v2821 = vshll.u32 %v2613, 16
        %v2823 = vrot.slane %v2821, 5
        %v2824 = vsel %vm1164, %v2819, %v2823
        %v2826 = vshrl.u32 %v2598, 16
        %v2828 = vrot.slane %v2826, 4
        %v2829 = vshll.u32 %v2598, 16
        %v2831 = vrot.slane %v2829, 5
        %v2832 = vor.u32 %v2828, %v2831
        %v2833 = vrot.slane %v2832, 4
        %v2835 = vshll.u32 %v2614, 16
        %v2837 = vrot.slane %v2835, 5
        %v2838 = vsel %vm1164, %v2833, %v2837
        %v2839 = vld [vmem:[%s2582] sm:$0xe]
        %v2840 = vld [vmem:[%s2582 + $0x8] sm:$0xe]
        %v2841 = vld [vmem:[%s2582 + $0x10] sm:$0xe]
        %v2842 = vld [vmem:[%s2582 + $0x18] sm:$0xe]
        %v2843 = vld [vmem:[%s2582 + $0x20] sm:$0xe]
        %v2844 = vld [vmem:[%s2582 + $0x28] sm:$0xe]
        %v2845 = vld [vmem:[%s2582 + $0x30] sm:$0xe]
        %v2846 = vld [vmem:[%s2582 + $0x38] sm:$0xe]
        %v2847 = vld [vmem:[%s2582 + $0x50] sm:$0xe]
        %v2848 = vld [vmem:[%s2582 + $0x58] sm:$0xe]
        %v2849 = vld [vmem:[%s2582 + $0x60] sm:$0xe]
        %v2850 = vld [vmem:[%s2582 + $0x68] sm:$0xe]
        %v2851 = vld [vmem:[%s2582 + $0x70] sm:$0xe]
        %v2852 = vld [vmem:[%s2582 + $0x78] sm:$0xe]
        %v2853 = vld [vmem:[%s2582 + $0x80] sm:$0xe]
        %v2854 = vld [vmem:[%s2582 + $0x88] sm:$0xe]
        %v2887 = vrot.slane %v2839, 5
        %v2888 = vrot.slane %v2887, 4
        %v2889 = vrot.slane %v2599, 5
        %v2890 = vsel %vm1439, %v2888, %v2889
        %v2891 = vrot.slane %v2840, 5
        %v2892 = vrot.slane %v2891, 4
        %v2893 = vrot.slane %v2600, 5
        %v2894 = vsel %vm1439, %v2892, %v2893
        %v2895 = vrot.slane %v2841, 5
        %v2896 = vrot.slane %v2895, 4
        %v2897 = vrot.slane %v2601, 5
        %v2898 = vsel %vm1439, %v2896, %v2897
        %v2899 = vrot.slane %v2842, 5
        %v2900 = vrot.slane %v2899, 4
        %v2901 = vrot.slane %v2602, 5
        %v2902 = vsel %vm1439, %v2900, %v2901
        %v2903 = vrot.slane %v2843, 5
        %v2904 = vrot.slane %v2903, 4
        %v2905 = vrot.slane %v2603, 5
        %v2906 = vsel %vm1439, %v2904, %v2905
        %v2907 = vrot.slane %v2844, 5
        %v2908 = vrot.slane %v2907, 4
        %v2909 = vrot.slane %v2604, 5
        %v2910 = vsel %vm1439, %v2908, %v2909
        %v2911 = vrot.slane %v2845, 5
        %v2912 = vrot.slane %v2911, 4
        %v2913 = vrot.slane %v2605, 5
        %v2914 = vsel %vm1439, %v2912, %v2913
        %v2915 = vrot.slane %v2846, 5
        %v2916 = vrot.slane %v2915, 4
        %v2917 = vrot.slane %v2606, 5
        %v2918 = vsel %vm1439, %v2916, %v2917
        %v2919 = vrot.slane %v2847, 5
        %v2920 = vrot.slane %v2919, 4
        %v2921 = vrot.slane %v2607, 5
        %v2922 = vsel %vm1439, %v2920, %v2921
        %v2923 = vrot.slane %v2848, 5
        %v2924 = vrot.slane %v2923, 4
        %v2925 = vrot.slane %v2608, 5
        %v2926 = vsel %vm1439, %v2924, %v2925
        %v2927 = vrot.slane %v2849, 5
        %v2928 = vrot.slane %v2927, 4
        %v2929 = vrot.slane %v2609, 5
        %v2930 = vsel %vm1439, %v2928, %v2929
        %v2931 = vrot.slane %v2850, 5
        %v2932 = vrot.slane %v2931, 4
        %v2933 = vrot.slane %v2610, 5
        %v2934 = vsel %vm1439, %v2932, %v2933
        %v2935 = vrot.slane %v2851, 5
        %v2936 = vrot.slane %v2935, 4
        %v2937 = vrot.slane %v2611, 5
        %v2938 = vsel %vm1439, %v2936, %v2937
        %v2939 = vrot.slane %v2852, 5
        %v2940 = vrot.slane %v2939, 4
        %v2941 = vrot.slane %v2612, 5
        %v2942 = vsel %vm1439, %v2940, %v2941
        %v2943 = vrot.slane %v2853, 5
        %v2944 = vrot.slane %v2943, 4
        %v2945 = vrot.slane %v2613, 5
        %v2946 = vsel %vm1439, %v2944, %v2945
        %v2947 = vrot.slane %v2854, 5
        %v2948 = vrot.slane %v2947, 4
        %v2949 = vrot.slane %v2614, 5
        %v2950 = vsel %vm1439, %v2948, %v2949
        %v2967 = vunpack.c.l.b16 %v2583
        %v2968 = vunpack.c.l.b16 %v2584
        %v2969 = vunpack.c.l.b16 %v2585
        %v2970 = vunpack.c.l.b16 %v2586
        %v2971 = vunpack.c.l.b16 %v2587
        %v2972 = vunpack.c.l.b16 %v2588
        %v2973 = vunpack.c.l.b16 %v2589
        %v2974 = vunpack.c.l.b16 %v2590
        %v2975 = vunpack.c.l.b16 %v2591
        %v2976 = vunpack.c.l.b16 %v2592
        %v2977 = vunpack.c.l.b16 %v2593
        %v2978 = vunpack.c.l.b16 %v2594
        %v2979 = vunpack.c.l.b16 %v2595
        %v2980 = vunpack.c.l.b16 %v2596
        %v2981 = vunpack.c.l.b16 %v2597
        %v2982 = vunpack.c.l.b16 %v2598
        %v2983 = vpack.c.b16 %v2968, %v2967
        %v2984 = vpack.c.b16 %v2970, %v2969
        %v2985 = vpack.c.b16 %v2972, %v2971
        %v2986 = vpack.c.b16 %v2974, %v2973
        %v2987 = vpack.c.b16 %v2976, %v2975
        %v2988 = vpack.c.b16 %v2978, %v2977
        %v2989 = vpack.c.b16 %v2980, %v2979
        %v2990 = vpack.c.b16 %v2982, %v2981
        %v2991 = vunpack.c.l.b16 %v2628
        %v2992 = vunpack.c.l.b16 %v2642
        %v2993 = vunpack.c.l.b16 %v2656
        %v2994 = vunpack.c.l.b16 %v2670
        %v2995 = vunpack.c.l.b16 %v2684
        %v2996 = vunpack.c.l.b16 %v2698
        %v2997 = vunpack.c.l.b16 %v2712
        %v2998 = vunpack.c.l.b16 %v2726
        %v2999 = vunpack.c.l.b16 %v2740
        %v3000 = vunpack.c.l.b16 %v2754
        %v3001 = vunpack.c.l.b16 %v2768
        %v3002 = vunpack.c.l.b16 %v2782
        %v3003 = vunpack.c.l.b16 %v2796
        %v3004 = vunpack.c.l.b16 %v2810
        %v3005 = vunpack.c.l.b16 %v2824
        %v3006 = vunpack.c.l.b16 %v2838
        %v3007 = vpack.c.b16 %v2992, %v2991
        %v3008 = vpack.c.b16 %v2994, %v2993
        %v3009 = vpack.c.b16 %v2996, %v2995
        %v3010 = vpack.c.b16 %v2998, %v2997
        %v3011 = vpack.c.b16 %v3000, %v2999
        %v3012 = vpack.c.b16 %v3002, %v3001
        %v3013 = vpack.c.b16 %v3004, %v3003
        %v3014 = vpack.c.b16 %v3006, %v3005
        %3015 = vrot.lane.b32.xlu0 %v3007, 64
        %v3016 = vpop.permute.xlu0 %3015
        %3017 = vrot.lane.b32.xlu0 %v3008, 64
        %v3018 = vpop.permute.xlu0 %3017
        %3019 = vrot.lane.b32.xlu0 %v3009, 64
        %v3020 = vpop.permute.xlu0 %3019
        %3021 = vrot.lane.b32.xlu0 %v3010, 64
        %v3022 = vpop.permute.xlu0 %3021
        %3023 = vrot.lane.b32.xlu0 %v3011, 64
        %v3024 = vpop.permute.xlu0 %3023
        %3025 = vrot.lane.b32.xlu0 %v3012, 64
        %v3026 = vpop.permute.xlu0 %3025
        %3027 = vrot.lane.b32.xlu0 %v3013, 64
        %v3028 = vpop.permute.xlu0 %3027
        %3029 = vrot.lane.b32.xlu0 %v3014, 64
        %v3030 = vpop.permute.xlu0 %3029
        %v3031 = vunpack.c.l.b16 %v2890
        %v3032 = vunpack.c.l.b16 %v2894
        %v3033 = vunpack.c.l.b16 %v2898
        %v3034 = vunpack.c.l.b16 %v2902
        %v3035 = vunpack.c.l.b16 %v2906
        %v3036 = vunpack.c.l.b16 %v2910
        %v3037 = vunpack.c.l.b16 %v2914
        %v3038 = vunpack.c.l.b16 %v2918
        %v3039 = vunpack.c.l.b16 %v2922
        %v3040 = vunpack.c.l.b16 %v2926
        %v3041 = vunpack.c.l.b16 %v2930
        %v3042 = vunpack.c.l.b16 %v2934
        %v3043 = vunpack.c.l.b16 %v2938
        %v3044 = vunpack.c.l.b16 %v2942
        %v3045 = vunpack.c.l.b16 %v2946
        %v3046 = vunpack.c.l.b16 %v2950
        %v3047 = vpack.c.b16 %v3032, %v3031
        %v3048 = vpack.c.b16 %v3034, %v3033
        %v3049 = vpack.c.b16 %v3036, %v3035
        %v3050 = vpack.c.b16 %v3038, %v3037
        %v3051 = vpack.c.b16 %v3040, %v3039
        %v3052 = vpack.c.b16 %v3042, %v3041
        %v3053 = vpack.c.b16 %v3044, %v3043
        %v3054 = vpack.c.b16 %v3046, %v3045
        %v3057 = vsel %vm1608, %v2983, %v3016
        %v3061 = vsel %vm1608, %v2984, %v3018
        %v3065 = vsel %vm1608, %v2985, %v3020
        %v3069 = vsel %vm1608, %v2986, %v3022
        %v3073 = vsel %vm1608, %v2987, %v3024
        %v3077 = vsel %vm1608, %v2988, %v3026
        %v3081 = vsel %vm1608, %v2989, %v3028
        %v3085 = vsel %vm1608, %v2990, %v3030
        %s3087 = scalar_lea.vmem %s4, 192
        %v3088 = vld [vmem:[%s3087] sm:$0xf]
        %v3089 = vld [vmem:[%s3087 + $0x4] sm:$0xf]
        %v3090 = vld [vmem:[%s3087 + $0x8] sm:$0xf]
        %v3091 = vld [vmem:[%s3087 + $0xc] sm:$0xf]
        %v3092 = vld [vmem:[%s3087 + $0x10] sm:$0xf]
        %v3093 = vld [vmem:[%s3087 + $0x14] sm:$0xf]
        %v3094 = vld [vmem:[%s3087 + $0x18] sm:$0xf]
        %v3095 = vld [vmem:[%s3087 + $0x1c] sm:$0xf]
        %v3096 = vld [vmem:[%s3087 + $0x20] sm:$0xf]
        %v3097 = vld [vmem:[%s3087 + $0x24] sm:$0xf]
        %v3098 = vld [vmem:[%s3087 + $0x28] sm:$0xf]
        %v3099 = vld [vmem:[%s3087 + $0x2c] sm:$0xf]
        %v3100 = vld [vmem:[%s3087 + $0x30] sm:$0xf]
        %v3101 = vld [vmem:[%s3087 + $0x34] sm:$0xf]
        %v3102 = vld [vmem:[%s3087 + $0x38] sm:$0xf]
        %v3103 = vld [vmem:[%s3087 + $0x3c] sm:$0xf]
        %v3104 = vld [vmem:[%s3087 + $0x40] sm:$0xf]
        %v3105 = vld [vmem:[%s3087 + $0x44] sm:$0xf]
        %v3106 = vld [vmem:[%s3087 + $0x48] sm:$0xf]
        %v3107 = vld [vmem:[%s3087 + $0x4c] sm:$0xf]
        %v3108 = vld [vmem:[%s3087 + $0x50] sm:$0xf]
        %v3109 = vld [vmem:[%s3087 + $0x54] sm:$0xf]
        %v3110 = vld [vmem:[%s3087 + $0x58] sm:$0xf]
        %v3111 = vld [vmem:[%s3087 + $0x5c] sm:$0xf]
        %v3136 = vunpack.c.l.b16 %v3088
        %v3137 = vunpack.c.l.b16 %v3089
        %v3138 = vunpack.c.l.b16 %v3090
        %v3139 = vunpack.c.l.b16 %v3091
        %v3140 = vunpack.c.l.b16 %v3092
        %v3141 = vunpack.c.l.b16 %v3093
        %v3142 = vunpack.c.l.b16 %v3094
        %v3143 = vunpack.c.l.b16 %v3095
        %v3144 = vunpack.c.l.b16 %v3096
        %v3145 = vunpack.c.l.b16 %v3097
        %v3146 = vunpack.c.l.b16 %v3098
        %v3147 = vunpack.c.l.b16 %v3099
        %v3148 = vunpack.c.l.b16 %v3100
        %v3149 = vunpack.c.l.b16 %v3101
        %v3150 = vunpack.c.l.b16 %v3102
        %v3151 = vunpack.c.l.b16 %v3103
        %v3152 = vunpack.c.l.b16 %v3104
        %v3153 = vunpack.c.l.b16 %v3105
        %v3154 = vunpack.c.l.b16 %v3106
        %v3155 = vunpack.c.l.b16 %v3107
        %v3156 = vunpack.c.l.b16 %v3108
        %v3157 = vunpack.c.l.b16 %v3109
        %v3158 = vunpack.c.l.b16 %v3110
        %v3159 = vunpack.c.l.b16 %v3111
        %v3160 = vpack.c.b16 %v3137, %v3136
        %v3161 = vpack.c.b16 %v3139, %v3138
        %v3162 = vpack.c.b16 %v3141, %v3140
        %v3163 = vpack.c.b16 %v3143, %v3142
        %v3164 = vpack.c.b16 %v3145, %v3144
        %v3165 = vpack.c.b16 %v3147, %v3146
        %v3166 = vpack.c.b16 %v3149, %v3148
        %v3167 = vpack.c.b16 %v3151, %v3150
        %v3168 = vpack.c.b16 %v3153, %v3152
        %v3169 = vpack.c.b16 %v3155, %v3154
        %v3170 = vpack.c.b16 %v3157, %v3156
        %v3171 = vpack.c.b16 %v3159, %v3158
        %v3185 = vsel %vm1608, %v3047, 0
        %v3188 = vsel %vm1608, %v3048, 0
        %v3191 = vsel %vm1608, %v3049, 0
        %v3194 = vsel %vm1608, %v3050, 0
        %v3197 = vsel %vm1608, %v3051, 0
        %v3200 = vsel %vm1608, %v3052, 0
        %v3203 = vsel %vm1608, %v3053, 0
        %v3206 = vsel %vm1608, %v3054, 0
        %3208 = vmatpush.bf16.msra.mxu0 %v3167
        %3209 = vmatpush.bf16.msra.mxu0 %v3166
        %3210 = vmatpush.bf16.msra.mxu0 %v3165
        %3211 = vmatpush.bf16.msra.mxu0 %v3164
        %3212 = vmatpush.bf16.msra.mxu0 %v3163
        %3213 = vmatpush.bf16.msra.mxu0 %v3162
        %3214 = vmatpush.bf16.msra.mxu0 %v3161
        %3215 = vmatpush.bf16.msra.mxu0 %v3160
        %3216 = vmatmul.bf16.gmra.mxu0 %v3057
        %v3217 = vpop.f32.mrf.mxu0
        %v3218 = vadd.f32 0.0, %v3217
        %v3219 = vpop.f32.mrf.mxu0
        %v3220 = vadd.f32 0.0, %v3219
        %3221 = vmatmul.bf16.gmra.mxu0 %v3061
        %v3222 = vpop.f32.mrf.mxu0
        %v3223 = vadd.f32 0.0, %v3222
        %v3224 = vpop.f32.mrf.mxu0
        %v3225 = vadd.f32 0.0, %v3224
        %3226 = vmatmul.bf16.gmra.mxu0 %v3065
        %v3227 = vpop.f32.mrf.mxu0
        %v3228 = vadd.f32 0.0, %v3227
        %v3229 = vpop.f32.mrf.mxu0
        %v3230 = vadd.f32 0.0, %v3229
        %3231 = vmatmul.bf16.gmra.mxu0 %v3069
        %v3232 = vpop.f32.mrf.mxu0
        %v3233 = vadd.f32 0.0, %v3232
        %v3234 = vpop.f32.mrf.mxu0
        %v3235 = vadd.f32 0.0, %v3234
        %3236 = vmatmul.bf16.gmra.mxu0 %v3073
        %v3237 = vpop.f32.mrf.mxu0
        %v3238 = vadd.f32 0.0, %v3237
        %v3239 = vpop.f32.mrf.mxu0
        %v3240 = vadd.f32 0.0, %v3239
        %3241 = vmatmul.bf16.gmra.mxu0 %v3077
        %v3242 = vpop.f32.mrf.mxu0
        %v3243 = vadd.f32 0.0, %v3242
        %v3244 = vpop.f32.mrf.mxu0
        %v3245 = vadd.f32 0.0, %v3244
        %3246 = vmatmul.bf16.gmra.mxu0 %v3081
        %v3247 = vpop.f32.mrf.mxu0
        %v3248 = vadd.f32 0.0, %v3247
        %v3249 = vpop.f32.mrf.mxu0
        %v3250 = vadd.f32 0.0, %v3249
        %3251 = vmatmul.bf16.gmra.mxu0 %v3085
        %v3252 = vpop.f32.mrf.mxu0
        %v3253 = vadd.f32 0.0, %v3252
        %v3254 = vpop.f32.mrf.mxu0
        %v3255 = vadd.f32 0.0, %v3254
        %3256 = vdwg.mxu0
        %3257 = vmatpush.bf16.msra.mxu0 0
        %3258 = vmatpush.bf16.msra.mxu0 0
        %3259 = vmatpush.bf16.msra.mxu0 0
        %3260 = vmatpush.bf16.msra.mxu0 0
        %3261 = vmatpush.bf16.msra.mxu0 %v3171
        %3262 = vmatpush.bf16.msra.mxu0 %v3170
        %3263 = vmatpush.bf16.msra.mxu0 %v3169
        %3264 = vmatpush.bf16.msra.mxu0 %v3168
        %3265 = vmatmul.bf16.gmra.mxu0 %v3185
        %v3266 = vpop.f32.mrf.mxu0
        %v3267 = vadd.f32 %v3218, %v3266
        %v3268 = vpop.f32.mrf.mxu0
        %v3269 = vadd.f32 %v3220, %v3268
        %3270 = vmatmul.bf16.gmra.mxu0 %v3188
        %v3271 = vpop.f32.mrf.mxu0
        %v3272 = vadd.f32 %v3223, %v3271
        %v3273 = vpop.f32.mrf.mxu0
        %v3274 = vadd.f32 %v3225, %v3273
        %3275 = vmatmul.bf16.gmra.mxu0 %v3191
        %v3276 = vpop.f32.mrf.mxu0
        %v3277 = vadd.f32 %v3228, %v3276
        %v3278 = vpop.f32.mrf.mxu0
        %v3279 = vadd.f32 %v3230, %v3278
        %3280 = vmatmul.bf16.gmra.mxu0 %v3194
        %v3281 = vpop.f32.mrf.mxu0
        %v3282 = vadd.f32 %v3233, %v3281
        %v3283 = vpop.f32.mrf.mxu0
        %v3284 = vadd.f32 %v3235, %v3283
        %3285 = vmatmul.bf16.gmra.mxu0 %v3197
        %v3286 = vpop.f32.mrf.mxu0
        %v3287 = vadd.f32 %v3238, %v3286
        %v3288 = vpop.f32.mrf.mxu0
        %v3289 = vadd.f32 %v3240, %v3288
        %3290 = vmatmul.bf16.gmra.mxu0 %v3200
        %v3291 = vpop.f32.mrf.mxu0
        %v3292 = vadd.f32 %v3243, %v3291
        %v3293 = vpop.f32.mrf.mxu0
        %v3294 = vadd.f32 %v3245, %v3293
        %3295 = vmatmul.bf16.gmra.mxu0 %v3203
        %v3296 = vpop.f32.mrf.mxu0
        %v3297 = vadd.f32 %v3248, %v3296
        %v3298 = vpop.f32.mrf.mxu0
        %v3299 = vadd.f32 %v3250, %v3298
        %3300 = vmatmul.bf16.gmra.mxu0 %v3206
        %v3301 = vpop.f32.mrf.mxu0
        %v3302 = vadd.f32 %v3253, %v3301
        %v3303 = vpop.f32.mrf.mxu0
        %v3304 = vadd.f32 %v3255, %v3303
        %3305 = vdwg.mxu0
        %v3306 = vadd.f32 %v2543, %v3267
        %v3307 = vadd.f32 %v2545, %v3269
        %v3308 = vadd.f32 %v2548, %v3272
        %v3309 = vadd.f32 %v2550, %v3274
        %v3310 = vadd.f32 %v2553, %v3277
        %v3311 = vadd.f32 %v2555, %v3279
        %v3312 = vadd.f32 %v2558, %v3282
        %v3313 = vadd.f32 %v2560, %v3284
        %v3314 = vadd.f32 %v2563, %v3287
        %v3315 = vadd.f32 %v2565, %v3289
        %v3316 = vadd.f32 %v2568, %v3292
        %v3317 = vadd.f32 %v2570, %v3294
        %v3318 = vadd.f32 %v2573, %v3297
        %v3319 = vadd.f32 %v2575, %v3299
        %v3320 = vadd.f32 %v2578, %v3302
        %v3321 = vadd.f32 %v2580, %v3304
        %v3322 = vld [vmem:[%s5] sm:$0x1]
        %v3324 = vperm.slane %v3322, 0
        %v3326 = vmul.f32 %v3306, %v3324
        %v3327 = vmul.f32 %v3307, %v3324
        %v3328 = vmul.f32 %v3308, %v3324
        %v3329 = vmul.f32 %v3309, %v3324
        %v3330 = vmul.f32 %v3310, %v3324
        %v3331 = vmul.f32 %v3311, %v3324
        %v3332 = vmul.f32 %v3312, %v3324
        %v3333 = vmul.f32 %v3313, %v3324
        %v3334 = vmul.f32 %v3314, %v3324
        %v3335 = vmul.f32 %v3315, %v3324
        %v3336 = vmul.f32 %v3316, %v3324
        %v3337 = vmul.f32 %v3317, %v3324
        %v3338 = vmul.f32 %v3318, %v3324
        %v3339 = vmul.f32 %v3319, %v3324
        %v3340 = vmul.f32 %v3320, %v3324
        %v3341 = vmul.f32 %v3321, %v3324
        %v3342 = vld [vmem:[%s6] sm:$0x1]
        %v3344 = vperm.slane %v3342, 0
        %v3346 = vadd.f32 %v3326, %v3344
        %v3347 = vadd.f32 %v3327, %v3344
        %v3348 = vadd.f32 %v3328, %v3344
        %v3349 = vadd.f32 %v3329, %v3344
        %v3350 = vadd.f32 %v3330, %v3344
        %v3351 = vadd.f32 %v3331, %v3344
        %v3352 = vadd.f32 %v3332, %v3344
        %v3353 = vadd.f32 %v3333, %v3344
        %v3354 = vadd.f32 %v3334, %v3344
        %v3355 = vadd.f32 %v3335, %v3344
        %v3356 = vadd.f32 %v3336, %v3344
        %v3357 = vadd.f32 %v3337, %v3344
        %v3358 = vadd.f32 %v3338, %v3344
        %v3359 = vadd.f32 %v3339, %v3344
        %v3360 = vadd.f32 %v3340, %v3344
        %v3361 = vadd.f32 %v3341, %v3344
        %v3362 = vmax.f32 %v3346, 0.0
        %v3363 = vmax.f32 %v3347, 0.0
        %v3364 = vmax.f32 %v3348, 0.0
        %v3365 = vmax.f32 %v3349, 0.0
        %v3366 = vmax.f32 %v3350, 0.0
        %v3367 = vmax.f32 %v3351, 0.0
        %v3368 = vmax.f32 %v3352, 0.0
        %v3369 = vmax.f32 %v3353, 0.0
        %v3370 = vmax.f32 %v3354, 0.0
        %v3371 = vmax.f32 %v3355, 0.0
        %v3372 = vmax.f32 %v3356, 0.0
        %v3373 = vmax.f32 %v3357, 0.0
        %v3374 = vmax.f32 %v3358, 0.0
        %v3375 = vmax.f32 %v3359, 0.0
        %v3376 = vmax.f32 %v3360, 0.0
        %v3377 = vmax.f32 %v3361, 0.0
        %v3378 = vpack.c.bf16 %v3363, %v3362
        %v3379 = vpack.c.bf16 %v3365, %v3364
        %v3380 = vpack.c.bf16 %v3367, %v3366
        %v3381 = vpack.c.bf16 %v3369, %v3368
        %v3382 = vpack.c.bf16 %v3371, %v3370
        %v3383 = vpack.c.bf16 %v3373, %v3372
        %v3384 = vpack.c.bf16 %v3375, %v3374
        %v3385 = vpack.c.bf16 %v3377, %v3376
        %v3386 = vld [vmem:[%s7] sm:$0xff]
        %v3387 = vld [vmem:[%s7 + $0x8] sm:$0xff]
        %v3388 = vld [vmem:[%s7 + $0x10] sm:$0xff]
        %v3389 = vld [vmem:[%s7 + $0x18] sm:$0xff]
        %v3390 = vld [vmem:[%s7 + $0x20] sm:$0xff]
        %v3391 = vld [vmem:[%s7 + $0x28] sm:$0xff]
        %v3392 = vld [vmem:[%s7 + $0x30] sm:$0xff]
        %v3393 = vld [vmem:[%s7 + $0x38] sm:$0xff]
        %v3402 = vunpack.c.l.b16 %v3386
        %v3403 = vunpack.c.h.b16 %v3386
        %v3404 = vunpack.c.l.b16 %v3387
        %v3405 = vunpack.c.h.b16 %v3387
        %v3406 = vunpack.c.l.b16 %v3388
        %v3407 = vunpack.c.h.b16 %v3388
        %v3408 = vunpack.c.l.b16 %v3389
        %v3409 = vunpack.c.h.b16 %v3389
        %v3410 = vunpack.c.l.b16 %v3390
        %v3411 = vunpack.c.h.b16 %v3390
        %v3412 = vunpack.c.l.b16 %v3391
        %v3413 = vunpack.c.h.b16 %v3391
        %v3414 = vunpack.c.l.b16 %v3392
        %v3415 = vunpack.c.h.b16 %v3392
        %v3416 = vunpack.c.l.b16 %v3393
        %v3417 = vunpack.c.h.b16 %v3393
        %v3418 = vpack.c.b16 %v3404, %v3402
        %v3419 = vpack.c.b16 %v3405, %v3403
        %v3420 = vpack.c.b16 %v3408, %v3406
        %v3421 = vpack.c.b16 %v3409, %v3407
        %v3422 = vpack.c.b16 %v3412, %v3410
        %v3423 = vpack.c.b16 %v3413, %v3411
        %v3424 = vpack.c.b16 %v3416, %v3414
        %v3425 = vpack.c.b16 %v3417, %v3415
        %v3435 = vsel %vm1608, %v3378, 0
        %v3438 = vsel %vm1608, %v3379, 0
        %v3441 = vsel %vm1608, %v3380, 0
        %v3444 = vsel %vm1608, %v3381, 0
        %v3447 = vsel %vm1608, %v3382, 0
        %v3450 = vsel %vm1608, %v3383, 0
        %v3453 = vsel %vm1608, %v3384, 0
        %v3456 = vsel %vm1608, %v3385, 0
        %3458 = vmatpush.bf16.msra.mxu0 0
        %3459 = vmatpush.bf16.msra.mxu0 0
        %3460 = vmatpush.bf16.msra.mxu0 0
        %3461 = vmatpush.bf16.msra.mxu0 0
        %3462 = vmatpush.bf16.msra.mxu0 %v3424
        %3463 = vmatpush.bf16.msra.mxu0 %v3422
        %3464 = vmatpush.bf16.msra.mxu0 %v3420
        %3465 = vmatpush.bf16.msra.mxu0 %v3418
        %3466 = vmatmul.bf16.gmra.mxu0 %v3435
        %v3467 = vpop.f32.mrf.mxu0
        %v3468 = vadd.f32 0.0, %v3467
        %v3469 = vpop.f32.mrf.mxu0
        %v3470 = vadd.f32 0.0, %v3469
        %3471 = vmatmul.bf16.gmra.mxu0 %v3438
        %v3472 = vpop.f32.mrf.mxu0
        %v3473 = vadd.f32 0.0, %v3472
        %v3474 = vpop.f32.mrf.mxu0
        %v3475 = vadd.f32 0.0, %v3474
        %3476 = vmatmul.bf16.gmra.mxu0 %v3441
        %v3477 = vpop.f32.mrf.mxu0
        %v3478 = vadd.f32 0.0, %v3477
        %v3479 = vpop.f32.mrf.mxu0
        %v3480 = vadd.f32 0.0, %v3479
        %3481 = vmatmul.bf16.gmra.mxu0 %v3444
        %v3482 = vpop.f32.mrf.mxu0
        %v3483 = vadd.f32 0.0, %v3482
        %v3484 = vpop.f32.mrf.mxu0
        %v3485 = vadd.f32 0.0, %v3484
        %3486 = vmatmul.bf16.gmra.mxu0 %v3447
        %v3487 = vpop.f32.mrf.mxu0
        %v3488 = vadd.f32 0.0, %v3487
        %v3489 = vpop.f32.mrf.mxu0
        %v3490 = vadd.f32 0.0, %v3489
        %3491 = vmatmul.bf16.gmra.mxu0 %v3450
        %v3492 = vpop.f32.mrf.mxu0
        %v3493 = vadd.f32 0.0, %v3492
        %v3494 = vpop.f32.mrf.mxu0
        %v3495 = vadd.f32 0.0, %v3494
        %3496 = vmatmul.bf16.gmra.mxu0 %v3453
        %v3497 = vpop.f32.mrf.mxu0
        %v3498 = vadd.f32 0.0, %v3497
        %v3499 = vpop.f32.mrf.mxu0
        %v3500 = vadd.f32 0.0, %v3499
        %3501 = vmatmul.bf16.gmra.mxu0 %v3456
        %v3502 = vpop.f32.mrf.mxu0
        %v3503 = vadd.f32 0.0, %v3502
        %v3504 = vpop.f32.mrf.mxu0
        %v3505 = vadd.f32 0.0, %v3504
        %3506 = vdwg.mxu0
        %3507 = vmatpush.bf16.msra.mxu0 0
        %3508 = vmatpush.bf16.msra.mxu0 0
        %3509 = vmatpush.bf16.msra.mxu0 0
        %3510 = vmatpush.bf16.msra.mxu0 0
        %3511 = vmatpush.bf16.msra.mxu0 %v3425
        %3512 = vmatpush.bf16.msra.mxu0 %v3423
        %3513 = vmatpush.bf16.msra.mxu0 %v3421
        %3514 = vmatpush.bf16.msra.mxu0 %v3419
        %3515 = vmatmul.bf16.gmra.mxu0 %v3435
        %v3516 = vpop.f32.mrf.mxu0
        %v3517 = vadd.f32 0.0, %v3516
        %v3518 = vpop.f32.mrf.mxu0
        %v3519 = vadd.f32 0.0, %v3518
        %3520 = vmatmul.bf16.gmra.mxu0 %v3438
        %v3521 = vpop.f32.mrf.mxu0
        %v3522 = vadd.f32 0.0, %v3521
        %v3523 = vpop.f32.mrf.mxu0
        %v3524 = vadd.f32 0.0, %v3523
        %3525 = vmatmul.bf16.gmra.mxu0 %v3441
        %v3526 = vpop.f32.mrf.mxu0
        %v3527 = vadd.f32 0.0, %v3526
        %v3528 = vpop.f32.mrf.mxu0
        %v3529 = vadd.f32 0.0, %v3528
        %3530 = vmatmul.bf16.gmra.mxu0 %v3444
        %v3531 = vpop.f32.mrf.mxu0
        %v3532 = vadd.f32 0.0, %v3531
        %v3533 = vpop.f32.mrf.mxu0
        %v3534 = vadd.f32 0.0, %v3533
        %3535 = vmatmul.bf16.gmra.mxu0 %v3447
        %v3536 = vpop.f32.mrf.mxu0
        %v3537 = vadd.f32 0.0, %v3536
        %v3538 = vpop.f32.mrf.mxu0
        %v3539 = vadd.f32 0.0, %v3538
        %3540 = vmatmul.bf16.gmra.mxu0 %v3450
        %v3541 = vpop.f32.mrf.mxu0
        %v3542 = vadd.f32 0.0, %v3541
        %v3543 = vpop.f32.mrf.mxu0
        %v3544 = vadd.f32 0.0, %v3543
        %3545 = vmatmul.bf16.gmra.mxu0 %v3453
        %v3546 = vpop.f32.mrf.mxu0
        %v3547 = vadd.f32 0.0, %v3546
        %v3548 = vpop.f32.mrf.mxu0
        %v3549 = vadd.f32 0.0, %v3548
        %3550 = vmatmul.bf16.gmra.mxu0 %v3456
        %v3551 = vpop.f32.mrf.mxu0
        %v3552 = vadd.f32 0.0, %v3551
        %v3553 = vpop.f32.mrf.mxu0
        %v3554 = vadd.f32 0.0, %v3553
        %3555 = vdwg.mxu0
        %v3556 = vld [vmem:[%s8] sm:$0x3]
        %v3558 = vperm.slane %v3556, 0
        %v3559 = vperm.slane %v3556, 1
        %v3562 = vmul.f32 %v3468, %v3558
        %v3563 = vmul.f32 %v3517, %v3559
        %v3564 = vmul.f32 %v3470, %v3558
        %v3565 = vmul.f32 %v3519, %v3559
        %v3566 = vmul.f32 %v3473, %v3558
        %v3567 = vmul.f32 %v3522, %v3559
        %v3568 = vmul.f32 %v3475, %v3558
        %v3569 = vmul.f32 %v3524, %v3559
        %v3570 = vmul.f32 %v3478, %v3558
        %v3571 = vmul.f32 %v3527, %v3559
        %v3572 = vmul.f32 %v3480, %v3558
        %v3573 = vmul.f32 %v3529, %v3559
        %v3574 = vmul.f32 %v3483, %v3558
        %v3575 = vmul.f32 %v3532, %v3559
        %v3576 = vmul.f32 %v3485, %v3558
        %v3577 = vmul.f32 %v3534, %v3559
        %v3578 = vmul.f32 %v3488, %v3558
        %v3579 = vmul.f32 %v3537, %v3559
        %v3580 = vmul.f32 %v3490, %v3558
        %v3581 = vmul.f32 %v3539, %v3559
        %v3582 = vmul.f32 %v3493, %v3558
        %v3583 = vmul.f32 %v3542, %v3559
        %v3584 = vmul.f32 %v3495, %v3558
        %v3585 = vmul.f32 %v3544, %v3559
        %v3586 = vmul.f32 %v3498, %v3558
        %v3587 = vmul.f32 %v3547, %v3559
        %v3588 = vmul.f32 %v3500, %v3558
        %v3589 = vmul.f32 %v3549, %v3559
        %v3590 = vmul.f32 %v3503, %v3558
        %v3591 = vmul.f32 %v3552, %v3559
        %v3592 = vmul.f32 %v3505, %v3558
        %v3593 = vmul.f32 %v3554, %v3559
        %v3594 = vld [vmem:[%s9] sm:$0x3]
        %v3596 = vperm.slane %v3594, 0
        %v3597 = vperm.slane %v3594, 1
        %v3600 = vadd.f32 %v3562, %v3596
        %v3601 = vadd.f32 %v3563, %v3597
        %v3602 = vadd.f32 %v3564, %v3596
        %v3603 = vadd.f32 %v3565, %v3597
        %v3604 = vadd.f32 %v3566, %v3596
        %v3605 = vadd.f32 %v3567, %v3597
        %v3606 = vadd.f32 %v3568, %v3596
        %v3607 = vadd.f32 %v3569, %v3597
        %v3608 = vadd.f32 %v3570, %v3596
        %v3609 = vadd.f32 %v3571, %v3597
        %v3610 = vadd.f32 %v3572, %v3596
        %v3611 = vadd.f32 %v3573, %v3597
        %v3612 = vadd.f32 %v3574, %v3596
        %v3613 = vadd.f32 %v3575, %v3597
        %v3614 = vadd.f32 %v3576, %v3596
        %v3615 = vadd.f32 %v3577, %v3597
        %v3616 = vadd.f32 %v3578, %v3596
        %v3617 = vadd.f32 %v3579, %v3597
        %v3618 = vadd.f32 %v3580, %v3596
        %v3619 = vadd.f32 %v3581, %v3597
        %v3620 = vadd.f32 %v3582, %v3596
        %v3621 = vadd.f32 %v3583, %v3597
        %v3622 = vadd.f32 %v3584, %v3596
        %v3623 = vadd.f32 %v3585, %v3597
        %v3624 = vadd.f32 %v3586, %v3596
        %v3625 = vadd.f32 %v3587, %v3597
        %v3626 = vadd.f32 %v3588, %v3596
        %v3627 = vadd.f32 %v3589, %v3597
        %v3628 = vadd.f32 %v3590, %v3596
        %v3629 = vadd.f32 %v3591, %v3597
        %v3630 = vadd.f32 %v3592, %v3596
        %v3631 = vadd.f32 %v3593, %v3597
        %v3632 = vld [vmem:[%s361] sm:$0xff]
        %v3633 = vld [vmem:[%s361 + $0x8] sm:$0xff]
        %v3634 = vld [vmem:[%s361 + $0x10] sm:$0xff]
        %v3635 = vld [vmem:[%s361 + $0x18] sm:$0xff]
        %v3636 = vld [vmem:[%s361 + $0x20] sm:$0xff]
        %v3637 = vld [vmem:[%s361 + $0x28] sm:$0xff]
        %v3638 = vld [vmem:[%s361 + $0x30] sm:$0xff]
        %v3639 = vld [vmem:[%s361 + $0x38] sm:$0xff]
        %v3640 = vld [vmem:[%s361 + $0x40] sm:$0xff]
        %v3641 = vld [vmem:[%s361 + $0x48] sm:$0xff]
        %v3642 = vld [vmem:[%s361 + $0x50] sm:$0xff]
        %v3643 = vld [vmem:[%s361 + $0x58] sm:$0xff]
        %v3644 = vld [vmem:[%s361 + $0x60] sm:$0xff]
        %v3645 = vld [vmem:[%s361 + $0x68] sm:$0xff]
        %v3646 = vld [vmem:[%s361 + $0x70] sm:$0xff]
        %v3647 = vld [vmem:[%s361 + $0x78] sm:$0xff]
        %v3648 = vunpack.c.l.bf16 %v3632
        %v3649 = vunpack.c.h.bf16 %v3632
        %v3650 = vunpack.c.l.bf16 %v3633
        %v3651 = vunpack.c.h.bf16 %v3633
        %v3652 = vunpack.c.l.bf16 %v3634
        %v3653 = vunpack.c.h.bf16 %v3634
        %v3654 = vunpack.c.l.bf16 %v3635
        %v3655 = vunpack.c.h.bf16 %v3635
        %v3656 = vunpack.c.l.bf16 %v3636
        %v3657 = vunpack.c.h.bf16 %v3636
        %v3658 = vunpack.c.l.bf16 %v3637
        %v3659 = vunpack.c.h.bf16 %v3637
        %v3660 = vunpack.c.l.bf16 %v3638
        %v3661 = vunpack.c.h.bf16 %v3638
        %v3662 = vunpack.c.l.bf16 %v3639
        %v3663 = vunpack.c.h.bf16 %v3639
        %v3664 = vunpack.c.l.bf16 %v3640
        %v3665 = vunpack.c.h.bf16 %v3640
        %v3666 = vunpack.c.l.bf16 %v3641
        %v3667 = vunpack.c.h.bf16 %v3641
        %v3668 = vunpack.c.l.bf16 %v3642
        %v3669 = vunpack.c.h.bf16 %v3642
        %v3670 = vunpack.c.l.bf16 %v3643
        %v3671 = vunpack.c.h.bf16 %v3643
        %v3672 = vunpack.c.l.bf16 %v3644
        %v3673 = vunpack.c.h.bf16 %v3644
        %v3674 = vunpack.c.l.bf16 %v3645
        %v3675 = vunpack.c.h.bf16 %v3645
        %v3676 = vunpack.c.l.bf16 %v3646
        %v3677 = vunpack.c.h.bf16 %v3646
        %v3678 = vunpack.c.l.bf16 %v3647
        %v3679 = vunpack.c.h.bf16 %v3647
        %v3680 = vadd.f32 %v3600, %v3648
        %v3681 = vadd.f32 %v3601, %v3649
        %v3682 = vadd.f32 %v3602, %v3650
        %v3683 = vadd.f32 %v3603, %v3651
        %v3684 = vadd.f32 %v3604, %v3652
        %v3685 = vadd.f32 %v3605, %v3653
        %v3686 = vadd.f32 %v3606, %v3654
        %v3687 = vadd.f32 %v3607, %v3655
        %v3688 = vadd.f32 %v3608, %v3656
        %v3689 = vadd.f32 %v3609, %v3657
        %v3690 = vadd.f32 %v3610, %v3658
        %v3691 = vadd.f32 %v3611, %v3659
        %v3692 = vadd.f32 %v3612, %v3660
        %v3693 = vadd.f32 %v3613, %v3661
        %v3694 = vadd.f32 %v3614, %v3662
        %v3695 = vadd.f32 %v3615, %v3663
        %v3696 = vadd.f32 %v3616, %v3664
        %v3697 = vadd.f32 %v3617, %v3665
        %v3698 = vadd.f32 %v3618, %v3666
        %v3699 = vadd.f32 %v3619, %v3667
        %v3700 = vadd.f32 %v3620, %v3668
        %v3701 = vadd.f32 %v3621, %v3669
        %v3702 = vadd.f32 %v3622, %v3670
        %v3703 = vadd.f32 %v3623, %v3671
        %v3704 = vadd.f32 %v3624, %v3672
        %v3705 = vadd.f32 %v3625, %v3673
        %v3706 = vadd.f32 %v3626, %v3674
        %v3707 = vadd.f32 %v3627, %v3675
        %v3708 = vadd.f32 %v3628, %v3676
        %v3709 = vadd.f32 %v3629, %v3677
        %v3710 = vadd.f32 %v3630, %v3678
        %v3711 = vadd.f32 %v3631, %v3679
        %v3712 = vmax.f32 %v3680, 0.0
        %v3713 = vmax.f32 %v3681, 0.0
        %v3714 = vmax.f32 %v3682, 0.0
        %v3715 = vmax.f32 %v3683, 0.0
        %v3716 = vmax.f32 %v3684, 0.0
        %v3717 = vmax.f32 %v3685, 0.0
        %v3718 = vmax.f32 %v3686, 0.0
        %v3719 = vmax.f32 %v3687, 0.0
        %v3720 = vmax.f32 %v3688, 0.0
        %v3721 = vmax.f32 %v3689, 0.0
        %v3722 = vmax.f32 %v3690, 0.0
        %v3723 = vmax.f32 %v3691, 0.0
        %v3724 = vmax.f32 %v3692, 0.0
        %v3725 = vmax.f32 %v3693, 0.0
        %v3726 = vmax.f32 %v3694, 0.0
        %v3727 = vmax.f32 %v3695, 0.0
        %v3728 = vmax.f32 %v3696, 0.0
        %v3729 = vmax.f32 %v3697, 0.0
        %v3730 = vmax.f32 %v3698, 0.0
        %v3731 = vmax.f32 %v3699, 0.0
        %v3732 = vmax.f32 %v3700, 0.0
        %v3733 = vmax.f32 %v3701, 0.0
        %v3734 = vmax.f32 %v3702, 0.0
        %v3735 = vmax.f32 %v3703, 0.0
        %v3736 = vmax.f32 %v3704, 0.0
        %v3737 = vmax.f32 %v3705, 0.0
        %v3738 = vmax.f32 %v3706, 0.0
        %v3739 = vmax.f32 %v3707, 0.0
        %v3740 = vmax.f32 %v3708, 0.0
        %v3741 = vmax.f32 %v3709, 0.0
        %v3742 = vmax.f32 %v3710, 0.0
        %v3743 = vmax.f32 %v3711, 0.0
        %v3744 = vpack.c.bf16 %v3713, %v3712
        %v3745 = vpack.c.bf16 %v3715, %v3714
        %v3746 = vpack.c.bf16 %v3717, %v3716
        %v3747 = vpack.c.bf16 %v3719, %v3718
        %v3748 = vpack.c.bf16 %v3721, %v3720
        %v3749 = vpack.c.bf16 %v3723, %v3722
        %v3750 = vpack.c.bf16 %v3725, %v3724
        %v3751 = vpack.c.bf16 %v3727, %v3726
        %v3752 = vpack.c.bf16 %v3729, %v3728
        %v3753 = vpack.c.bf16 %v3731, %v3730
        %v3754 = vpack.c.bf16 %v3733, %v3732
        %v3755 = vpack.c.bf16 %v3735, %v3734
        %v3756 = vpack.c.bf16 %v3737, %v3736
        %v3757 = vpack.c.bf16 %v3739, %v3738
        %v3758 = vpack.c.bf16 %v3741, %v3740
        %v3759 = vpack.c.bf16 %v3743, %v3742
        %3760 = vst [vmem:[%s355] sm:$0xff] %v3744
        %3761 = vst [vmem:[%s355 + $0x8] sm:$0xff] %v3745
        %3762 = vst [vmem:[%s355 + $0x10] sm:$0xff] %v3746
        %3763 = vst [vmem:[%s355 + $0x18] sm:$0xff] %v3747
        %3764 = vst [vmem:[%s355 + $0x20] sm:$0xff] %v3748
        %3765 = vst [vmem:[%s355 + $0x28] sm:$0xff] %v3749
        %3766 = vst [vmem:[%s355 + $0x30] sm:$0xff] %v3750
        %3767 = vst [vmem:[%s355 + $0x38] sm:$0xff] %v3751
        %3768 = vst [vmem:[%s355 + $0x40] sm:$0xff] %v3752
        %3769 = vst [vmem:[%s355 + $0x48] sm:$0xff] %v3753
        %3770 = vst [vmem:[%s355 + $0x50] sm:$0xff] %v3754
        %3771 = vst [vmem:[%s355 + $0x58] sm:$0xff] %v3755
        %3772 = vst [vmem:[%s355 + $0x60] sm:$0xff] %v3756
        %3773 = vst [vmem:[%s355 + $0x68] sm:$0xff] %v3757
        %3774 = vst [vmem:[%s355 + $0x70] sm:$0xff] %v3758
        %3775 = vst [vmem:[%s355 + $0x78] sm:$0xff] %v3759
        %s3776 = sand.u32 %s247, 1
        %s3777 = scalar_lea.sflag [#allocation4], %s3776
        %s3778 = sand.u32 %s247, 1
        %s3779 = smul.addr %s3778, 128
        %s3780 = scalar_lea.vmem [#allocation3], %s3779
        // Predicated region
        $region61: #{tpu_custom_call.1} parent=59 // pred_check
          %p3781 = pneg %p257
        $region62: #{tpu_custom_call.1} parent=59 // pred_check_branch
          %3783 = sbr.rel (%p3781) target = $region64
        $region63: #{tpu_custom_call.1} parent=59 // pred_region
          %s3784 = smul.u32 2, %s24
          %3786 = vsyncadd %s3777, 0
          %s3787 = smul.addr %s3784, 16
          %s3788 = smul.addr %s3787, 4
          %s3789 = scalar_lea.hbm %s10, %s3788
          %s3790 = sshll.u32 %s3780, 4
          %s3791 = int_to_ptr.vmem [resolvable:$true] %s3790
          %s3792 = sshll.u32 %s3789, 4
          %s3793 = int_to_ptr.hbm [resolvable:$true] %s3792
          %3798 = dma.vmem_to_hbm [thread:$0]  %s3791, 2048, %s3793, %s3777, 128, 128, 8
        $region64: #{tpu_custom_call.1} parent=59 // pred_fallthru
          _
      $region60: #{tpu_custom_call.1} parent=5 // pred_fallthru
        _
      %p3799 = scmp.le.s32.totalorder 2, %s19
      // Predicated region
      $region65: #{tpu_custom_call.1} parent=5 // pred_check
        %p3800 = pneg %p3799
      $region66: #{tpu_custom_call.1} parent=5 // pred_check_branch
        %3802 = sbr.rel (%p3800) target = $region68
      $region67: #{tpu_custom_call.1} parent=5 // pred_region
        %s3803 = ssub.s32 %s19, 2
        // Predicated region
        $region69: #{tpu_custom_call.1} parent=67 // pred_check
          %p3804 = pneg %p263
        $region70: #{tpu_custom_call.1} parent=67 // pred_check_branch
          %3806 = sbr.rel (%p3804) target = $region72
        $region71: #{tpu_custom_call.1} parent=67 // pred_region
          %s3807 = sand.u32 %s248, 1
          %s3808 = scalar_lea.sflag [#allocation4], %s3807
          %s3809 = sand.u32 %s248, 1
          %s3810 = smul.addr %s3809, 128
          %s3811 = scalar_lea.vmem [#allocation3], %s3810
          %3813 = dma.done %s3808, 2048
        $region72: #{tpu_custom_call.1} parent=67 // pred_fallthru
          _
      $region68: #{tpu_custom_call.1} parent=5 // pred_fallthru
        _
    $region6: #{tpu_custom_call.1} parent=1 // loop_footer
      %s23 = sadd.s32 1, %s19
    $region7: #{tpu_custom_call.1} parent=1 // loop_footer_branch
      %18 = sbr.rel target = $region3
    $region8: #{tpu_custom_call.1} parent=1 // loop_exit
      _
    %3814 = vsyncpa [#allocation4], 1
    %s3815 = scalar_lea.sflag [#allocation4], 1
    %3816 = vsyncpa %s3815, 1

</llo_original>
